<compile_context>
chip_gen: v7x
topology: tpu7x:2x2x1
jax: 0.10.0
libtpu: 0.0.40
codegen_flags: <defaults>
</compile_context>

<pallas_src>
import functools

import jax
import jax.numpy as jnp
from jax import lax
from jax.experimental import pallas as pl
from jax.experimental.pallas import tpu as pltpu

# config: CGBlock(in_channels=64, out_channels=64, dilation=2, reduction=16)
B, H, W = 2, 16, 16
CIN = 64            # in_channels
COUT = 64           # out_channels (residual requires CIN == COUT)
CMID = COUT // 2    # conv_1x1 output channels
DIL = 2             # dilation of f_sur
RED = 16            # reduction
CR = COUT // RED    # bottleneck width of fglo_linear


def _images_per_step(batch):
    """v7x has 2 TensorCores/chip: keep one image per grid step so the
    'parallel' batch axis shards across cores.  Single-TC v5e/v6e: fold the
    whole batch into the lane axis (one grid step, 512-lane matmul/stores)."""
    try:
        kind = jax.devices()[0].device_kind.lower()
    except Exception:
        kind = ""
    return 1 if "v7" in kind else batch


def _tap_masks(h, w, d, nb):
    """(18, nb*h*w) f32 boundary masks, built host-side.

    Rows 0..8  = f_loc taps (dil=1), row index kh*3+kw.
    Rows 9..17 = f_sur taps (dil=d).
    1.0 where the shifted tap lands inside the image, 0.0 where zero-padding
    applies.  Because the masks are per-image-position based, they also zero
    every lane-roll wrap across folded image boundaries."""
    hw = h * w
    lane = jnp.arange(hw, dtype=jnp.int32)
    hi = lane // w
    wi = lane % w
    rows = []
    for dil in (1, d):
        for kh in range(3):
            for kw in range(3):
                dh, dw = (kh - 1) * dil, (kw - 1) * dil
                m = jnp.ones((hw,), jnp.float32)
                if dh > 0:
                    m = m * (hi < h - dh)
                elif dh < 0:
                    m = m * (hi >= -dh)
                if dw > 0:
                    m = m * (wi < w - dw)
                elif dw < 0:
                    m = m * (wi >= -dw)
                rows.append(m)
    masks = jnp.stack(rows, axis=0)        # (18, hw)
    return jnp.tile(masks, (1, nb))        # (18, nb*hw)


def cgblock_kernel(x_ref, w1x1_ref, dww_ref, mask_ref, cp_ref, alpha_ref,
                   gw1_ref, gb1_ref, gw2t_ref, o_ref,
                   *, h, w, cmid, d, nb):
    hw = h * w
    lanes = nb * hw

    a1 = alpha_ref[0]                     # PReLU alphas from SMEM (scalars)
    a2 = alpha_ref[1]
    cp = cp_ref[...]                      # (C, 4): scale2 | bias2 | gb2 | bias1

    # ---- 1x1 conv (BN1 scale pre-folded into weights) + bias + PReLU ------
    # channel-major, lane-dense: (CMID, nb*HW), spatial(+batch) on lanes.
    mid = jnp.dot(w1x1_ref[...], x_ref[...],
                  preferred_element_type=jnp.float32) + cp[:cmid, 3:4]
    mid = jnp.where(mid >= 0, mid, a1 * mid)                    # (CMID, lanes)

    # ---- depthwise f_loc (3x3, dil=1) and f_sur (3x3, dil=d) --------------
    # shifted tap = circular lane roll (XLU) + host-precomputed (1, lanes)
    # boundary mask.  Centre tap initialises the accumulators (no zeros).
    loc = dww_ref[:, 4:5] * mid
    sur = dww_ref[:, 13:14] * mid
    for k in (0, 1, 2, 3, 5, 6, 7, 8):
        dh = k // 3 - 1
        dw = k % 3 - 1
        off = dh * w + dw                                       # dil=1 offset
        loc = loc + dww_ref[:, k:k + 1] * (
            pltpu.roll(mid, (-off) % lanes, 1) * mask_ref[k:k + 1, :])
        sur = sur + dww_ref[:, 9 + k:10 + k] * (
            pltpu.roll(mid, (-off * d) % lanes, 1) * mask_ref[9 + k:10 + k, :])

    # ---- BN2 + PReLU2 per channel half (cat([loc,sur],1) never built) -----
    jl = loc * cp[:cmid, 0:1] + cp[:cmid, 1:2]
    js = sur * cp[cmid:, 0:1] + cp[cmid:, 1:2]
    jl = jnp.where(jl >= 0, jl, a2 * jl)
    js = jnp.where(js >= 0, js, a2 * js)

    gw1 = gw1_ref[...]                    # (C, CR)
    gb1 = gb1_ref[...]                    # (1, CR)
    gw2t = gw2t_ref[...]                  # (C, CR)
    gb2 = cp[:, 2:3]                      # (C, 1)

    # ---- per-image fglo (global max pool -> MLP -> sigmoid), gating, resid.
    # tiny M=1 matmuls on VPU/XLU (broadcast-multiply + reduce), no MXU.
    for img in range(nb):                 # static unroll; nb is 1 or B
        lo, hi = img * hw, (img + 1) * hw
        jl_i = jl[:, lo:hi]
        js_i = js[:, lo:hi]
        pool_l = jnp.max(jl_i, axis=1, keepdims=True)           # (CMID, 1)
        pool_s = jnp.max(js_i, axis=1, keepdims=True)
        hid = (jnp.sum(gw1[:cmid] * pool_l, axis=0, keepdims=True)
               + jnp.sum(gw1[cmid:] * pool_s, axis=0, keepdims=True) + gb1)
        hid = jnp.maximum(hid, 0.0)                             # (1, CR)
        glo = jax.nn.sigmoid(
            jnp.sum(gw2t * hid, axis=1, keepdims=True) + gb2)   # (C, 1)
        # channel gating + residual; lane-dense (>=128) unmasked stores.
        o_ref[:cmid, lo:hi] = jl_i * glo[:cmid] + x_ref[:cmid, lo:hi]
        o_ref[cmid:, lo:hi] = js_i * glo[cmid:] + x_ref[cmid:, lo:hi]


@jax.jit
def cgblock_forward(x, p):
    """x: (B, C, H, W) NCHW, same layout as the PyTorch module."""
    b, cin, h, w = x.shape
    assert cin == COUT, "CGBlock residual requires in_channels == out_channels"
    c = COUT
    cmid = c // 2
    hw = h * w
    cr = p["w1"].shape[1]
    d = DIL

    nb = _images_per_step(b)              # images folded per grid step
    assert b % nb == 0
    lanes = nb * hw

    # ---- host-side layout plumbing (free) ---------------------------------
    # channel-major, batch folded into the lane axis: (C, B*H*W)
    x_cm = x.reshape(b, cin, hw).transpose(1, 0, 2).reshape(cin, b * hw)
    # BN1 scale folded into the 1x1 weights
    w1x1_f = (p["w1x1"] * p["scale1"][None, :]).T               # (CMID, CIN)
    # depthwise weights, tap-minor: (CMID, 18) = [f_loc taps | f_sur taps]
    dw_w = jnp.concatenate([p["wl"].reshape(cmid, 9),
                            p["ws"].reshape(cmid, 9)], axis=1)
    # small per-channel param slab (C, 4): scale2 | bias2 | fglo b2 | bias1
    cp = jnp.stack(
        [p["scale2"], p["bias2"], p["b2"],
         jnp.concatenate([p["bias1"], jnp.zeros((c - cmid,), jnp.float32)])],
        axis=1)
    masks = _tap_masks(h, w, d, nb)                             # (18, lanes)
    alphas = jnp.stack([p["alpha1"], p["alpha2"]]).astype(jnp.float32)
    gb1 = p["b1"].reshape(1, cr)
    gw2t = p["w2"].T                                            # (C, CR)

    kernel = functools.partial(cgblock_kernel, h=h, w=w, cmid=cmid, d=d, nb=nb)

    param_bytes = 4 * (w1x1_f.size + dw_w.size + masks.size + cp.size
                       + p["w1"].size + gb1.size + gw2t.size)
    cost = pl.CostEstimate(
        flops=(2 * b * cmid * cin * hw        # 1x1 conv
               + 2 * 18 * b * cmid * hw       # depthwise taps
               + 8 * b * c * hw),             # BN/PReLU/gate/residual
        transcendentals=b * (c + cr),
        bytes_accessed=4 * (2 * b * c * hw) + param_bytes)

    out_cm = pl.pallas_call(
        kernel,
        out_shape=jax.ShapeDtypeStruct((c, b * hw), jnp.float32),
        grid_spec=pltpu.PrefetchScalarGridSpec(
            num_scalar_prefetch=0,
            grid=(b // nb,),
            in_specs=[
                pl.BlockSpec((cin, lanes), lambda i: (0, i)),      # x (chan-major)
                pl.BlockSpec((cmid, cin), lambda i: (0, 0)),       # folded 1x1 w
                pl.BlockSpec((cmid, 18), lambda i: (0, 0)),        # depthwise taps
                pl.BlockSpec((18, lanes), lambda i: (0, 0)),       # boundary masks
                pl.BlockSpec((c, 4), lambda i: (0, 0)),            # param slab
                pl.BlockSpec(memory_space=pltpu.MemorySpace.SMEM), # PReLU alphas
                pl.BlockSpec((c, cr), lambda i: (0, 0)),           # fglo w1
                pl.BlockSpec((1, cr), lambda i: (0, 0)),           # fglo b1
                pl.BlockSpec((c, cr), lambda i: (0, 0)),           # fglo w2^T
            ],
            out_specs=pl.BlockSpec((c, lanes), lambda i: (0, i)),
        ),
        compiler_params=pltpu.CompilerParams(
            dimension_semantics=("parallel",)),   # batch groups independent
        cost_estimate=cost,
    )(x_cm, w1x1_f, dw_w, masks, cp, alphas, p["w1"], gb1, gw2t)

    return out_cm.reshape(c, b, hw).transpose(1, 0, 2).reshape(b, c, h, w)


# ---------------------------------------------------------------------------
# Pure-JAX reference (same math, NCHW) for a sanity check.
# ---------------------------------------------------------------------------
def reference_forward(x, p):
    mid = jnp.einsum("bihw,io->bohw", x, p["w1x1"])
    mid = mid * p["scale1"][None, :, None, None] + p["bias1"][None, :, None, None]
    mid = jnp.where(mid >= 0, mid, p["alpha1"] * mid)
    wl = jnp.transpose(p["wl"], (1, 2, 0))[:, :, None, :]      # (3,3,1,CMID) HWIO
    ws = jnp.transpose(p["ws"], (1, 2, 0))[:, :, None, :]
    dn = ("NCHW", "HWIO", "NCHW")
    loc = lax.conv_general_dilated(mid, wl, (1, 1), [(1, 1), (1, 1)],
                                   dimension_numbers=dn, feature_group_count=CMID)
    sur = lax.conv_general_dilated(mid, ws, (1, 1), [(DIL, DIL), (DIL, DIL)],
                                   rhs_dilation=(DIL, DIL),
                                   dimension_numbers=dn, feature_group_count=CMID)
    joint = jnp.concatenate([loc, sur], axis=1)
    joint = joint * p["scale2"][None, :, None, None] + p["bias2"][None, :, None, None]
    joint = jnp.where(joint >= 0, joint, p["alpha2"] * joint)
    pooled = jnp.max(joint, axis=(2, 3))                        # AdaptiveMaxPool2d(1)
    hid = jnp.maximum(pooled @ p["w1"] + p["b1"], 0.0)
    glo = jax.nn.sigmoid(hid @ p["w2"] + p["b2"])
    return joint * glo[:, :, None, None] + x


if __name__ == "__main__":
    key = jax.random.PRNGKey(0)
    ks = jax.random.split(key, 12)
    params = dict(
        # conv_1x1 weight: PyTorch (CMID, CIN, 1, 1) -> stored as (CIN, CMID)
        w1x1=0.1 * jax.random.normal(ks[0], (CIN, CMID), jnp.float32),
        # folded BatchNorm2d(CMID) -> per-channel scale/bias (inference mode)
        scale1=1.0 + 0.1 * jax.random.normal(ks[1], (CMID,), jnp.float32),
        bias1=0.1 * jax.random.normal(ks[2], (CMID,), jnp.float32),
        alpha1=jnp.float32(0.25),                      # nn.PReLU() shared alpha
        # depthwise 3x3 weights: PyTorch (CMID, 1, 3, 3) -> (CMID, 3, 3)
        wl=0.2 * jax.random.normal(ks[3], (CMID, 3, 3), jnp.float32),
        ws=0.2 * jax.random.normal(ks[4], (CMID, 3, 3), jnp.float32),
        # folded BatchNorm2d(COUT)
        scale2=1.0 + 0.1 * jax.random.normal(ks[5], (COUT,), jnp.float32),
        bias2=0.1 * jax.random.normal(ks[6], (COUT,), jnp.float32),
        alpha2=jnp.float32(0.25),
        # fglo_linear: Linear(COUT, CR) and Linear(CR, COUT), stored transposed
        w1=0.2 * jax.random.normal(ks[7], (COUT, CR), jnp.float32),
        b1=0.1 * jax.random.normal(ks[8], (CR,), jnp.float32),
        w2=0.2 * jax.random.normal(ks[9], (CR, COUT), jnp.float32),
        b2=0.1 * jax.random.normal(ks[10], (COUT,), jnp.float32),
    )
    x = jax.random.normal(ks[11], (B, CIN, H, W), jnp.float32)   # NCHW

    out = jax.block_until_ready(cgblock_forward(x, params))
    assert out.shape == (B, COUT, H, W)
    ref = reference_forward(x, params)
    err = float(jnp.max(jnp.abs(out - ref)))
    if not err < 2e-2:   # loose tol: default TPU f32 matmul/conv precision
        raise AssertionError(f"mismatch vs reference: max abs err {err}")
    print("KERNEL_OK")
</pallas_src>

<mosaic_0001>
module attributes {stable_mosaic.version = 11 : i64} {
  func.func @cgblock_kernel(%arg0: i32, %arg1: memref<64x512xf32, #tpu.memory_space<vmem>>, %arg2: memref<32x64xf32, #tpu.memory_space<vmem>>, %arg3: memref<32x18xf32, #tpu.memory_space<vmem>>, %arg4: memref<18x512xf32, #tpu.memory_space<vmem>>, %arg5: memref<64x4xf32, #tpu.memory_space<vmem>>, %arg6: memref<2xf32, #tpu.memory_space<smem>>, %arg7: memref<64x4xf32, #tpu.memory_space<vmem>>, %arg8: memref<1x4xf32, #tpu.memory_space<vmem>>, %arg9: memref<64x4xf32, #tpu.memory_space<vmem>>, %arg10: memref<64x512xf32, #tpu.memory_space<vmem>>) attributes {dimension_semantics = [#tpu.dimension_semantics<parallel>], iteration_bounds = array<i64: 1>, scalar_prefetch = 0 : i64, scratch_operands = 0 : i64, tpu.core_type = #tpu.core_type<tc>, window_params = [{transform_indices = @transform_0, window_bounds = array<i64: 64, 512>}, {pipeline_mode = #tpu.pipeline_mode<synchronous>, transform_indices = @transform_1, window_bounds = array<i64: 32, 64>}, {pipeline_mode = #tpu.pipeline_mode<synchronous>, transform_indices = @transform_2, window_bounds = array<i64: 32, 18>}, {pipeline_mode = #tpu.pipeline_mode<synchronous>, transform_indices = @transform_3, window_bounds = array<i64: 18, 512>}, {pipeline_mode = #tpu.pipeline_mode<synchronous>, transform_indices = @transform_4, window_bounds = array<i64: 64, 4>}, {transform_indices = @transform_5, window_bounds = array<i64: 2>}, {pipeline_mode = #tpu.pipeline_mode<synchronous>, transform_indices = @transform_6, window_bounds = array<i64: 64, 4>}, {pipeline_mode = #tpu.pipeline_mode<synchronous>, transform_indices = @transform_7, window_bounds = array<i64: 1, 4>}, {pipeline_mode = #tpu.pipeline_mode<synchronous>, transform_indices = @transform_8, window_bounds = array<i64: 64, 4>}, {transform_indices = @transform_9, window_bounds = array<i64: 64, 512>}]} {
    %c0 = arith.constant 0 : index
    %0 = memref.load %arg6[%c0] : memref<2xf32, #tpu.memory_space<smem>>
    %c1 = arith.constant 1 : index
    %1 = memref.load %arg6[%c1] : memref<2xf32, #tpu.memory_space<smem>>
    %c0_0 = arith.constant 0 : index
    %c0_1 = arith.constant 0 : index
    %2 = vector.load %arg5[%c0_0, %c0_1] : memref<64x4xf32, #tpu.memory_space<vmem>>, vector<64x4xf32>
    %c0_2 = arith.constant 0 : index
    %c0_3 = arith.constant 0 : index
    %3 = vector.load %arg2[%c0_2, %c0_3] : memref<32x64xf32, #tpu.memory_space<vmem>>, vector<32x64xf32>
    %c0_4 = arith.constant 0 : index
    %c0_5 = arith.constant 0 : index
    %4 = vector.load %arg1[%c0_4, %c0_5] : memref<64x512xf32, #tpu.memory_space<vmem>>, vector<64x512xf32>
    %cst = arith.constant dense<0.000000e+00> : vector<32x512xf32>
    %5 = tpu.matmul %3, %4, %cst {dimension_numbers = #tpu.dot_dimension_numbers<[1], [0], [0], [1], [0, 0, 1, 1], [], []>} : vector<32x64xf32>, vector<64x512xf32>, vector<32x512xf32> -> vector<32x512xf32>
    %6 = vector.extract_strided_slice %2 {offsets = [0, 3], sizes = [32, 1], strides = [1, 1]} : vector<64x4xf32> to vector<32x1xf32>
    %7 = vector.broadcast %6 : vector<32x1xf32> to vector<32x512xf32>
    %8 = arith.addf %5, %7 : vector<32x512xf32>
    %cst_6 = arith.constant 0.000000e+00 : f32
    %9 = vector.broadcast %cst_6 : f32 to vector<32x512xf32>
    %10 = arith.cmpf oge, %8, %9 : vector<32x512xf32>
    %11 = vector.broadcast %0 : f32 to vector<32x512xf32>
    %12 = arith.mulf %11, %8 : vector<32x512xf32>
    %13 = arith.select %10, %8, %12 : vector<32x512xi1>, vector<32x512xf32>
    %c0_7 = arith.constant 0 : index
    %c4 = arith.constant 4 : index
    %14 = vector.load %arg3[%c0_7, %c4] : memref<32x18xf32, #tpu.memory_space<vmem>>, vector<32x1xf32>
    %15 = vector.broadcast %14 : vector<32x1xf32> to vector<32x512xf32>
    %16 = arith.mulf %15, %13 : vector<32x512xf32>
    %c0_8 = arith.constant 0 : index
    %c13 = arith.constant 13 : index
    %17 = vector.load %arg3[%c0_8, %c13] : memref<32x18xf32, #tpu.memory_space<vmem>>, vector<32x1xf32>
    %18 = vector.broadcast %17 : vector<32x1xf32> to vector<32x512xf32>
    %19 = arith.mulf %18, %13 : vector<32x512xf32>
    %c0_9 = arith.constant 0 : index
    %c0_10 = arith.constant 0 : index
    %20 = vector.load %arg3[%c0_9, %c0_10] : memref<32x18xf32, #tpu.memory_space<vmem>>, vector<32x1xf32>
    %c17_i32 = arith.constant 17 : i32
    %21 = tpu.dynamic_rotate %13 by %c17_i32 dim 1 : vector<32x512xf32>, i32 -> vector<32x512xf32>
    %c0_11 = arith.constant 0 : index
    %c0_12 = arith.constant 0 : index
    %22 = vector.load %arg4[%c0_11, %c0_12] : memref<18x512xf32, #tpu.memory_space<vmem>>, vector<1x512xf32>
    %23 = vector.broadcast %22 : vector<1x512xf32> to vector<32x512xf32>
    %24 = arith.mulf %21, %23 : vector<32x512xf32>
    %25 = vector.broadcast %20 : vector<32x1xf32> to vector<32x512xf32>
    %26 = arith.mulf %25, %24 : vector<32x512xf32>
    %27 = arith.addf %16, %26 : vector<32x512xf32>
    %c0_13 = arith.constant 0 : index
    %c9 = arith.constant 9 : index
    %28 = vector.load %arg3[%c0_13, %c9] : memref<32x18xf32, #tpu.memory_space<vmem>>, vector<32x1xf32>
    %c34_i32 = arith.constant 34 : i32
    %29 = tpu.dynamic_rotate %13 by %c34_i32 dim 1 : vector<32x512xf32>, i32 -> vector<32x512xf32>
    %c9_14 = arith.constant 9 : index
    %c0_15 = arith.constant 0 : index
    %30 = vector.load %arg4[%c9_14, %c0_15] : memref<18x512xf32, #tpu.memory_space<vmem>>, vector<1x512xf32>
    %31 = vector.broadcast %30 : vector<1x512xf32> to vector<32x512xf32>
    %32 = arith.mulf %29, %31 : vector<32x512xf32>
    %33 = vector.broadcast %28 : vector<32x1xf32> to vector<32x512xf32>
    %34 = arith.mulf %33, %32 : vector<32x512xf32>
    %35 = arith.addf %19, %34 : vector<32x512xf32>
    %c0_16 = arith.constant 0 : index
    %c1_17 = arith.constant 1 : index
    %36 = vector.load %arg3[%c0_16, %c1_17] : memref<32x18xf32, #tpu.memory_space<vmem>>, vector<32x1xf32>
    %c16_i32 = arith.constant 16 : i32
    %37 = tpu.dynamic_rotate %13 by %c16_i32 dim 1 : vector<32x512xf32>, i32 -> vector<32x512xf32>
    %c1_18 = arith.constant 1 : index
    %c0_19 = arith.constant 0 : index
    %38 = vector.load %arg4[%c1_18, %c0_19] : memref<18x512xf32, #tpu.memory_space<vmem>>, vector<1x512xf32>
    %39 = vector.broadcast %38 : vector<1x512xf32> to vector<32x512xf32>
    %40 = arith.mulf %37, %39 : vector<32x512xf32>
    %41 = vector.broadcast %36 : vector<32x1xf32> to vector<32x512xf32>
    %42 = arith.mulf %41, %40 : vector<32x512xf32>
    %43 = arith.addf %27, %42 : vector<32x512xf32>
    %c0_20 = arith.constant 0 : index
    %c10 = arith.constant 10 : index
    %44 = vector.load %arg3[%c0_20, %c10] : memref<32x18xf32, #tpu.memory_space<vmem>>, vector<32x1xf32>
    %c32_i32 = arith.constant 32 : i32
    %45 = tpu.dynamic_rotate %13 by %c32_i32 dim 1 : vector<32x512xf32>, i32 -> vector<32x512xf32>
    %c10_21 = arith.constant 10 : index
    %c0_22 = arith.constant 0 : index
    %46 = vector.load %arg4[%c10_21, %c0_22] : memref<18x512xf32, #tpu.memory_space<vmem>>, vector<1x512xf32>
    %47 = vector.broadcast %46 : vector<1x512xf32> to vector<32x512xf32>
    %48 = arith.mulf %45, %47 : vector<32x512xf32>
    %49 = vector.broadcast %44 : vector<32x1xf32> to vector<32x512xf32>
    %50 = arith.mulf %49, %48 : vector<32x512xf32>
    %51 = arith.addf %35, %50 : vector<32x512xf32>
    %c0_23 = arith.constant 0 : index
    %c2 = arith.constant 2 : index
    %52 = vector.load %arg3[%c0_23, %c2] : memref<32x18xf32, #tpu.memory_space<vmem>>, vector<32x1xf32>
    %c15_i32 = arith.constant 15 : i32
    %53 = tpu.dynamic_rotate %13 by %c15_i32 dim 1 : vector<32x512xf32>, i32 -> vector<32x512xf32>
    %c2_24 = arith.constant 2 : index
    %c0_25 = arith.constant 0 : index
    %54 = vector.load %arg4[%c2_24, %c0_25] : memref<18x512xf32, #tpu.memory_space<vmem>>, vector<1x512xf32>
    %55 = vector.broadcast %54 : vector<1x512xf32> to vector<32x512xf32>
    %56 = arith.mulf %53, %55 : vector<32x512xf32>
    %57 = vector.broadcast %52 : vector<32x1xf32> to vector<32x512xf32>
    %58 = arith.mulf %57, %56 : vector<32x512xf32>
    %59 = arith.addf %43, %58 : vector<32x512xf32>
    %c0_26 = arith.constant 0 : index
    %c11 = arith.constant 11 : index
    %60 = vector.load %arg3[%c0_26, %c11] : memref<32x18xf32, #tpu.memory_space<vmem>>, vector<32x1xf32>
    %c30_i32 = arith.constant 30 : i32
    %61 = tpu.dynamic_rotate %13 by %c30_i32 dim 1 : vector<32x512xf32>, i32 -> vector<32x512xf32>
    %c11_27 = arith.constant 11 : index
    %c0_28 = arith.constant 0 : index
    %62 = vector.load %arg4[%c11_27, %c0_28] : memref<18x512xf32, #tpu.memory_space<vmem>>, vector<1x512xf32>
    %63 = vector.broadcast %62 : vector<1x512xf32> to vector<32x512xf32>
    %64 = arith.mulf %61, %63 : vector<32x512xf32>
    %65 = vector.broadcast %60 : vector<32x1xf32> to vector<32x512xf32>
    %66 = arith.mulf %65, %64 : vector<32x512xf32>
    %67 = arith.addf %51, %66 : vector<32x512xf32>
    %c0_29 = arith.constant 0 : index
    %c3 = arith.constant 3 : index
    %68 = vector.load %arg3[%c0_29, %c3] : memref<32x18xf32, #tpu.memory_space<vmem>>, vector<32x1xf32>
    %c1_i32 = arith.constant 1 : i32
    %69 = tpu.dynamic_rotate %13 by %c1_i32 dim 1 : vector<32x512xf32>, i32 -> vector<32x512xf32>
    %c3_30 = arith.constant 3 : index
    %c0_31 = arith.constant 0 : index
    %70 = vector.load %arg4[%c3_30, %c0_31] : memref<18x512xf32, #tpu.memory_space<vmem>>, vector<1x512xf32>
    %71 = vector.broadcast %70 : vector<1x512xf32> to vector<32x512xf32>
    %72 = arith.mulf %69, %71 : vector<32x512xf32>
    %73 = vector.broadcast %68 : vector<32x1xf32> to vector<32x512xf32>
    %74 = arith.mulf %73, %72 : vector<32x512xf32>
    %75 = arith.addf %59, %74 : vector<32x512xf32>
    %c0_32 = arith.constant 0 : index
    %c12 = arith.constant 12 : index
    %76 = vector.load %arg3[%c0_32, %c12] : memref<32x18xf32, #tpu.memory_space<vmem>>, vector<32x1xf32>
    %c2_i32 = arith.constant 2 : i32
    %77 = tpu.dynamic_rotate %13 by %c2_i32 dim 1 : vector<32x512xf32>, i32 -> vector<32x512xf32>
    %c12_33 = arith.constant 12 : index
    %c0_34 = arith.constant 0 : index
    %78 = vector.load %arg4[%c12_33, %c0_34] : memref<18x512xf32, #tpu.memory_space<vmem>>, vector<1x512xf32>
    %79 = vector.broadcast %78 : vector<1x512xf32> to vector<32x512xf32>
    %80 = arith.mulf %77, %79 : vector<32x512xf32>
    %81 = vector.broadcast %76 : vector<32x1xf32> to vector<32x512xf32>
    %82 = arith.mulf %81, %80 : vector<32x512xf32>
    %83 = arith.addf %67, %82 : vector<32x512xf32>
    %c0_35 = arith.constant 0 : index
    %c5 = arith.constant 5 : index
    %84 = vector.load %arg3[%c0_35, %c5] : memref<32x18xf32, #tpu.memory_space<vmem>>, vector<32x1xf32>
    %c511_i32 = arith.constant 511 : i32
    %85 = tpu.dynamic_rotate %13 by %c511_i32 dim 1 : vector<32x512xf32>, i32 -> vector<32x512xf32>
    %c5_36 = arith.constant 5 : index
    %c0_37 = arith.constant 0 : index
    %86 = vector.load %arg4[%c5_36, %c0_37] : memref<18x512xf32, #tpu.memory_space<vmem>>, vector<1x512xf32>
    %87 = vector.broadcast %86 : vector<1x512xf32> to vector<32x512xf32>
    %88 = arith.mulf %85, %87 : vector<32x512xf32>
    %89 = vector.broadcast %84 : vector<32x1xf32> to vector<32x512xf32>
    %90 = arith.mulf %89, %88 : vector<32x512xf32>
    %91 = arith.addf %75, %90 : vector<32x512xf32>
    %c0_38 = arith.constant 0 : index
    %c14 = arith.constant 14 : index
    %92 = vector.load %arg3[%c0_38, %c14] : memref<32x18xf32, #tpu.memory_space<vmem>>, vector<32x1xf32>
    %c510_i32 = arith.constant 510 : i32
    %93 = tpu.dynamic_rotate %13 by %c510_i32 dim 1 : vector<32x512xf32>, i32 -> vector<32x512xf32>
    %c14_39 = arith.constant 14 : index
    %c0_40 = arith.constant 0 : index
    %94 = vector.load %arg4[%c14_39, %c0_40] : memref<18x512xf32, #tpu.memory_space<vmem>>, vector<1x512xf32>
    %95 = vector.broadcast %94 : vector<1x512xf32> to vector<32x512xf32>
    %96 = arith.mulf %93, %95 : vector<32x512xf32>
    %97 = vector.broadcast %92 : vector<32x1xf32> to vector<32x512xf32>
    %98 = arith.mulf %97, %96 : vector<32x512xf32>
    %99 = arith.addf %83, %98 : vector<32x512xf32>
    %c0_41 = arith.constant 0 : index
    %c6 = arith.constant 6 : index
    %100 = vector.load %arg3[%c0_41, %c6] : memref<32x18xf32, #tpu.memory_space<vmem>>, vector<32x1xf32>
    %c497_i32 = arith.constant 497 : i32
    %101 = tpu.dynamic_rotate %13 by %c497_i32 dim 1 : vector<32x512xf32>, i32 -> vector<32x512xf32>
    %c6_42 = arith.constant 6 : index
    %c0_43 = arith.constant 0 : index
    %102 = vector.load %arg4[%c6_42, %c0_43] : memref<18x512xf32, #tpu.memory_space<vmem>>, vector<1x512xf32>
    %103 = vector.broadcast %102 : vector<1x512xf32> to vector<32x512xf32>
    %104 = arith.mulf %101, %103 : vector<32x512xf32>
    %105 = vector.broadcast %100 : vector<32x1xf32> to vector<32x512xf32>
    %106 = arith.mulf %105, %104 : vector<32x512xf32>
    %107 = arith.addf %91, %106 : vector<32x512xf32>
    %c0_44 = arith.constant 0 : index
    %c15 = arith.constant 15 : index
    %108 = vector.load %arg3[%c0_44, %c15] : memref<32x18xf32, #tpu.memory_space<vmem>>, vector<32x1xf32>
    %c482_i32 = arith.constant 482 : i32
    %109 = tpu.dynamic_rotate %13 by %c482_i32 dim 1 : vector<32x512xf32>, i32 -> vector<32x512xf32>
    %c15_45 = arith.constant 15 : index
    %c0_46 = arith.constant 0 : index
    %110 = vector.load %arg4[%c15_45, %c0_46] : memref<18x512xf32, #tpu.memory_space<vmem>>, vector<1x512xf32>
    %111 = vector.broadcast %110 : vector<1x512xf32> to vector<32x512xf32>
    %112 = arith.mulf %109, %111 : vector<32x512xf32>
    %113 = vector.broadcast %108 : vector<32x1xf32> to vector<32x512xf32>
    %114 = arith.mulf %113, %112 : vector<32x512xf32>
    %115 = arith.addf %99, %114 : vector<32x512xf32>
    %c0_47 = arith.constant 0 : index
    %c7 = arith.constant 7 : index
    %116 = vector.load %arg3[%c0_47, %c7] : memref<32x18xf32, #tpu.memory_space<vmem>>, vector<32x1xf32>
    %c496_i32 = arith.constant 496 : i32
    %117 = tpu.dynamic_rotate %13 by %c496_i32 dim 1 : vector<32x512xf32>, i32 -> vector<32x512xf32>
    %c7_48 = arith.constant 7 : index
    %c0_49 = arith.constant 0 : index
    %118 = vector.load %arg4[%c7_48, %c0_49] : memref<18x512xf32, #tpu.memory_space<vmem>>, vector<1x512xf32>
    %119 = vector.broadcast %118 : vector<1x512xf32> to vector<32x512xf32>
    %120 = arith.mulf %117, %119 : vector<32x512xf32>
    %121 = vector.broadcast %116 : vector<32x1xf32> to vector<32x512xf32>
    %122 = arith.mulf %121, %120 : vector<32x512xf32>
    %123 = arith.addf %107, %122 : vector<32x512xf32>
    %c0_50 = arith.constant 0 : index
    %c16 = arith.constant 16 : index
    %124 = vector.load %arg3[%c0_50, %c16] : memref<32x18xf32, #tpu.memory_space<vmem>>, vector<32x1xf32>
    %c480_i32 = arith.constant 480 : i32
    %125 = tpu.dynamic_rotate %13 by %c480_i32 dim 1 : vector<32x512xf32>, i32 -> vector<32x512xf32>
    %c16_51 = arith.constant 16 : index
    %c0_52 = arith.constant 0 : index
    %126 = vector.load %arg4[%c16_51, %c0_52] : memref<18x512xf32, #tpu.memory_space<vmem>>, vector<1x512xf32>
    %127 = vector.broadcast %126 : vector<1x512xf32> to vector<32x512xf32>
    %128 = arith.mulf %125, %127 : vector<32x512xf32>
    %129 = vector.broadcast %124 : vector<32x1xf32> to vector<32x512xf32>
    %130 = arith.mulf %129, %128 : vector<32x512xf32>
    %131 = arith.addf %115, %130 : vector<32x512xf32>
    %c0_53 = arith.constant 0 : index
    %c8 = arith.constant 8 : index
    %132 = vector.load %arg3[%c0_53, %c8] : memref<32x18xf32, #tpu.memory_space<vmem>>, vector<32x1xf32>
    %c495_i32 = arith.constant 495 : i32
    %133 = tpu.dynamic_rotate %13 by %c495_i32 dim 1 : vector<32x512xf32>, i32 -> vector<32x512xf32>
    %c8_54 = arith.constant 8 : index
    %c0_55 = arith.constant 0 : index
    %134 = vector.load %arg4[%c8_54, %c0_55] : memref<18x512xf32, #tpu.memory_space<vmem>>, vector<1x512xf32>
    %135 = vector.broadcast %134 : vector<1x512xf32> to vector<32x512xf32>
    %136 = arith.mulf %133, %135 : vector<32x512xf32>
    %137 = vector.broadcast %132 : vector<32x1xf32> to vector<32x512xf32>
    %138 = arith.mulf %137, %136 : vector<32x512xf32>
    %139 = arith.addf %123, %138 : vector<32x512xf32>
    %c0_56 = arith.constant 0 : index
    %c17 = arith.constant 17 : index
    %140 = vector.load %arg3[%c0_56, %c17] : memref<32x18xf32, #tpu.memory_space<vmem>>, vector<32x1xf32>
    %c478_i32 = arith.constant 478 : i32
    %141 = tpu.dynamic_rotate %13 by %c478_i32 dim 1 : vector<32x512xf32>, i32 -> vector<32x512xf32>
    %c17_57 = arith.constant 17 : index
    %c0_58 = arith.constant 0 : index
    %142 = vector.load %arg4[%c17_57, %c0_58] : memref<18x512xf32, #tpu.memory_space<vmem>>, vector<1x512xf32>
    %143 = vector.broadcast %142 : vector<1x512xf32> to vector<32x512xf32>
    %144 = arith.mulf %141, %143 : vector<32x512xf32>
    %145 = vector.broadcast %140 : vector<32x1xf32> to vector<32x512xf32>
    %146 = arith.mulf %145, %144 : vector<32x512xf32>
    %147 = arith.addf %131, %146 : vector<32x512xf32>
    %148 = vector.extract_strided_slice %2 {offsets = [0, 0], sizes = [32, 1], strides = [1, 1]} : vector<64x4xf32> to vector<32x1xf32>
    %149 = vector.broadcast %148 : vector<32x1xf32> to vector<32x512xf32>
    %150 = arith.mulf %139, %149 : vector<32x512xf32>
    %151 = vector.extract_strided_slice %2 {offsets = [0, 1], sizes = [32, 1], strides = [1, 1]} : vector<64x4xf32> to vector<32x1xf32>
    %152 = vector.broadcast %151 : vector<32x1xf32> to vector<32x512xf32>
    %153 = arith.addf %150, %152 : vector<32x512xf32>
    %154 = vector.extract_strided_slice %2 {offsets = [32, 0], sizes = [32, 1], strides = [1, 1]} : vector<64x4xf32> to vector<32x1xf32>
    %155 = vector.broadcast %154 : vector<32x1xf32> to vector<32x512xf32>
    %156 = arith.mulf %147, %155 : vector<32x512xf32>
    %157 = vector.extract_strided_slice %2 {offsets = [32, 1], sizes = [32, 1], strides = [1, 1]} : vector<64x4xf32> to vector<32x1xf32>
    %158 = vector.broadcast %157 : vector<32x1xf32> to vector<32x512xf32>
    %159 = arith.addf %156, %158 : vector<32x512xf32>
    %cst_59 = arith.constant 0.000000e+00 : f32
    %160 = vector.broadcast %cst_59 : f32 to vector<32x512xf32>
    %161 = arith.cmpf oge, %153, %160 : vector<32x512xf32>
    %162 = vector.broadcast %1 : f32 to vector<32x512xf32>
    %163 = arith.mulf %162, %153 : vector<32x512xf32>
    %164 = arith.select %161, %153, %163 : vector<32x512xi1>, vector<32x512xf32>
    %cst_60 = arith.constant 0.000000e+00 : f32
    %165 = vector.broadcast %cst_60 : f32 to vector<32x512xf32>
    %166 = arith.cmpf oge, %159, %165 : vector<32x512xf32>
    %167 = vector.broadcast %1 : f32 to vector<32x512xf32>
    %168 = arith.mulf %167, %159 : vector<32x512xf32>
    %169 = arith.select %166, %159, %168 : vector<32x512xi1>, vector<32x512xf32>
    %c0_61 = arith.constant 0 : index
    %c0_62 = arith.constant 0 : index
    %170 = vector.load %arg7[%c0_61, %c0_62] : memref<64x4xf32, #tpu.memory_space<vmem>>, vector<64x4xf32>
    %c0_63 = arith.constant 0 : index
    %c0_64 = arith.constant 0 : index
    %171 = vector.load %arg8[%c0_63, %c0_64] : memref<1x4xf32, #tpu.memory_space<vmem>>, vector<1x4xf32>
    %c0_65 = arith.constant 0 : index
    %c0_66 = arith.constant 0 : index
    %172 = vector.load %arg9[%c0_65, %c0_66] : memref<64x4xf32, #tpu.memory_space<vmem>>, vector<64x4xf32>
    %173 = vector.extract_strided_slice %2 {offsets = [0, 2], sizes = [64, 1], strides = [1, 1]} : vector<64x4xf32> to vector<64x1xf32>
    %174 = vector.extract_strided_slice %164 {offsets = [0, 0], sizes = [32, 256], strides = [1, 1]} : vector<32x512xf32> to vector<32x256xf32>
    %175 = vector.extract_strided_slice %169 {offsets = [0, 0], sizes = [32, 256], strides = [1, 1]} : vector<32x512xf32> to vector<32x256xf32>
    %cst_67 = arith.constant dense<0xFF800000> : vector<32xf32>
    %176 = vector.multi_reduction <maximumf>, %174, %cst_67 [1] : vector<32x256xf32> to vector<32xf32>
    %177 = vector.shape_cast %176 : vector<32xf32> to vector<32x1xf32>
    %cst_68 = arith.constant dense<0xFF800000> : vector<32xf32>
    %178 = vector.multi_reduction <maximumf>, %175, %cst_68 [1] : vector<32x256xf32> to vector<32xf32>
    %179 = vector.shape_cast %178 : vector<32xf32> to vector<32x1xf32>
    %180 = vector.extract_strided_slice %170 {offsets = [0, 0], sizes = [32, 4], strides = [1, 1]} : vector<64x4xf32> to vector<32x4xf32>
    %181 = vector.broadcast %177 : vector<32x1xf32> to vector<32x4xf32>
    %182 = arith.mulf %180, %181 : vector<32x4xf32>
    %cst_69 = arith.constant dense<0.000000e+00> : vector<4xf32>
    %183 = vector.multi_reduction <add>, %182, %cst_69 [0] : vector<32x4xf32> to vector<4xf32>
    %184 = vector.shape_cast %183 : vector<4xf32> to vector<1x4xf32>
    %185 = vector.extract_strided_slice %170 {offsets = [32, 0], sizes = [32, 4], strides = [1, 1]} : vector<64x4xf32> to vector<32x4xf32>
    %186 = vector.broadcast %179 : vector<32x1xf32> to vector<32x4xf32>
    %187 = arith.mulf %185, %186 : vector<32x4xf32>
    %cst_70 = arith.constant dense<0.000000e+00> : vector<4xf32>
    %188 = vector.multi_reduction <add>, %187, %cst_70 [0] : vector<32x4xf32> to vector<4xf32>
    %189 = vector.shape_cast %188 : vector<4xf32> to vector<1x4xf32>
    %190 = arith.addf %184, %189 : vector<1x4xf32>
    %191 = arith.addf %190, %171 : vector<1x4xf32>
    %cst_71 = arith.constant 0.000000e+00 : f32
    %192 = vector.broadcast %cst_71 : f32 to vector<1x4xf32>
    %193 = arith.maximumf %191, %192 : vector<1x4xf32>
    %194 = vector.broadcast %193 : vector<1x4xf32> to vector<64x4xf32>
    %195 = arith.mulf %172, %194 : vector<64x4xf32>
    %cst_72 = arith.constant dense<0.000000e+00> : vector<64xf32>
    %196 = vector.multi_reduction <add>, %195, %cst_72 [1] : vector<64x4xf32> to vector<64xf32>
    %197 = vector.shape_cast %196 : vector<64xf32> to vector<64x1xf32>
    %198 = arith.addf %197, %173 : vector<64x1xf32>
    %199 = arith.negf %198 : vector<64x1xf32>
    %200 = math.exp %199 : vector<64x1xf32>
    %cst_73 = arith.constant 1.000000e+00 : f32
    %201 = vector.broadcast %cst_73 : f32 to vector<64x1xf32>
    %202 = arith.addf %201, %200 : vector<64x1xf32>
    %203 = arith.divf %201, %202 : vector<64x1xf32>
    %204 = vector.extract_strided_slice %203 {offsets = [0, 0], sizes = [32, 1], strides = [1, 1]} : vector<64x1xf32> to vector<32x1xf32>
    %205 = vector.broadcast %204 : vector<32x1xf32> to vector<32x256xf32>
    %206 = arith.mulf %174, %205 : vector<32x256xf32>
    %c0_74 = arith.constant 0 : index
    %c0_75 = arith.constant 0 : index
    %207 = vector.load %arg1[%c0_74, %c0_75] : memref<64x512xf32, #tpu.memory_space<vmem>>, vector<32x256xf32>
    %208 = arith.addf %206, %207 : vector<32x256xf32>
    %c0_76 = arith.constant 0 : index
    %c0_77 = arith.constant 0 : index
    %209 = vector.load %arg10[%c0_76, %c0_77] : memref<64x512xf32, #tpu.memory_space<vmem>>, vector<32x256xf32>
    tpu.vector_store %arg10[%c0_76, %c0_77], %208 {strides = array<i32>} : memref<64x512xf32, #tpu.memory_space<vmem>>, vector<32x256xf32>,
    %210 = vector.extract_strided_slice %203 {offsets = [32, 0], sizes = [32, 1], strides = [1, 1]} : vector<64x1xf32> to vector<32x1xf32>
    %211 = vector.broadcast %210 : vector<32x1xf32> to vector<32x256xf32>
    %212 = arith.mulf %175, %211 : vector<32x256xf32>
    %c32 = arith.constant 32 : index
    %c0_78 = arith.constant 0 : index
    %213 = vector.load %arg1[%c32, %c0_78] : memref<64x512xf32, #tpu.memory_space<vmem>>, vector<32x256xf32>
    %214 = arith.addf %212, %213 : vector<32x256xf32>
    %c32_79 = arith.constant 32 : index
    %c0_80 = arith.constant 0 : index
    %215 = vector.load %arg10[%c32_79, %c0_80] : memref<64x512xf32, #tpu.memory_space<vmem>>, vector<32x256xf32>
    tpu.vector_store %arg10[%c32_79, %c0_80], %214 {strides = array<i32>} : memref<64x512xf32, #tpu.memory_space<vmem>>, vector<32x256xf32>,
    %216 = vector.extract_strided_slice %164 {offsets = [0, 256], sizes = [32, 256], strides = [1, 1]} : vector<32x512xf32> to vector<32x256xf32>
    %217 = vector.extract_strided_slice %169 {offsets = [0, 256], sizes = [32, 256], strides = [1, 1]} : vector<32x512xf32> to vector<32x256xf32>
    %cst_81 = arith.constant dense<0xFF800000> : vector<32xf32>
    %218 = vector.multi_reduction <maximumf>, %216, %cst_81 [1] : vector<32x256xf32> to vector<32xf32>
    %219 = vector.shape_cast %218 : vector<32xf32> to vector<32x1xf32>
    %cst_82 = arith.constant dense<0xFF800000> : vector<32xf32>
    %220 = vector.multi_reduction <maximumf>, %217, %cst_82 [1] : vector<32x256xf32> to vector<32xf32>
    %221 = vector.shape_cast %220 : vector<32xf32> to vector<32x1xf32>
    %222 = vector.extract_strided_slice %170 {offsets = [0, 0], sizes = [32, 4], strides = [1, 1]} : vector<64x4xf32> to vector<32x4xf32>
    %223 = vector.broadcast %219 : vector<32x1xf32> to vector<32x4xf32>
    %224 = arith.mulf %222, %223 : vector<32x4xf32>
    %cst_83 = arith.constant dense<0.000000e+00> : vector<4xf32>
    %225 = vector.multi_reduction <add>, %224, %cst_83 [0] : vector<32x4xf32> to vector<4xf32>
    %226 = vector.shape_cast %225 : vector<4xf32> to vector<1x4xf32>
    %227 = vector.extract_strided_slice %170 {offsets = [32, 0], sizes = [32, 4], strides = [1, 1]} : vector<64x4xf32> to vector<32x4xf32>
    %228 = vector.broadcast %221 : vector<32x1xf32> to vector<32x4xf32>
    %229 = arith.mulf %227, %228 : vector<32x4xf32>
    %cst_84 = arith.constant dense<0.000000e+00> : vector<4xf32>
    %230 = vector.multi_reduction <add>, %229, %cst_84 [0] : vector<32x4xf32> to vector<4xf32>
    %231 = vector.shape_cast %230 : vector<4xf32> to vector<1x4xf32>
    %232 = arith.addf %226, %231 : vector<1x4xf32>
    %233 = arith.addf %232, %171 : vector<1x4xf32>
    %cst_85 = arith.constant 0.000000e+00 : f32
    %234 = vector.broadcast %cst_85 : f32 to vector<1x4xf32>
    %235 = arith.maximumf %233, %234 : vector<1x4xf32>
    %236 = vector.broadcast %235 : vector<1x4xf32> to vector<64x4xf32>
    %237 = arith.mulf %172, %236 : vector<64x4xf32>
    %cst_86 = arith.constant dense<0.000000e+00> : vector<64xf32>
    %238 = vector.multi_reduction <add>, %237, %cst_86 [1] : vector<64x4xf32> to vector<64xf32>
    %239 = vector.shape_cast %238 : vector<64xf32> to vector<64x1xf32>
    %240 = arith.addf %239, %173 : vector<64x1xf32>
    %241 = arith.negf %240 : vector<64x1xf32>
    %242 = math.exp %241 : vector<64x1xf32>
    %cst_87 = arith.constant 1.000000e+00 : f32
    %243 = vector.broadcast %cst_87 : f32 to vector<64x1xf32>
    %244 = arith.addf %243, %242 : vector<64x1xf32>
    %245 = arith.divf %243, %244 : vector<64x1xf32>
    %246 = vector.extract_strided_slice %245 {offsets = [0, 0], sizes = [32, 1], strides = [1, 1]} : vector<64x1xf32> to vector<32x1xf32>
    %247 = vector.broadcast %246 : vector<32x1xf32> to vector<32x256xf32>
    %248 = arith.mulf %216, %247 : vector<32x256xf32>
    %c0_88 = arith.constant 0 : index
    %c256 = arith.constant 256 : index
    %249 = vector.load %arg1[%c0_88, %c256] : memref<64x512xf32, #tpu.memory_space<vmem>>, vector<32x256xf32>
    %250 = arith.addf %248, %249 : vector<32x256xf32>
    %c0_89 = arith.constant 0 : index
    %c256_90 = arith.constant 256 : index
    %251 = vector.load %arg10[%c0_89, %c256_90] : memref<64x512xf32, #tpu.memory_space<vmem>>, vector<32x256xf32>
    tpu.vector_store %arg10[%c0_89, %c256_90], %250 {strides = array<i32>} : memref<64x512xf32, #tpu.memory_space<vmem>>, vector<32x256xf32>,
    %252 = vector.extract_strided_slice %245 {offsets = [32, 0], sizes = [32, 1], strides = [1, 1]} : vector<64x1xf32> to vector<32x1xf32>
    %253 = vector.broadcast %252 : vector<32x1xf32> to vector<32x256xf32>
    %254 = arith.mulf %217, %253 : vector<32x256xf32>
    %c32_91 = arith.constant 32 : index
    %c256_92 = arith.constant 256 : index
    %255 = vector.load %arg1[%c32_91, %c256_92] : memref<64x512xf32, #tpu.memory_space<vmem>>, vector<32x256xf32>
    %256 = arith.addf %254, %255 : vector<32x256xf32>
    %c32_93 = arith.constant 32 : index
    %c256_94 = arith.constant 256 : index
    %257 = vector.load %arg10[%c32_93, %c256_94] : memref<64x512xf32, #tpu.memory_space<vmem>>, vector<32x256xf32>
    tpu.vector_store %arg10[%c32_93, %c256_94], %256 {strides = array<i32>} : memref<64x512xf32, #tpu.memory_space<vmem>>, vector<32x256xf32>,
    return
  }
  func.func @transform_0(%arg0: i32) -> (i32, i32) {
    %c0_i32 = arith.constant 0 : i32
    %c0_i32_0 = arith.constant 0 : i32
    return %c0_i32, %arg0 : i32, i32
  }
  func.func @transform_1(%arg0: i32) -> (i32, i32) {
    %c0_i32 = arith.constant 0 : i32
    %c0_i32_0 = arith.constant 0 : i32
    %c0_i32_1 = arith.constant 0 : i32
    return %c0_i32, %c0_i32_0 : i32, i32
  }
  func.func @transform_2(%arg0: i32) -> (i32, i32) {
    %c0_i32 = arith.constant 0 : i32
    %c0_i32_0 = arith.constant 0 : i32
    %c0_i32_1 = arith.constant 0 : i32
    return %c0_i32, %c0_i32_0 : i32, i32
  }
  func.func @transform_3(%arg0: i32) -> (i32, i32) {
    %c0_i32 = arith.constant 0 : i32
    %c0_i32_0 = arith.constant 0 : i32
    %c0_i32_1 = arith.constant 0 : i32
    return %c0_i32, %c0_i32_0 : i32, i32
  }
  func.func @transform_4(%arg0: i32) -> (i32, i32) {
    %c0_i32 = arith.constant 0 : i32
    %c0_i32_0 = arith.constant 0 : i32
    %c0_i32_1 = arith.constant 0 : i32
    return %c0_i32, %c0_i32_0 : i32, i32
  }
  func.func @transform_5(%arg0: i32) -> i32 {
    %c0_i32 = arith.constant 0 : i32
    %c0_i32_0 = arith.constant 0 : i32
    return %c0_i32 : i32
  }
  func.func @transform_6(%arg0: i32) -> (i32, i32) {
    %c0_i32 = arith.constant 0 : i32
    %c0_i32_0 = arith.constant 0 : i32
    %c0_i32_1 = arith.constant 0 : i32
    return %c0_i32, %c0_i32_0 : i32, i32
  }
  func.func @transform_7(%arg0: i32) -> (i32, i32) {
    %c0_i32 = arith.constant 0 : i32
    %c0_i32_0 = arith.constant 0 : i32
    %c0_i32_1 = arith.constant 0 : i32
    return %c0_i32, %c0_i32_0 : i32, i32
  }
  func.func @transform_8(%arg0: i32) -> (i32, i32) {
    %c0_i32 = arith.constant 0 : i32
    %c0_i32_0 = arith.constant 0 : i32
    %c0_i32_1 = arith.constant 0 : i32
    return %c0_i32, %c0_i32_0 : i32, i32
  }
  func.func @transform_9(%arg0: i32) -> (i32, i32) {
    %c0_i32 = arith.constant 0 : i32
    %c0_i32_0 = arith.constant 0 : i32
    return %c0_i32, %arg0 : i32, i32
  }
}

</mosaic_0001>

<llo_original>
// kernel: cgblock_forward.1
$region0: #{cgblock_forward.1}
  #allocation0 [shape = 'u32[]', space=smem, size = 0x4, offset = 0x4, fixed_abs, tag = 'smem constant byte address 0x4 - core index']
  #allocation1 [shape = 'u32[144,128]{1,0:T(1,128)}', space=vmem, size = 0x12000, scoped, tag = 'internal scratch']
  %s0 = inlined_call_operand.vmem [shape: f32[64,512], index: 0, kind: input, shape index: {}]
  %s1 = inlined_call_operand.vmem [shape: f32[32,64], index: 1, kind: input, shape index: {}]
  %s2 = inlined_call_operand.vmem [shape: f32[32,18], index: 2, kind: input, shape index: {}]
  %s3 = inlined_call_operand.vmem [shape: f32[18,512], index: 3, kind: input, shape index: {}]
  %s4 = inlined_call_operand.vmem [shape: f32[64,4], index: 4, kind: input, shape index: {}]
  %s5 = inlined_call_operand.vmem [shape: f32[2], index: 5, kind: input, shape index: {}]
  %s6 = inlined_call_operand.vmem [shape: f32[64,4], index: 6, kind: input, shape index: {}]
  %s7 = inlined_call_operand.vmem [shape: f32[1,4], index: 7, kind: input, shape index: {}]
  %s8 = inlined_call_operand.vmem [shape: f32[64,4], index: 8, kind: input, shape index: {}]
  %s9 = inlined_call_operand.vmem [shape: f32[64,512], index: 9, kind: output, shape index: {}]
  %s10 = sld [smem:[#allocation0]]
  $region50: #{cgblock_forward.1} parent=0
    _
  %s12 = ssub.s32 1, %s10
  %s13 = scalar_select 0, %s12, %s10
  $region1: #{cgblock_forward.1} parent=0
    #allocation2 [shape = 'u8[512]{0}', space=smem, size = 0x200, scoped, tag = 'input window, operand 5, single buffered']
    #allocation3 [shape = 's32[1]{0}', space=sflag, size = 0x4, scoped, tag = 'scoped memory for cgblock_forward.1']
    %14 = vsyncpa [#allocation3], 0
    // Predicated region
    $region2: #{cgblock_forward.1} parent=1 // pred_check
      _
    $region3: #{cgblock_forward.1} parent=1 // pred_check_branch
      %16 = sbr.rel (0) target = $region5
    $region4: #{cgblock_forward.1} parent=1 // pred_region
      _
    $region5: #{cgblock_forward.1} parent=1 // pred_fallthru
      _
    // Predicated region
    $region6: #{cgblock_forward.1} parent=1 // pred_check
      _
    $region7: #{cgblock_forward.1} parent=1 // pred_check_branch
      %18 = sbr.rel (0) target = $region9
    $region8: #{cgblock_forward.1} parent=1 // pred_region
      _
    $region9: #{cgblock_forward.1} parent=1 // pred_fallthru
      _
    // Predicated region
    $region10: #{cgblock_forward.1} parent=1 // pred_check
      _
    $region11: #{cgblock_forward.1} parent=1 // pred_check_branch
      %20 = sbr.rel (0) target = $region13
    $region12: #{cgblock_forward.1} parent=1 // pred_region
      _
    $region13: #{cgblock_forward.1} parent=1 // pred_fallthru
      _
    // Predicated region
    $region14: #{cgblock_forward.1} parent=1 // pred_check
      _
    $region15: #{cgblock_forward.1} parent=1 // pred_check_branch
      %22 = sbr.rel (0) target = $region17
    $region16: #{cgblock_forward.1} parent=1 // pred_region
      _
    $region17: #{cgblock_forward.1} parent=1 // pred_fallthru
      _
    // Predicated region
    $region18: #{cgblock_forward.1} parent=1 // pred_check
      _
    $region19: #{cgblock_forward.1} parent=1 // pred_check_branch
      %24 = sbr.rel (0) target = $region21
    $region20: #{cgblock_forward.1} parent=1 // pred_region
      _
    $region21: #{cgblock_forward.1} parent=1 // pred_fallthru
      _
    // Predicated region
    $region22: #{cgblock_forward.1} parent=1 // pred_check
      _
    $region23: #{cgblock_forward.1} parent=1 // pred_check_branch
      %26 = sbr.rel (0) target = $region25
    $region24: #{cgblock_forward.1} parent=1 // pred_region
      %s28 = ssub.s32 16, 16
      %29 = vsyncadd [#allocation3], %s28
      %s31 = sshll.u32 %s5, 4
      %s32 = int_to_ptr.vmem [resolvable:$true] %s31
      %34 = dma.vmem_to_smem %s32, 16, [#allocation2], [#allocation3]
    $region25: #{cgblock_forward.1} parent=1 // pred_fallthru
      _
    // Predicated region
    $region26: #{cgblock_forward.1} parent=1 // pred_check
      _
    $region27: #{cgblock_forward.1} parent=1 // pred_check_branch
      %36 = sbr.rel (0) target = $region29
    $region28: #{cgblock_forward.1} parent=1 // pred_region
      _
    $region29: #{cgblock_forward.1} parent=1 // pred_fallthru
      _
    // Predicated region
    $region30: #{cgblock_forward.1} parent=1 // pred_check
      _
    $region31: #{cgblock_forward.1} parent=1 // pred_check_branch
      %38 = sbr.rel (0) target = $region33
    $region32: #{cgblock_forward.1} parent=1 // pred_region
      _
    $region33: #{cgblock_forward.1} parent=1 // pred_fallthru
      _
    // Predicated region
    $region34: #{cgblock_forward.1} parent=1 // pred_check
      _
    $region35: #{cgblock_forward.1} parent=1 // pred_check_branch
      %40 = sbr.rel (0) target = $region37
    $region36: #{cgblock_forward.1} parent=1 // pred_region
      _
    $region37: #{cgblock_forward.1} parent=1 // pred_fallthru
      _
    // Predicated region
    $region38: #{cgblock_forward.1} parent=1 // pred_check
      _
    $region39: #{cgblock_forward.1} parent=1 // pred_check_branch
      %42 = sbr.rel (0) target = $region41
    $region40: #{cgblock_forward.1} parent=1 // pred_region
      %43 = dma.done [#allocation3], 16
    $region41: #{cgblock_forward.1} parent=1 // pred_fallthru
      _
    %44 = sfence
    %s45 = sld [smem:[#allocation2]]
    %s46 = sld [smem:[#allocation2 + $0x1]]
    %v47 = vld [vmem:[%s4] sm:$0xff]
    %v48 = vld [vmem:[%s4 + $0x8] sm:$0xff]
    %v49 = vld [vmem:[%s4 + $0x10] sm:$0xff]
    %v50 = vld [vmem:[%s4 + $0x18] sm:$0xff]
    %v51 = vld [vmem:[%s4 + $0x20] sm:$0xff]
    %v52 = vld [vmem:[%s4 + $0x28] sm:$0xff]
    %v53 = vld [vmem:[%s4 + $0x30] sm:$0xff]
    %v54 = vld [vmem:[%s4 + $0x38] sm:$0xff]
    %v55 = vld [vmem:[%s1] sm:$0xff]
    %v56 = vld [vmem:[%s1 + $0x8] sm:$0xff]
    %v57 = vld [vmem:[%s1 + $0x10] sm:$0xff]
    %v58 = vld [vmem:[%s1 + $0x18] sm:$0xff]
    %v59 = vld [vmem:[%s0] sm:$0xff]
    %v60 = vld [vmem:[%s0 + $0x8] sm:$0xff]
    %v61 = vld [vmem:[%s0 + $0x10] sm:$0xff]
    %v62 = vld [vmem:[%s0 + $0x18] sm:$0xff]
    %v63 = vld [vmem:[%s0 + $0x20] sm:$0xff]
    %v64 = vld [vmem:[%s0 + $0x28] sm:$0xff]
    %v65 = vld [vmem:[%s0 + $0x30] sm:$0xff]
    %v66 = vld [vmem:[%s0 + $0x38] sm:$0xff]
    %v67 = vld [vmem:[%s0 + $0x40] sm:$0xff]
    %v68 = vld [vmem:[%s0 + $0x48] sm:$0xff]
    %v69 = vld [vmem:[%s0 + $0x50] sm:$0xff]
    %v70 = vld [vmem:[%s0 + $0x58] sm:$0xff]
    %v71 = vld [vmem:[%s0 + $0x60] sm:$0xff]
    %v72 = vld [vmem:[%s0 + $0x68] sm:$0xff]
    %v73 = vld [vmem:[%s0 + $0x70] sm:$0xff]
    %v74 = vld [vmem:[%s0 + $0x78] sm:$0xff]
    %v75 = vld [vmem:[%s0 + $0x80] sm:$0xff]
    %v76 = vld [vmem:[%s0 + $0x88] sm:$0xff]
    %v77 = vld [vmem:[%s0 + $0x90] sm:$0xff]
    %v78 = vld [vmem:[%s0 + $0x98] sm:$0xff]
    %v79 = vld [vmem:[%s0 + $0xa0] sm:$0xff]
    %v80 = vld [vmem:[%s0 + $0xa8] sm:$0xff]
    %v81 = vld [vmem:[%s0 + $0xb0] sm:$0xff]
    %v82 = vld [vmem:[%s0 + $0xb8] sm:$0xff]
    %v83 = vld [vmem:[%s0 + $0xc0] sm:$0xff]
    %v84 = vld [vmem:[%s0 + $0xc8] sm:$0xff]
    %v85 = vld [vmem:[%s0 + $0xd0] sm:$0xff]
    %v86 = vld [vmem:[%s0 + $0xd8] sm:$0xff]
    %v87 = vld [vmem:[%s0 + $0xe0] sm:$0xff]
    %v88 = vld [vmem:[%s0 + $0xe8] sm:$0xff]
    %v89 = vld [vmem:[%s0 + $0xf0] sm:$0xff]
    %v90 = vld [vmem:[%s0 + $0xf8] sm:$0xff]
    %92 = vset.pattern.permute.xlu0 3
    %93 = vperm.xlu0 %92, %v47
    %v94 = vpop.permute.xlu0 %93
    %97 = vset.pattern.permute.xlu0 3
    %98 = vperm.xlu0 %97, %v48
    %v99 = vpop.permute.xlu0 %98
    %102 = vset.pattern.permute.xlu0 3
    %103 = vperm.xlu0 %102, %v49
    %v104 = vpop.permute.xlu0 %103
    %107 = vset.pattern.permute.xlu0 3
    %108 = vperm.xlu0 %107, %v50
    %v109 = vpop.permute.xlu0 %108
    %vm111 = vcmask 523264
    %v113 = vsel %vm111, %v55, 0
    %v116 = vsel %vm111, %v56, 0
    %v119 = vsel %vm111, %v57, 0
    %v122 = vsel %vm111, %v58, 0
    %124 = vmatprep.subr.mxu0 %v60
    %125 = vmatpush1.msra.mxu0 %v59
    %126 = vmatprep.subr.mxu0 %v64
    %127 = vmatpush1.msra.mxu0 %v63
    %128 = vmatprep.subr.mxu0 %v68
    %129 = vmatpush1.msra.mxu0 %v67
    %130 = vmatprep.subr.mxu0 %v72
    %131 = vmatpush1.msra.mxu0 %v71
    %132 = vmatprep.subr.mxu0 %v76
    %133 = vmatpush1.msra.mxu0 %v75
    %134 = vmatprep.subr.mxu0 %v80
    %135 = vmatpush1.msra.mxu0 %v79
    %136 = vmatprep.subr.mxu0 %v84
    %137 = vmatpush1.msra.mxu0 %v83
    %138 = vmatprep.subr.mxu0 %v88
    %139 = vmatpush1.msra.mxu0 %v87
    %140 = vmatprep.subr.mxu0 0.0
    %141 = vmatpush1.msra.mxu0 0.0
    %142 = vmatprep.subr.mxu0 0.0
    %143 = vmatpush1.msra.mxu0 0.0
    %144 = vmatprep.subr.mxu0 0.0
    %145 = vmatpush1.msra.mxu0 0.0
    %146 = vmatprep.subr.mxu0 0.0
    %147 = vmatpush1.msra.mxu0 0.0
    %148 = vmatprep.subr.mxu0 0.0
    %149 = vmatpush1.msra.mxu0 0.0
    %150 = vmatprep.subr.mxu0 0.0
    %151 = vmatpush1.msra.mxu0 0.0
    %152 = vmatprep.subr.mxu0 0.0
    %153 = vmatpush1.msra.mxu0 0.0
    %154 = vmatprep.subr.mxu0 0.0
    %155 = vmatpush1.msra.mxu0 0.0
    %156 = vmatprep.subr.mxu0 0.0
    %157 = vmatpush1.msra.mxu0 0.0
    %158 = vmatprep.subr.mxu0 0.0
    %159 = vmatpush1.msra.mxu0 0.0
    %160 = vmatprep.subr.mxu0 0.0
    %161 = vmatpush1.msra.mxu0 0.0
    %162 = vmatprep.subr.mxu0 0.0
    %163 = vmatpush1.msra.mxu0 0.0
    %164 = vmatprep.subr.mxu0 0.0
    %165 = vmatpush1.msra.mxu0 0.0
    %166 = vmatprep.subr.mxu0 0.0
    %167 = vmatpush1.msra.mxu0 0.0
    %168 = vmatprep.subr.mxu0 0.0
    %169 = vmatpush1.msra.mxu0 0.0
    %170 = vmatprep.subr.mxu0 0.0
    %171 = vmatpush1.msra.mxu0 0.0
    %172 = vmatprep.subr.mxu0 0.0
    %173 = vmatpush1.msra.mxu0 0.0
    %174 = vmatprep.subr.mxu0 0.0
    %175 = vmatpush1.msra.mxu0 0.0
    %176 = vmatprep.subr.mxu0 0.0
    %177 = vmatpush1.msra.mxu0 0.0
    %178 = vmatprep.subr.mxu0 0.0
    %179 = vmatpush1.msra.mxu0 0.0
    %180 = vmatprep.subr.mxu0 0.0
    %181 = vmatpush1.msra.mxu0 0.0
    %182 = vmatprep.subr.mxu0 0.0
    %183 = vmatpush1.msra.mxu0 0.0
    %184 = vmatprep.subr.mxu0 0.0
    %185 = vmatpush1.msra.mxu0 0.0
    %186 = vmatprep.subr.mxu0 0.0
    %187 = vmatpush1.msra.mxu0 0.0
    %188 = vmatprep.mubr.f32.mxu0 0.0
    %189 = vmatmul.mubr.f32.gmra.mrb[0].mxu0 %v113
    %v190 = vpop.f32.mrb[0].mxu0
    %v191 = vadd.f32 %v94, %v190
    %v192 = vpop.f32.mrb[0].mxu0
    %v193 = vadd.f32 %v94, %v192
    %194 = vmatprep.mubr.f32.mxu0 0.0
    %195 = vmatmul.mubr.f32.gmra.mrb[0].mxu0 %v116
    %v196 = vpop.f32.mrb[0].mxu0
    %v197 = vadd.f32 %v99, %v196
    %v198 = vpop.f32.mrb[0].mxu0
    %v199 = vadd.f32 %v99, %v198
    %200 = vmatprep.mubr.f32.mxu0 0.0
    %201 = vmatmul.mubr.f32.gmra.mrb[0].mxu0 %v119
    %v202 = vpop.f32.mrb[0].mxu0
    %v203 = vadd.f32 %v104, %v202
    %v204 = vpop.f32.mrb[0].mxu0
    %v205 = vadd.f32 %v104, %v204
    %206 = vmatprep.mubr.f32.mxu0 0.0
    %207 = vmatmul.mubr.f32.gmra.mrb[0].mxu0 %v122
    %v208 = vpop.f32.mrb[0].mxu0
    %v209 = vadd.f32 %v109, %v208
    %v210 = vpop.f32.mrb[0].mxu0
    %v211 = vadd.f32 %v109, %v210
    %212 = vdwg.mxu0
    %213 = vmatprep.subr.mxu0 %v62
    %214 = vmatpush1.msra.mxu0 %v61
    %215 = vmatprep.subr.mxu0 %v66
    %216 = vmatpush1.msra.mxu0 %v65
    %217 = vmatprep.subr.mxu0 %v70
    %218 = vmatpush1.msra.mxu0 %v69
    %219 = vmatprep.subr.mxu0 %v74
    %220 = vmatpush1.msra.mxu0 %v73
    %221 = vmatprep.subr.mxu0 %v78
    %222 = vmatpush1.msra.mxu0 %v77
    %223 = vmatprep.subr.mxu0 %v82
    %224 = vmatpush1.msra.mxu0 %v81
    %225 = vmatprep.subr.mxu0 %v86
    %226 = vmatpush1.msra.mxu0 %v85
    %227 = vmatprep.subr.mxu0 %v90
    %228 = vmatpush1.msra.mxu0 %v89
    %229 = vmatprep.subr.mxu0 0.0
    %230 = vmatpush1.msra.mxu0 0.0
    %231 = vmatprep.subr.mxu0 0.0
    %232 = vmatpush1.msra.mxu0 0.0
    %233 = vmatprep.subr.mxu0 0.0
    %234 = vmatpush1.msra.mxu0 0.0
    %235 = vmatprep.subr.mxu0 0.0
    %236 = vmatpush1.msra.mxu0 0.0
    %237 = vmatprep.subr.mxu0 0.0
    %238 = vmatpush1.msra.mxu0 0.0
    %239 = vmatprep.subr.mxu0 0.0
    %240 = vmatpush1.msra.mxu0 0.0
    %241 = vmatprep.subr.mxu0 0.0
    %242 = vmatpush1.msra.mxu0 0.0
    %243 = vmatprep.subr.mxu0 0.0
    %244 = vmatpush1.msra.mxu0 0.0
    %245 = vmatprep.subr.mxu0 0.0
    %246 = vmatpush1.msra.mxu0 0.0
    %247 = vmatprep.subr.mxu0 0.0
    %248 = vmatpush1.msra.mxu0 0.0
    %249 = vmatprep.subr.mxu0 0.0
    %250 = vmatpush1.msra.mxu0 0.0
    %251 = vmatprep.subr.mxu0 0.0
    %252 = vmatpush1.msra.mxu0 0.0
    %253 = vmatprep.subr.mxu0 0.0
    %254 = vmatpush1.msra.mxu0 0.0
    %255 = vmatprep.subr.mxu0 0.0
    %256 = vmatpush1.msra.mxu0 0.0
    %257 = vmatprep.subr.mxu0 0.0
    %258 = vmatpush1.msra.mxu0 0.0
    %259 = vmatprep.subr.mxu0 0.0
    %260 = vmatpush1.msra.mxu0 0.0
    %261 = vmatprep.subr.mxu0 0.0
    %262 = vmatpush1.msra.mxu0 0.0
    %263 = vmatprep.subr.mxu0 0.0
    %264 = vmatpush1.msra.mxu0 0.0
    %265 = vmatprep.subr.mxu0 0.0
    %266 = vmatpush1.msra.mxu0 0.0
    %267 = vmatprep.subr.mxu0 0.0
    %268 = vmatpush1.msra.mxu0 0.0
    %269 = vmatprep.subr.mxu0 0.0
    %270 = vmatpush1.msra.mxu0 0.0
    %271 = vmatprep.subr.mxu0 0.0
    %272 = vmatpush1.msra.mxu0 0.0
    %273 = vmatprep.subr.mxu0 0.0
    %274 = vmatpush1.msra.mxu0 0.0
    %275 = vmatprep.subr.mxu0 0.0
    %276 = vmatpush1.msra.mxu0 0.0
    %277 = vmatprep.mubr.f32.mxu0 0.0
    %278 = vmatmul.mubr.f32.gmra.mrb[0].mxu0 %v113
    %v279 = vpop.f32.mrb[0].mxu0
    %v280 = vadd.f32 %v94, %v279
    %v281 = vpop.f32.mrb[0].mxu0
    %v282 = vadd.f32 %v94, %v281
    %283 = vmatprep.mubr.f32.mxu0 0.0
    %284 = vmatmul.mubr.f32.gmra.mrb[0].mxu0 %v116
    %v285 = vpop.f32.mrb[0].mxu0
    %v286 = vadd.f32 %v99, %v285
    %v287 = vpop.f32.mrb[0].mxu0
    %v288 = vadd.f32 %v99, %v287
    %289 = vmatprep.mubr.f32.mxu0 0.0
    %290 = vmatmul.mubr.f32.gmra.mrb[0].mxu0 %v119
    %v291 = vpop.f32.mrb[0].mxu0
    %v292 = vadd.f32 %v104, %v291
    %v293 = vpop.f32.mrb[0].mxu0
    %v294 = vadd.f32 %v104, %v293
    %295 = vmatprep.mubr.f32.mxu0 0.0
    %296 = vmatmul.mubr.f32.gmra.mrb[0].mxu0 %v122
    %v297 = vpop.f32.mrb[0].mxu0
    %v298 = vadd.f32 %v109, %v297
    %v299 = vpop.f32.mrb[0].mxu0
    %v300 = vadd.f32 %v109, %v299
    %301 = vdwg.mxu0
    %vm302 = vcmp.ge.f32.partialorder %v191, 0.0
    %vm303 = vcmp.ge.f32.partialorder %v193, 0.0
    %vm304 = vcmp.ge.f32.partialorder %v280, 0.0
    %vm305 = vcmp.ge.f32.partialorder %v282, 0.0
    %vm306 = vcmp.ge.f32.partialorder %v197, 0.0
    %vm307 = vcmp.ge.f32.partialorder %v199, 0.0
    %vm308 = vcmp.ge.f32.partialorder %v286, 0.0
    %vm309 = vcmp.ge.f32.partialorder %v288, 0.0
    %vm310 = vcmp.ge.f32.partialorder %v203, 0.0
    %vm311 = vcmp.ge.f32.partialorder %v205, 0.0
    %vm312 = vcmp.ge.f32.partialorder %v292, 0.0
    %vm313 = vcmp.ge.f32.partialorder %v294, 0.0
    %vm314 = vcmp.ge.f32.partialorder %v209, 0.0
    %vm315 = vcmp.ge.f32.partialorder %v211, 0.0
    %vm316 = vcmp.ge.f32.partialorder %v298, 0.0
    %vm317 = vcmp.ge.f32.partialorder %v300, 0.0
    %v318 = vstv %s45
    %v319 = vmul.f32 %v318, %v191
    %v320 = vmul.f32 %v318, %v193
    %v321 = vmul.f32 %v318, %v280
    %v322 = vmul.f32 %v318, %v282
    %v323 = vmul.f32 %v318, %v197
    %v324 = vmul.f32 %v318, %v199
    %v325 = vmul.f32 %v318, %v286
    %v326 = vmul.f32 %v318, %v288
    %v327 = vmul.f32 %v318, %v203
    %v328 = vmul.f32 %v318, %v205
    %v329 = vmul.f32 %v318, %v292
    %v330 = vmul.f32 %v318, %v294
    %v331 = vmul.f32 %v318, %v209
    %v332 = vmul.f32 %v318, %v211
    %v333 = vmul.f32 %v318, %v298
    %v334 = vmul.f32 %v318, %v300
    %v335 = vsel %vm302, %v191, %v319
    %v336 = vsel %vm303, %v193, %v320
    %v337 = vsel %vm304, %v280, %v321
    %v338 = vsel %vm305, %v282, %v322
    %v339 = vsel %vm306, %v197, %v323
    %v340 = vsel %vm307, %v199, %v324
    %v341 = vsel %vm308, %v286, %v325
    %v342 = vsel %vm309, %v288, %v326
    %v343 = vsel %vm310, %v203, %v327
    %v344 = vsel %vm311, %v205, %v328
    %v345 = vsel %vm312, %v292, %v329
    %v346 = vsel %vm313, %v294, %v330
    %v347 = vsel %vm314, %v209, %v331
    %v348 = vsel %vm315, %v211, %v332
    %v349 = vsel %vm316, %v298, %v333
    %v350 = vsel %vm317, %v300, %v334
    %v351 = vld [vmem:[%s2] sm:$0xff]
    %v352 = vld [vmem:[%s2 + $0x8] sm:$0xff]
    %v353 = vld [vmem:[%s2 + $0x10] sm:$0xff]
    %v354 = vld [vmem:[%s2 + $0x18] sm:$0xff]
    %356 = vset.pattern.permute.xlu0 4
    %357 = vperm.xlu0 %356, %v351
    %v358 = vpop.permute.xlu0 %357
    %361 = vset.pattern.permute.xlu0 4
    %362 = vperm.xlu0 %361, %v352
    %v363 = vpop.permute.xlu0 %362
    %366 = vset.pattern.permute.xlu0 4
    %367 = vperm.xlu0 %366, %v353
    %v368 = vpop.permute.xlu0 %367
    %371 = vset.pattern.permute.xlu0 4
    %372 = vperm.xlu0 %371, %v354
    %v373 = vpop.permute.xlu0 %372
    %v375 = vmul.f32 %v358, %v335
    %v376 = vmul.f32 %v358, %v336
    %v377 = vmul.f32 %v358, %v337
    %v378 = vmul.f32 %v358, %v338
    %v379 = vmul.f32 %v363, %v339
    %v380 = vmul.f32 %v363, %v340
    %v381 = vmul.f32 %v363, %v341
    %v382 = vmul.f32 %v363, %v342
    %v383 = vmul.f32 %v368, %v343
    %v384 = vmul.f32 %v368, %v344
    %v385 = vmul.f32 %v368, %v345
    %v386 = vmul.f32 %v368, %v346
    %v387 = vmul.f32 %v373, %v347
    %v388 = vmul.f32 %v373, %v348
    %v389 = vmul.f32 %v373, %v349
    %v390 = vmul.f32 %v373, %v350
    %391 = vset.pattern.permute.xlu0 13
    %392 = vperm.xlu0 %391, %v351
    %v393 = vpop.permute.xlu0 %392
    %395 = vset.pattern.permute.xlu0 13
    %396 = vperm.xlu0 %395, %v352
    %v397 = vpop.permute.xlu0 %396
    %399 = vset.pattern.permute.xlu0 13
    %400 = vperm.xlu0 %399, %v353
    %v401 = vpop.permute.xlu0 %400
    %403 = vset.pattern.permute.xlu0 13
    %404 = vperm.xlu0 %403, %v354
    %v405 = vpop.permute.xlu0 %404
    %v407 = vmul.f32 %v393, %v335
    %v408 = vmul.f32 %v393, %v336
    %v409 = vmul.f32 %v393, %v337
    %v410 = vmul.f32 %v393, %v338
    %v411 = vmul.f32 %v397, %v339
    %v412 = vmul.f32 %v397, %v340
    %v413 = vmul.f32 %v397, %v341
    %v414 = vmul.f32 %v397, %v342
    %v415 = vmul.f32 %v401, %v343
    %v416 = vmul.f32 %v401, %v344
    %v417 = vmul.f32 %v401, %v345
    %v418 = vmul.f32 %v401, %v346
    %v419 = vmul.f32 %v405, %v347
    %v420 = vmul.f32 %v405, %v348
    %v421 = vmul.f32 %v405, %v349
    %v422 = vmul.f32 %v405, %v350
    %423 = vrot.lane.b32.xlu0 %v335, 17
    %v424 = vpop.permute.xlu0 %423
    %425 = vrot.lane.b32.xlu0 %v339, 17
    %v426 = vpop.permute.xlu0 %425
    %427 = vrot.lane.b32.xlu0 %v343, 17
    %v428 = vpop.permute.xlu0 %427
    %429 = vrot.lane.b32.xlu0 %v347, 17
    %v430 = vpop.permute.xlu0 %429
    %431 = vrot.lane.b32.xlu0 %v336, 17
    %v432 = vpop.permute.xlu0 %431
    %433 = vrot.lane.b32.xlu0 %v340, 17
    %v434 = vpop.permute.xlu0 %433
    %435 = vrot.lane.b32.xlu0 %v344, 17
    %v436 = vpop.permute.xlu0 %435
    %437 = vrot.lane.b32.xlu0 %v348, 17
    %v438 = vpop.permute.xlu0 %437
    %439 = vrot.lane.b32.xlu0 %v337, 17
    %v440 = vpop.permute.xlu0 %439
    %441 = vrot.lane.b32.xlu0 %v341, 17
    %v442 = vpop.permute.xlu0 %441
    %443 = vrot.lane.b32.xlu0 %v345, 17
    %v444 = vpop.permute.xlu0 %443
    %445 = vrot.lane.b32.xlu0 %v349, 17
    %v446 = vpop.permute.xlu0 %445
    %447 = vrot.lane.b32.xlu0 %v338, 17
    %v448 = vpop.permute.xlu0 %447
    %449 = vrot.lane.b32.xlu0 %v342, 17
    %v450 = vpop.permute.xlu0 %449
    %451 = vrot.lane.b32.xlu0 %v346, 17
    %v452 = vpop.permute.xlu0 %451
    %453 = vrot.lane.b32.xlu0 %v350, 17
    %v454 = vpop.permute.xlu0 %453
    %v455 = vlaneseq
    %v456 = vand.u32 %v455, 127
    %vm457 = vcmp.lt.s32.totalorder %v456, 17
    %v458 = vsel %vm457, %v440, %v448
    %v459 = vsel %vm457, %v442, %v450
    %v460 = vsel %vm457, %v444, %v452
    %v461 = vsel %vm457, %v446, %v454
    %v462 = vsel %vm457, %v432, %v440
    %v463 = vsel %vm457, %v434, %v442
    %v464 = vsel %vm457, %v436, %v444
    %v465 = vsel %vm457, %v438, %v446
    %v466 = vsel %vm457, %v424, %v432
    %v467 = vsel %vm457, %v426, %v434
    %v468 = vsel %vm457, %v428, %v436
    %v469 = vsel %vm457, %v430, %v438
    %v470 = vsel %vm457, %v448, %v424
    %v471 = vsel %vm457, %v450, %v426
    %v472 = vsel %vm457, %v452, %v428
    %v473 = vsel %vm457, %v454, %v430
    %v474 = vld [vmem:[%s3] ss:$8 sm:$0xf]
    %v476 = vlaneseq
    %v477 = vshrl.u32 %v476, 7
    %v478 = vsub.s32 0, %v477
    %v479 = vrot.slane %v474, %v478
    %v480 = vlaneseq
    %v481 = vshrl.u32 %v480, 7
    %v482 = vsub.s32 1, %v481
    %v483 = vrot.slane %v474, %v482
    %v484 = vlaneseq
    %v485 = vshrl.u32 %v484, 7
    %v486 = vsub.s32 2, %v485
    %v487 = vrot.slane %v474, %v486
    %v488 = vlaneseq
    %v489 = vshrl.u32 %v488, 7
    %v490 = vsub.s32 3, %v489
    %v491 = vrot.slane %v474, %v490
    %v496 = vmul.f32 %v470, %v479
    %v497 = vmul.f32 %v466, %v483
    %v498 = vmul.f32 %v462, %v487
    %v499 = vmul.f32 %v458, %v491
    %v500 = vmul.f32 %v471, %v479
    %v501 = vmul.f32 %v467, %v483
    %v502 = vmul.f32 %v463, %v487
    %v503 = vmul.f32 %v459, %v491
    %v504 = vmul.f32 %v472, %v479
    %v505 = vmul.f32 %v468, %v483
    %v506 = vmul.f32 %v464, %v487
    %v507 = vmul.f32 %v460, %v491
    %v508 = vmul.f32 %v473, %v479
    %v509 = vmul.f32 %v469, %v483
    %v510 = vmul.f32 %v465, %v487
    %v511 = vmul.f32 %v461, %v491
    %512 = vset.pattern.permute.xlu0 0
    %513 = vperm.xlu0 %512, %v351
    %v514 = vpop.permute.xlu0 %513
    %516 = vset.pattern.permute.xlu0 0
    %517 = vperm.xlu0 %516, %v352
    %v518 = vpop.permute.xlu0 %517
    %520 = vset.pattern.permute.xlu0 0
    %521 = vperm.xlu0 %520, %v353
    %v522 = vpop.permute.xlu0 %521
    %524 = vset.pattern.permute.xlu0 0
    %525 = vperm.xlu0 %524, %v354
    %v526 = vpop.permute.xlu0 %525
    %v528 = vmul.f32 %v514, %v496
    %v529 = vmul.f32 %v514, %v497
    %v530 = vmul.f32 %v514, %v498
    %v531 = vmul.f32 %v514, %v499
    %v532 = vmul.f32 %v518, %v500
    %v533 = vmul.f32 %v518, %v501
    %v534 = vmul.f32 %v518, %v502
    %v535 = vmul.f32 %v518, %v503
    %v536 = vmul.f32 %v522, %v504
    %v537 = vmul.f32 %v522, %v505
    %v538 = vmul.f32 %v522, %v506
    %v539 = vmul.f32 %v522, %v507
    %v540 = vmul.f32 %v526, %v508
    %v541 = vmul.f32 %v526, %v509
    %v542 = vmul.f32 %v526, %v510
    %v543 = vmul.f32 %v526, %v511
    %v544 = vadd.f32 %v375, %v528
    %v545 = vadd.f32 %v376, %v529
    %v546 = vadd.f32 %v377, %v530
    %v547 = vadd.f32 %v378, %v531
    %v548 = vadd.f32 %v379, %v532
    %v549 = vadd.f32 %v380, %v533
    %v550 = vadd.f32 %v381, %v534
    %v551 = vadd.f32 %v382, %v535
    %v552 = vadd.f32 %v383, %v536
    %v553 = vadd.f32 %v384, %v537
    %v554 = vadd.f32 %v385, %v538
    %v555 = vadd.f32 %v386, %v539
    %v556 = vadd.f32 %v387, %v540
    %v557 = vadd.f32 %v388, %v541
    %v558 = vadd.f32 %v389, %v542
    %v559 = vadd.f32 %v390, %v543
    %560 = vrot.lane.b32.xlu0 %v335, 34
    %v561 = vpop.permute.xlu0 %560
    %562 = vrot.lane.b32.xlu0 %v339, 34
    %v563 = vpop.permute.xlu0 %562
    %564 = vrot.lane.b32.xlu0 %v343, 34
    %v565 = vpop.permute.xlu0 %564
    %566 = vrot.lane.b32.xlu0 %v347, 34
    %v567 = vpop.permute.xlu0 %566
    %568 = vrot.lane.b32.xlu0 %v336, 34
    %v569 = vpop.permute.xlu0 %568
    %570 = vrot.lane.b32.xlu0 %v340, 34
    %v571 = vpop.permute.xlu0 %570
    %572 = vrot.lane.b32.xlu0 %v344, 34
    %v573 = vpop.permute.xlu0 %572
    %574 = vrot.lane.b32.xlu0 %v348, 34
    %v575 = vpop.permute.xlu0 %574
    %576 = vrot.lane.b32.xlu0 %v337, 34
    %v577 = vpop.permute.xlu0 %576
    %578 = vrot.lane.b32.xlu0 %v341, 34
    %v579 = vpop.permute.xlu0 %578
    %580 = vrot.lane.b32.xlu0 %v345, 34
    %v581 = vpop.permute.xlu0 %580
    %582 = vrot.lane.b32.xlu0 %v349, 34
    %v583 = vpop.permute.xlu0 %582
    %584 = vrot.lane.b32.xlu0 %v338, 34
    %v585 = vpop.permute.xlu0 %584
    %586 = vrot.lane.b32.xlu0 %v342, 34
    %v587 = vpop.permute.xlu0 %586
    %588 = vrot.lane.b32.xlu0 %v346, 34
    %v589 = vpop.permute.xlu0 %588
    %590 = vrot.lane.b32.xlu0 %v350, 34
    %v591 = vpop.permute.xlu0 %590
    %vm592 = vcmp.lt.s32.totalorder %v456, 34
    %v593 = vsel %vm592, %v577, %v585
    %v594 = vsel %vm592, %v579, %v587
    %v595 = vsel %vm592, %v581, %v589
    %v596 = vsel %vm592, %v583, %v591
    %v597 = vsel %vm592, %v569, %v577
    %v598 = vsel %vm592, %v571, %v579
    %v599 = vsel %vm592, %v573, %v581
    %v600 = vsel %vm592, %v575, %v583
    %v601 = vsel %vm592, %v561, %v569
    %v602 = vsel %vm592, %v563, %v571
    %v603 = vsel %vm592, %v565, %v573
    %v604 = vsel %vm592, %v567, %v575
    %v605 = vsel %vm592, %v585, %v561
    %v606 = vsel %vm592, %v587, %v563
    %v607 = vsel %vm592, %v589, %v565
    %v608 = vsel %vm592, %v591, %v567
    %s609 = scalar_lea.vmem %s3, 33
    %v610 = vld [vmem:[%s609] ss:$8 sm:$0xf]
    %v612 = vlaneseq
    %v613 = vshrl.u32 %v612, 7
    %v614 = vsub.s32 0, %v613
    %v615 = vrot.slane %v610, %v614
    %v616 = vlaneseq
    %v617 = vshrl.u32 %v616, 7
    %v618 = vsub.s32 1, %v617
    %v619 = vrot.slane %v610, %v618
    %v620 = vlaneseq
    %v621 = vshrl.u32 %v620, 7
    %v622 = vsub.s32 2, %v621
    %v623 = vrot.slane %v610, %v622
    %v624 = vlaneseq
    %v625 = vshrl.u32 %v624, 7
    %v626 = vsub.s32 3, %v625
    %v627 = vrot.slane %v610, %v626
    %v632 = vmul.f32 %v605, %v615
    %v633 = vmul.f32 %v601, %v619
    %v634 = vmul.f32 %v597, %v623
    %v635 = vmul.f32 %v593, %v627
    %v636 = vmul.f32 %v606, %v615
    %v637 = vmul.f32 %v602, %v619
    %v638 = vmul.f32 %v598, %v623
    %v639 = vmul.f32 %v594, %v627
    %v640 = vmul.f32 %v607, %v615
    %v641 = vmul.f32 %v603, %v619
    %v642 = vmul.f32 %v599, %v623
    %v643 = vmul.f32 %v595, %v627
    %v644 = vmul.f32 %v608, %v615
    %v645 = vmul.f32 %v604, %v619
    %v646 = vmul.f32 %v600, %v623
    %v647 = vmul.f32 %v596, %v627
    %648 = vset.pattern.permute.xlu0 9
    %649 = vperm.xlu0 %648, %v351
    %v650 = vpop.permute.xlu0 %649
    %652 = vset.pattern.permute.xlu0 9
    %653 = vperm.xlu0 %652, %v352
    %v654 = vpop.permute.xlu0 %653
    %656 = vset.pattern.permute.xlu0 9
    %657 = vperm.xlu0 %656, %v353
    %v658 = vpop.permute.xlu0 %657
    %660 = vset.pattern.permute.xlu0 9
    %661 = vperm.xlu0 %660, %v354
    %v662 = vpop.permute.xlu0 %661
    %v664 = vmul.f32 %v650, %v632
    %v665 = vmul.f32 %v650, %v633
    %v666 = vmul.f32 %v650, %v634
    %v667 = vmul.f32 %v650, %v635
    %v668 = vmul.f32 %v654, %v636
    %v669 = vmul.f32 %v654, %v637
    %v670 = vmul.f32 %v654, %v638
    %v671 = vmul.f32 %v654, %v639
    %v672 = vmul.f32 %v658, %v640
    %v673 = vmul.f32 %v658, %v641
    %v674 = vmul.f32 %v658, %v642
    %v675 = vmul.f32 %v658, %v643
    %v676 = vmul.f32 %v662, %v644
    %v677 = vmul.f32 %v662, %v645
    %v678 = vmul.f32 %v662, %v646
    %v679 = vmul.f32 %v662, %v647
    %v680 = vadd.f32 %v407, %v664
    %v681 = vadd.f32 %v408, %v665
    %v682 = vadd.f32 %v409, %v666
    %v683 = vadd.f32 %v410, %v667
    %v684 = vadd.f32 %v411, %v668
    %v685 = vadd.f32 %v412, %v669
    %v686 = vadd.f32 %v413, %v670
    %v687 = vadd.f32 %v414, %v671
    %v688 = vadd.f32 %v415, %v672
    %v689 = vadd.f32 %v416, %v673
    %v690 = vadd.f32 %v417, %v674
    %v691 = vadd.f32 %v418, %v675
    %v692 = vadd.f32 %v419, %v676
    %v693 = vadd.f32 %v420, %v677
    %v694 = vadd.f32 %v421, %v678
    %v695 = vadd.f32 %v422, %v679
    %696 = vrot.lane.b32.xlu0 %v335, 16
    %v697 = vpop.permute.xlu0 %696
    %698 = vrot.lane.b32.xlu0 %v339, 16
    %v699 = vpop.permute.xlu0 %698
    %700 = vrot.lane.b32.xlu0 %v343, 16
    %v701 = vpop.permute.xlu0 %700
    %702 = vrot.lane.b32.xlu0 %v347, 16
    %v703 = vpop.permute.xlu0 %702
    %704 = vrot.lane.b32.xlu0 %v336, 16
    %v705 = vpop.permute.xlu0 %704
    %706 = vrot.lane.b32.xlu0 %v340, 16
    %v707 = vpop.permute.xlu0 %706
    %708 = vrot.lane.b32.xlu0 %v344, 16
    %v709 = vpop.permute.xlu0 %708
    %710 = vrot.lane.b32.xlu0 %v348, 16
    %v711 = vpop.permute.xlu0 %710
    %712 = vrot.lane.b32.xlu0 %v337, 16
    %v713 = vpop.permute.xlu0 %712
    %714 = vrot.lane.b32.xlu0 %v341, 16
    %v715 = vpop.permute.xlu0 %714
    %716 = vrot.lane.b32.xlu0 %v345, 16
    %v717 = vpop.permute.xlu0 %716
    %718 = vrot.lane.b32.xlu0 %v349, 16
    %v719 = vpop.permute.xlu0 %718
    %720 = vrot.lane.b32.xlu0 %v338, 16
    %v721 = vpop.permute.xlu0 %720
    %722 = vrot.lane.b32.xlu0 %v342, 16
    %v723 = vpop.permute.xlu0 %722
    %724 = vrot.lane.b32.xlu0 %v346, 16
    %v725 = vpop.permute.xlu0 %724
    %726 = vrot.lane.b32.xlu0 %v350, 16
    %v727 = vpop.permute.xlu0 %726
    %vm728 = vcmp.lt.s32.totalorder %v456, 16
    %v729 = vsel %vm728, %v713, %v721
    %v730 = vsel %vm728, %v715, %v723
    %v731 = vsel %vm728, %v717, %v725
    %v732 = vsel %vm728, %v719, %v727
    %v733 = vsel %vm728, %v705, %v713
    %v734 = vsel %vm728, %v707, %v715
    %v735 = vsel %vm728, %v709, %v717
    %v736 = vsel %vm728, %v711, %v719
    %v737 = vsel %vm728, %v697, %v705
    %v738 = vsel %vm728, %v699, %v707
    %v739 = vsel %vm728, %v701, %v709
    %v740 = vsel %vm728, %v703, %v711
    %v741 = vsel %vm728, %v721, %v697
    %v742 = vsel %vm728, %v723, %v699
    %v743 = vsel %vm728, %v725, %v701
    %v744 = vsel %vm728, %v727, %v703
    %s745 = scalar_lea.vmem %s3, 1
    %v746 = vld [vmem:[%s745] ss:$8 sm:$0xf]
    %v748 = vlaneseq
    %v749 = vshrl.u32 %v748, 7
    %v750 = vsub.s32 0, %v749
    %v751 = vrot.slane %v746, %v750
    %v752 = vlaneseq
    %v753 = vshrl.u32 %v752, 7
    %v754 = vsub.s32 1, %v753
    %v755 = vrot.slane %v746, %v754
    %v756 = vlaneseq
    %v757 = vshrl.u32 %v756, 7
    %v758 = vsub.s32 2, %v757
    %v759 = vrot.slane %v746, %v758
    %v760 = vlaneseq
    %v761 = vshrl.u32 %v760, 7
    %v762 = vsub.s32 3, %v761
    %v763 = vrot.slane %v746, %v762
    %v768 = vmul.f32 %v741, %v751
    %v769 = vmul.f32 %v737, %v755
    %v770 = vmul.f32 %v733, %v759
    %v771 = vmul.f32 %v729, %v763
    %v772 = vmul.f32 %v742, %v751
    %v773 = vmul.f32 %v738, %v755
    %v774 = vmul.f32 %v734, %v759
    %v775 = vmul.f32 %v730, %v763
    %v776 = vmul.f32 %v743, %v751
    %v777 = vmul.f32 %v739, %v755
    %v778 = vmul.f32 %v735, %v759
    %v779 = vmul.f32 %v731, %v763
    %v780 = vmul.f32 %v744, %v751
    %v781 = vmul.f32 %v740, %v755
    %v782 = vmul.f32 %v736, %v759
    %v783 = vmul.f32 %v732, %v763
    %784 = vset.pattern.permute.xlu0 1
    %785 = vperm.xlu0 %784, %v351
    %v786 = vpop.permute.xlu0 %785
    %788 = vset.pattern.permute.xlu0 1
    %789 = vperm.xlu0 %788, %v352
    %v790 = vpop.permute.xlu0 %789
    %792 = vset.pattern.permute.xlu0 1
    %793 = vperm.xlu0 %792, %v353
    %v794 = vpop.permute.xlu0 %793
    %796 = vset.pattern.permute.xlu0 1
    %797 = vperm.xlu0 %796, %v354
    %v798 = vpop.permute.xlu0 %797
    %v800 = vmul.f32 %v786, %v768
    %v801 = vmul.f32 %v786, %v769
    %v802 = vmul.f32 %v786, %v770
    %v803 = vmul.f32 %v786, %v771
    %v804 = vmul.f32 %v790, %v772
    %v805 = vmul.f32 %v790, %v773
    %v806 = vmul.f32 %v790, %v774
    %v807 = vmul.f32 %v790, %v775
    %v808 = vmul.f32 %v794, %v776
    %v809 = vmul.f32 %v794, %v777
    %v810 = vmul.f32 %v794, %v778
    %v811 = vmul.f32 %v794, %v779
    %v812 = vmul.f32 %v798, %v780
    %v813 = vmul.f32 %v798, %v781
    %v814 = vmul.f32 %v798, %v782
    %v815 = vmul.f32 %v798, %v783
    %v816 = vadd.f32 %v544, %v800
    %v817 = vadd.f32 %v545, %v801
    %v818 = vadd.f32 %v546, %v802
    %v819 = vadd.f32 %v547, %v803
    %v820 = vadd.f32 %v548, %v804
    %v821 = vadd.f32 %v549, %v805
    %v822 = vadd.f32 %v550, %v806
    %v823 = vadd.f32 %v551, %v807
    %v824 = vadd.f32 %v552, %v808
    %v825 = vadd.f32 %v553, %v809
    %v826 = vadd.f32 %v554, %v810
    %v827 = vadd.f32 %v555, %v811
    %v828 = vadd.f32 %v556, %v812
    %v829 = vadd.f32 %v557, %v813
    %v830 = vadd.f32 %v558, %v814
    %v831 = vadd.f32 %v559, %v815
    %832 = vrot.lane.b32.xlu0 %v335, 32
    %v833 = vpop.permute.xlu0 %832
    %834 = vrot.lane.b32.xlu0 %v339, 32
    %v835 = vpop.permute.xlu0 %834
    %836 = vrot.lane.b32.xlu0 %v343, 32
    %v837 = vpop.permute.xlu0 %836
    %838 = vrot.lane.b32.xlu0 %v347, 32
    %v839 = vpop.permute.xlu0 %838
    %840 = vrot.lane.b32.xlu0 %v336, 32
    %v841 = vpop.permute.xlu0 %840
    %842 = vrot.lane.b32.xlu0 %v340, 32
    %v843 = vpop.permute.xlu0 %842
    %844 = vrot.lane.b32.xlu0 %v344, 32
    %v845 = vpop.permute.xlu0 %844
    %846 = vrot.lane.b32.xlu0 %v348, 32
    %v847 = vpop.permute.xlu0 %846
    %848 = vrot.lane.b32.xlu0 %v337, 32
    %v849 = vpop.permute.xlu0 %848
    %850 = vrot.lane.b32.xlu0 %v341, 32
    %v851 = vpop.permute.xlu0 %850
    %852 = vrot.lane.b32.xlu0 %v345, 32
    %v853 = vpop.permute.xlu0 %852
    %854 = vrot.lane.b32.xlu0 %v349, 32
    %v855 = vpop.permute.xlu0 %854
    %856 = vrot.lane.b32.xlu0 %v338, 32
    %v857 = vpop.permute.xlu0 %856
    %858 = vrot.lane.b32.xlu0 %v342, 32
    %v859 = vpop.permute.xlu0 %858
    %860 = vrot.lane.b32.xlu0 %v346, 32
    %v861 = vpop.permute.xlu0 %860
    %862 = vrot.lane.b32.xlu0 %v350, 32
    %v863 = vpop.permute.xlu0 %862
    %vm864 = vcmp.lt.s32.totalorder %v456, 32
    %v865 = vsel %vm864, %v849, %v857
    %v866 = vsel %vm864, %v851, %v859
    %v867 = vsel %vm864, %v853, %v861
    %v868 = vsel %vm864, %v855, %v863
    %v869 = vsel %vm864, %v841, %v849
    %v870 = vsel %vm864, %v843, %v851
    %v871 = vsel %vm864, %v845, %v853
    %v872 = vsel %vm864, %v847, %v855
    %v873 = vsel %vm864, %v833, %v841
    %v874 = vsel %vm864, %v835, %v843
    %v875 = vsel %vm864, %v837, %v845
    %v876 = vsel %vm864, %v839, %v847
    %v877 = vsel %vm864, %v857, %v833
    %v878 = vsel %vm864, %v859, %v835
    %v879 = vsel %vm864, %v861, %v837
    %v880 = vsel %vm864, %v863, %v839
    %s881 = scalar_lea.vmem %s3, 34
    %v882 = vld [vmem:[%s881] ss:$8 sm:$0xf]
    %v884 = vlaneseq
    %v885 = vshrl.u32 %v884, 7
    %v886 = vsub.s32 0, %v885
    %v887 = vrot.slane %v882, %v886
    %v888 = vlaneseq
    %v889 = vshrl.u32 %v888, 7
    %v890 = vsub.s32 1, %v889
    %v891 = vrot.slane %v882, %v890
    %v892 = vlaneseq
    %v893 = vshrl.u32 %v892, 7
    %v894 = vsub.s32 2, %v893
    %v895 = vrot.slane %v882, %v894
    %v896 = vlaneseq
    %v897 = vshrl.u32 %v896, 7
    %v898 = vsub.s32 3, %v897
    %v899 = vrot.slane %v882, %v898
    %v904 = vmul.f32 %v877, %v887
    %v905 = vmul.f32 %v873, %v891
    %v906 = vmul.f32 %v869, %v895
    %v907 = vmul.f32 %v865, %v899
    %v908 = vmul.f32 %v878, %v887
    %v909 = vmul.f32 %v874, %v891
    %v910 = vmul.f32 %v870, %v895
    %v911 = vmul.f32 %v866, %v899
    %v912 = vmul.f32 %v879, %v887
    %v913 = vmul.f32 %v875, %v891
    %v914 = vmul.f32 %v871, %v895
    %v915 = vmul.f32 %v867, %v899
    %v916 = vmul.f32 %v880, %v887
    %v917 = vmul.f32 %v876, %v891
    %v918 = vmul.f32 %v872, %v895
    %v919 = vmul.f32 %v868, %v899
    %920 = vset.pattern.permute.xlu0 10
    %921 = vperm.xlu0 %920, %v351
    %v922 = vpop.permute.xlu0 %921
    %924 = vset.pattern.permute.xlu0 10
    %925 = vperm.xlu0 %924, %v352
    %v926 = vpop.permute.xlu0 %925
    %928 = vset.pattern.permute.xlu0 10
    %929 = vperm.xlu0 %928, %v353
    %v930 = vpop.permute.xlu0 %929
    %932 = vset.pattern.permute.xlu0 10
    %933 = vperm.xlu0 %932, %v354
    %v934 = vpop.permute.xlu0 %933
    %v936 = vmul.f32 %v922, %v904
    %v937 = vmul.f32 %v922, %v905
    %v938 = vmul.f32 %v922, %v906
    %v939 = vmul.f32 %v922, %v907
    %v940 = vmul.f32 %v926, %v908
    %v941 = vmul.f32 %v926, %v909
    %v942 = vmul.f32 %v926, %v910
    %v943 = vmul.f32 %v926, %v911
    %v944 = vmul.f32 %v930, %v912
    %v945 = vmul.f32 %v930, %v913
    %v946 = vmul.f32 %v930, %v914
    %v947 = vmul.f32 %v930, %v915
    %v948 = vmul.f32 %v934, %v916
    %v949 = vmul.f32 %v934, %v917
    %v950 = vmul.f32 %v934, %v918
    %v951 = vmul.f32 %v934, %v919
    %v952 = vadd.f32 %v680, %v936
    %v953 = vadd.f32 %v681, %v937
    %v954 = vadd.f32 %v682, %v938
    %v955 = vadd.f32 %v683, %v939
    %v956 = vadd.f32 %v684, %v940
    %v957 = vadd.f32 %v685, %v941
    %v958 = vadd.f32 %v686, %v942
    %v959 = vadd.f32 %v687, %v943
    %v960 = vadd.f32 %v688, %v944
    %v961 = vadd.f32 %v689, %v945
    %v962 = vadd.f32 %v690, %v946
    %v963 = vadd.f32 %v691, %v947
    %v964 = vadd.f32 %v692, %v948
    %v965 = vadd.f32 %v693, %v949
    %v966 = vadd.f32 %v694, %v950
    %v967 = vadd.f32 %v695, %v951
    %968 = vrot.lane.b32.xlu0 %v335, 15
    %v969 = vpop.permute.xlu0 %968
    %970 = vrot.lane.b32.xlu0 %v339, 15
    %v971 = vpop.permute.xlu0 %970
    %972 = vrot.lane.b32.xlu0 %v343, 15
    %v973 = vpop.permute.xlu0 %972
    %974 = vrot.lane.b32.xlu0 %v347, 15
    %v975 = vpop.permute.xlu0 %974
    %976 = vrot.lane.b32.xlu0 %v336, 15
    %v977 = vpop.permute.xlu0 %976
    %978 = vrot.lane.b32.xlu0 %v340, 15
    %v979 = vpop.permute.xlu0 %978
    %980 = vrot.lane.b32.xlu0 %v344, 15
    %v981 = vpop.permute.xlu0 %980
    %982 = vrot.lane.b32.xlu0 %v348, 15
    %v983 = vpop.permute.xlu0 %982
    %984 = vrot.lane.b32.xlu0 %v337, 15
    %v985 = vpop.permute.xlu0 %984
    %986 = vrot.lane.b32.xlu0 %v341, 15
    %v987 = vpop.permute.xlu0 %986
    %988 = vrot.lane.b32.xlu0 %v345, 15
    %v989 = vpop.permute.xlu0 %988
    %990 = vrot.lane.b32.xlu0 %v349, 15
    %v991 = vpop.permute.xlu0 %990
    %992 = vrot.lane.b32.xlu0 %v338, 15
    %v993 = vpop.permute.xlu0 %992
    %994 = vrot.lane.b32.xlu0 %v342, 15
    %v995 = vpop.permute.xlu0 %994
    %996 = vrot.lane.b32.xlu0 %v346, 15
    %v997 = vpop.permute.xlu0 %996
    %998 = vrot.lane.b32.xlu0 %v350, 15
    %v999 = vpop.permute.xlu0 %998
    %vm1000 = vcmp.lt.s32.totalorder %v456, 15
    %v1001 = vsel %vm1000, %v985, %v993
    %v1002 = vsel %vm1000, %v987, %v995
    %v1003 = vsel %vm1000, %v989, %v997
    %v1004 = vsel %vm1000, %v991, %v999
    %v1005 = vsel %vm1000, %v977, %v985
    %v1006 = vsel %vm1000, %v979, %v987
    %v1007 = vsel %vm1000, %v981, %v989
    %v1008 = vsel %vm1000, %v983, %v991
    %v1009 = vsel %vm1000, %v969, %v977
    %v1010 = vsel %vm1000, %v971, %v979
    %v1011 = vsel %vm1000, %v973, %v981
    %v1012 = vsel %vm1000, %v975, %v983
    %v1013 = vsel %vm1000, %v993, %v969
    %v1014 = vsel %vm1000, %v995, %v971
    %v1015 = vsel %vm1000, %v997, %v973
    %v1016 = vsel %vm1000, %v999, %v975
    %s1017 = scalar_lea.vmem %s3, 2
    %v1018 = vld [vmem:[%s1017] ss:$8 sm:$0xf]
    %v1020 = vlaneseq
    %v1021 = vshrl.u32 %v1020, 7
    %v1022 = vsub.s32 0, %v1021
    %v1023 = vrot.slane %v1018, %v1022
    %v1024 = vlaneseq
    %v1025 = vshrl.u32 %v1024, 7
    %v1026 = vsub.s32 1, %v1025
    %v1027 = vrot.slane %v1018, %v1026
    %v1028 = vlaneseq
    %v1029 = vshrl.u32 %v1028, 7
    %v1030 = vsub.s32 2, %v1029
    %v1031 = vrot.slane %v1018, %v1030
    %v1032 = vlaneseq
    %v1033 = vshrl.u32 %v1032, 7
    %v1034 = vsub.s32 3, %v1033
    %v1035 = vrot.slane %v1018, %v1034
    %v1040 = vmul.f32 %v1013, %v1023
    %v1041 = vmul.f32 %v1009, %v1027
    %v1042 = vmul.f32 %v1005, %v1031
    %v1043 = vmul.f32 %v1001, %v1035
    %v1044 = vmul.f32 %v1014, %v1023
    %v1045 = vmul.f32 %v1010, %v1027
    %v1046 = vmul.f32 %v1006, %v1031
    %v1047 = vmul.f32 %v1002, %v1035
    %v1048 = vmul.f32 %v1015, %v1023
    %v1049 = vmul.f32 %v1011, %v1027
    %v1050 = vmul.f32 %v1007, %v1031
    %v1051 = vmul.f32 %v1003, %v1035
    %v1052 = vmul.f32 %v1016, %v1023
    %v1053 = vmul.f32 %v1012, %v1027
    %v1054 = vmul.f32 %v1008, %v1031
    %v1055 = vmul.f32 %v1004, %v1035
    %1056 = vset.pattern.permute.xlu0 2
    %1057 = vperm.xlu0 %1056, %v351
    %v1058 = vpop.permute.xlu0 %1057
    %1060 = vset.pattern.permute.xlu0 2
    %1061 = vperm.xlu0 %1060, %v352
    %v1062 = vpop.permute.xlu0 %1061
    %1064 = vset.pattern.permute.xlu0 2
    %1065 = vperm.xlu0 %1064, %v353
    %v1066 = vpop.permute.xlu0 %1065
    %1068 = vset.pattern.permute.xlu0 2
    %1069 = vperm.xlu0 %1068, %v354
    %v1070 = vpop.permute.xlu0 %1069
    %v1072 = vmul.f32 %v1058, %v1040
    %v1073 = vmul.f32 %v1058, %v1041
    %v1074 = vmul.f32 %v1058, %v1042
    %v1075 = vmul.f32 %v1058, %v1043
    %v1076 = vmul.f32 %v1062, %v1044
    %v1077 = vmul.f32 %v1062, %v1045
    %v1078 = vmul.f32 %v1062, %v1046
    %v1079 = vmul.f32 %v1062, %v1047
    %v1080 = vmul.f32 %v1066, %v1048
    %v1081 = vmul.f32 %v1066, %v1049
    %v1082 = vmul.f32 %v1066, %v1050
    %v1083 = vmul.f32 %v1066, %v1051
    %v1084 = vmul.f32 %v1070, %v1052
    %v1085 = vmul.f32 %v1070, %v1053
    %v1086 = vmul.f32 %v1070, %v1054
    %v1087 = vmul.f32 %v1070, %v1055
    %v1088 = vadd.f32 %v816, %v1072
    %v1089 = vadd.f32 %v817, %v1073
    %v1090 = vadd.f32 %v818, %v1074
    %v1091 = vadd.f32 %v819, %v1075
    %v1092 = vadd.f32 %v820, %v1076
    %v1093 = vadd.f32 %v821, %v1077
    %v1094 = vadd.f32 %v822, %v1078
    %v1095 = vadd.f32 %v823, %v1079
    %v1096 = vadd.f32 %v824, %v1080
    %v1097 = vadd.f32 %v825, %v1081
    %v1098 = vadd.f32 %v826, %v1082
    %v1099 = vadd.f32 %v827, %v1083
    %v1100 = vadd.f32 %v828, %v1084
    %v1101 = vadd.f32 %v829, %v1085
    %v1102 = vadd.f32 %v830, %v1086
    %v1103 = vadd.f32 %v831, %v1087
    %1104 = vrot.lane.b32.xlu0 %v335, 30
    %v1105 = vpop.permute.xlu0 %1104
    %1106 = vrot.lane.b32.xlu0 %v339, 30
    %v1107 = vpop.permute.xlu0 %1106
    %1108 = vrot.lane.b32.xlu0 %v343, 30
    %v1109 = vpop.permute.xlu0 %1108
    %1110 = vrot.lane.b32.xlu0 %v347, 30
    %v1111 = vpop.permute.xlu0 %1110
    %1112 = vrot.lane.b32.xlu0 %v336, 30
    %v1113 = vpop.permute.xlu0 %1112
    %1114 = vrot.lane.b32.xlu0 %v340, 30
    %v1115 = vpop.permute.xlu0 %1114
    %1116 = vrot.lane.b32.xlu0 %v344, 30
    %v1117 = vpop.permute.xlu0 %1116
    %1118 = vrot.lane.b32.xlu0 %v348, 30
    %v1119 = vpop.permute.xlu0 %1118
    %1120 = vrot.lane.b32.xlu0 %v337, 30
    %v1121 = vpop.permute.xlu0 %1120
    %1122 = vrot.lane.b32.xlu0 %v341, 30
    %v1123 = vpop.permute.xlu0 %1122
    %1124 = vrot.lane.b32.xlu0 %v345, 30
    %v1125 = vpop.permute.xlu0 %1124
    %1126 = vrot.lane.b32.xlu0 %v349, 30
    %v1127 = vpop.permute.xlu0 %1126
    %1128 = vrot.lane.b32.xlu0 %v338, 30
    %v1129 = vpop.permute.xlu0 %1128
    %1130 = vrot.lane.b32.xlu0 %v342, 30
    %v1131 = vpop.permute.xlu0 %1130
    %1132 = vrot.lane.b32.xlu0 %v346, 30
    %v1133 = vpop.permute.xlu0 %1132
    %1134 = vrot.lane.b32.xlu0 %v350, 30
    %v1135 = vpop.permute.xlu0 %1134
    %vm1136 = vcmp.lt.s32.totalorder %v456, 30
    %v1137 = vsel %vm1136, %v1121, %v1129
    %v1138 = vsel %vm1136, %v1123, %v1131
    %v1139 = vsel %vm1136, %v1125, %v1133
    %v1140 = vsel %vm1136, %v1127, %v1135
    %v1141 = vsel %vm1136, %v1113, %v1121
    %v1142 = vsel %vm1136, %v1115, %v1123
    %v1143 = vsel %vm1136, %v1117, %v1125
    %v1144 = vsel %vm1136, %v1119, %v1127
    %v1145 = vsel %vm1136, %v1105, %v1113
    %v1146 = vsel %vm1136, %v1107, %v1115
    %v1147 = vsel %vm1136, %v1109, %v1117
    %v1148 = vsel %vm1136, %v1111, %v1119
    %v1149 = vsel %vm1136, %v1129, %v1105
    %v1150 = vsel %vm1136, %v1131, %v1107
    %v1151 = vsel %vm1136, %v1133, %v1109
    %v1152 = vsel %vm1136, %v1135, %v1111
    %s1153 = scalar_lea.vmem %s3, 35
    %v1154 = vld [vmem:[%s1153] ss:$8 sm:$0xf]
    %v1156 = vlaneseq
    %v1157 = vshrl.u32 %v1156, 7
    %v1158 = vsub.s32 0, %v1157
    %v1159 = vrot.slane %v1154, %v1158
    %v1160 = vlaneseq
    %v1161 = vshrl.u32 %v1160, 7
    %v1162 = vsub.s32 1, %v1161
    %v1163 = vrot.slane %v1154, %v1162
    %v1164 = vlaneseq
    %v1165 = vshrl.u32 %v1164, 7
    %v1166 = vsub.s32 2, %v1165
    %v1167 = vrot.slane %v1154, %v1166
    %v1168 = vlaneseq
    %v1169 = vshrl.u32 %v1168, 7
    %v1170 = vsub.s32 3, %v1169
    %v1171 = vrot.slane %v1154, %v1170
    %v1176 = vmul.f32 %v1149, %v1159
    %v1177 = vmul.f32 %v1145, %v1163
    %v1178 = vmul.f32 %v1141, %v1167
    %v1179 = vmul.f32 %v1137, %v1171
    %v1180 = vmul.f32 %v1150, %v1159
    %v1181 = vmul.f32 %v1146, %v1163
    %v1182 = vmul.f32 %v1142, %v1167
    %v1183 = vmul.f32 %v1138, %v1171
    %v1184 = vmul.f32 %v1151, %v1159
    %v1185 = vmul.f32 %v1147, %v1163
    %v1186 = vmul.f32 %v1143, %v1167
    %v1187 = vmul.f32 %v1139, %v1171
    %v1188 = vmul.f32 %v1152, %v1159
    %v1189 = vmul.f32 %v1148, %v1163
    %v1190 = vmul.f32 %v1144, %v1167
    %v1191 = vmul.f32 %v1140, %v1171
    %1192 = vset.pattern.permute.xlu0 11
    %1193 = vperm.xlu0 %1192, %v351
    %v1194 = vpop.permute.xlu0 %1193
    %1196 = vset.pattern.permute.xlu0 11
    %1197 = vperm.xlu0 %1196, %v352
    %v1198 = vpop.permute.xlu0 %1197
    %1200 = vset.pattern.permute.xlu0 11
    %1201 = vperm.xlu0 %1200, %v353
    %v1202 = vpop.permute.xlu0 %1201
    %1204 = vset.pattern.permute.xlu0 11
    %1205 = vperm.xlu0 %1204, %v354
    %v1206 = vpop.permute.xlu0 %1205
    %v1208 = vmul.f32 %v1194, %v1176
    %v1209 = vmul.f32 %v1194, %v1177
    %v1210 = vmul.f32 %v1194, %v1178
    %v1211 = vmul.f32 %v1194, %v1179
    %v1212 = vmul.f32 %v1198, %v1180
    %v1213 = vmul.f32 %v1198, %v1181
    %v1214 = vmul.f32 %v1198, %v1182
    %v1215 = vmul.f32 %v1198, %v1183
    %v1216 = vmul.f32 %v1202, %v1184
    %v1217 = vmul.f32 %v1202, %v1185
    %v1218 = vmul.f32 %v1202, %v1186
    %v1219 = vmul.f32 %v1202, %v1187
    %v1220 = vmul.f32 %v1206, %v1188
    %v1221 = vmul.f32 %v1206, %v1189
    %v1222 = vmul.f32 %v1206, %v1190
    %v1223 = vmul.f32 %v1206, %v1191
    %v1224 = vadd.f32 %v952, %v1208
    %v1225 = vadd.f32 %v953, %v1209
    %v1226 = vadd.f32 %v954, %v1210
    %v1227 = vadd.f32 %v955, %v1211
    %v1228 = vadd.f32 %v956, %v1212
    %v1229 = vadd.f32 %v957, %v1213
    %v1230 = vadd.f32 %v958, %v1214
    %v1231 = vadd.f32 %v959, %v1215
    %v1232 = vadd.f32 %v960, %v1216
    %v1233 = vadd.f32 %v961, %v1217
    %v1234 = vadd.f32 %v962, %v1218
    %v1235 = vadd.f32 %v963, %v1219
    %v1236 = vadd.f32 %v964, %v1220
    %v1237 = vadd.f32 %v965, %v1221
    %v1238 = vadd.f32 %v966, %v1222
    %v1239 = vadd.f32 %v967, %v1223
    %1240 = vrot.lane.b32.xlu0 %v335, 1
    %v1241 = vpop.permute.xlu0 %1240
    %1242 = vrot.lane.b32.xlu0 %v339, 1
    %v1243 = vpop.permute.xlu0 %1242
    %1244 = vrot.lane.b32.xlu0 %v343, 1
    %v1245 = vpop.permute.xlu0 %1244
    %1246 = vrot.lane.b32.xlu0 %v347, 1
    %v1247 = vpop.permute.xlu0 %1246
    %1248 = vrot.lane.b32.xlu0 %v336, 1
    %v1249 = vpop.permute.xlu0 %1248
    %1250 = vrot.lane.b32.xlu0 %v340, 1
    %v1251 = vpop.permute.xlu0 %1250
    %1252 = vrot.lane.b32.xlu0 %v344, 1
    %v1253 = vpop.permute.xlu0 %1252
    %1254 = vrot.lane.b32.xlu0 %v348, 1
    %v1255 = vpop.permute.xlu0 %1254
    %1256 = vrot.lane.b32.xlu0 %v337, 1
    %v1257 = vpop.permute.xlu0 %1256
    %1258 = vrot.lane.b32.xlu0 %v341, 1
    %v1259 = vpop.permute.xlu0 %1258
    %1260 = vrot.lane.b32.xlu0 %v345, 1
    %v1261 = vpop.permute.xlu0 %1260
    %1262 = vrot.lane.b32.xlu0 %v349, 1
    %v1263 = vpop.permute.xlu0 %1262
    %1264 = vrot.lane.b32.xlu0 %v338, 1
    %v1265 = vpop.permute.xlu0 %1264
    %1266 = vrot.lane.b32.xlu0 %v342, 1
    %v1267 = vpop.permute.xlu0 %1266
    %1268 = vrot.lane.b32.xlu0 %v346, 1
    %v1269 = vpop.permute.xlu0 %1268
    %1270 = vrot.lane.b32.xlu0 %v350, 1
    %v1271 = vpop.permute.xlu0 %1270
    %vm1272 = vcmp.lt.s32.totalorder %v456, 1
    %v1273 = vsel %vm1272, %v1257, %v1265
    %v1274 = vsel %vm1272, %v1259, %v1267
    %v1275 = vsel %vm1272, %v1261, %v1269
    %v1276 = vsel %vm1272, %v1263, %v1271
    %v1277 = vsel %vm1272, %v1249, %v1257
    %v1278 = vsel %vm1272, %v1251, %v1259
    %v1279 = vsel %vm1272, %v1253, %v1261
    %v1280 = vsel %vm1272, %v1255, %v1263
    %v1281 = vsel %vm1272, %v1241, %v1249
    %v1282 = vsel %vm1272, %v1243, %v1251
    %v1283 = vsel %vm1272, %v1245, %v1253
    %v1284 = vsel %vm1272, %v1247, %v1255
    %v1285 = vsel %vm1272, %v1265, %v1241
    %v1286 = vsel %vm1272, %v1267, %v1243
    %v1287 = vsel %vm1272, %v1269, %v1245
    %v1288 = vsel %vm1272, %v1271, %v1247
    %s1289 = scalar_lea.vmem %s3, 3
    %v1290 = vld [vmem:[%s1289] ss:$8 sm:$0xf]
    %v1292 = vlaneseq
    %v1293 = vshrl.u32 %v1292, 7
    %v1294 = vsub.s32 0, %v1293
    %v1295 = vrot.slane %v1290, %v1294
    %v1296 = vlaneseq
    %v1297 = vshrl.u32 %v1296, 7
    %v1298 = vsub.s32 1, %v1297
    %v1299 = vrot.slane %v1290, %v1298
    %v1300 = vlaneseq
    %v1301 = vshrl.u32 %v1300, 7
    %v1302 = vsub.s32 2, %v1301
    %v1303 = vrot.slane %v1290, %v1302
    %v1304 = vlaneseq
    %v1305 = vshrl.u32 %v1304, 7
    %v1306 = vsub.s32 3, %v1305
    %v1307 = vrot.slane %v1290, %v1306
    %v1312 = vmul.f32 %v1285, %v1295
    %v1313 = vmul.f32 %v1281, %v1299
    %v1314 = vmul.f32 %v1277, %v1303
    %v1315 = vmul.f32 %v1273, %v1307
    %v1316 = vmul.f32 %v1286, %v1295
    %v1317 = vmul.f32 %v1282, %v1299
    %v1318 = vmul.f32 %v1278, %v1303
    %v1319 = vmul.f32 %v1274, %v1307
    %v1320 = vmul.f32 %v1287, %v1295
    %v1321 = vmul.f32 %v1283, %v1299
    %v1322 = vmul.f32 %v1279, %v1303
    %v1323 = vmul.f32 %v1275, %v1307
    %v1324 = vmul.f32 %v1288, %v1295
    %v1325 = vmul.f32 %v1284, %v1299
    %v1326 = vmul.f32 %v1280, %v1303
    %v1327 = vmul.f32 %v1276, %v1307
    %1328 = vset.pattern.permute.xlu0 3
    %1329 = vperm.xlu0 %1328, %v351
    %v1330 = vpop.permute.xlu0 %1329
    %1332 = vset.pattern.permute.xlu0 3
    %1333 = vperm.xlu0 %1332, %v352
    %v1334 = vpop.permute.xlu0 %1333
    %1336 = vset.pattern.permute.xlu0 3
    %1337 = vperm.xlu0 %1336, %v353
    %v1338 = vpop.permute.xlu0 %1337
    %1340 = vset.pattern.permute.xlu0 3
    %1341 = vperm.xlu0 %1340, %v354
    %v1342 = vpop.permute.xlu0 %1341
    %v1344 = vmul.f32 %v1330, %v1312
    %v1345 = vmul.f32 %v1330, %v1313
    %v1346 = vmul.f32 %v1330, %v1314
    %v1347 = vmul.f32 %v1330, %v1315
    %v1348 = vmul.f32 %v1334, %v1316
    %v1349 = vmul.f32 %v1334, %v1317
    %v1350 = vmul.f32 %v1334, %v1318
    %v1351 = vmul.f32 %v1334, %v1319
    %v1352 = vmul.f32 %v1338, %v1320
    %v1353 = vmul.f32 %v1338, %v1321
    %v1354 = vmul.f32 %v1338, %v1322
    %v1355 = vmul.f32 %v1338, %v1323
    %v1356 = vmul.f32 %v1342, %v1324
    %v1357 = vmul.f32 %v1342, %v1325
    %v1358 = vmul.f32 %v1342, %v1326
    %v1359 = vmul.f32 %v1342, %v1327
    %v1360 = vadd.f32 %v1088, %v1344
    %v1361 = vadd.f32 %v1089, %v1345
    %v1362 = vadd.f32 %v1090, %v1346
    %v1363 = vadd.f32 %v1091, %v1347
    %v1364 = vadd.f32 %v1092, %v1348
    %v1365 = vadd.f32 %v1093, %v1349
    %v1366 = vadd.f32 %v1094, %v1350
    %v1367 = vadd.f32 %v1095, %v1351
    %v1368 = vadd.f32 %v1096, %v1352
    %v1369 = vadd.f32 %v1097, %v1353
    %v1370 = vadd.f32 %v1098, %v1354
    %v1371 = vadd.f32 %v1099, %v1355
    %v1372 = vadd.f32 %v1100, %v1356
    %v1373 = vadd.f32 %v1101, %v1357
    %v1374 = vadd.f32 %v1102, %v1358
    %v1375 = vadd.f32 %v1103, %v1359
    %1376 = vrot.lane.b32.xlu0 %v335, 2
    %v1377 = vpop.permute.xlu0 %1376
    %1378 = vrot.lane.b32.xlu0 %v339, 2
    %v1379 = vpop.permute.xlu0 %1378
    %1380 = vrot.lane.b32.xlu0 %v343, 2
    %v1381 = vpop.permute.xlu0 %1380
    %1382 = vrot.lane.b32.xlu0 %v347, 2
    %v1383 = vpop.permute.xlu0 %1382
    %1384 = vrot.lane.b32.xlu0 %v336, 2
    %v1385 = vpop.permute.xlu0 %1384
    %1386 = vrot.lane.b32.xlu0 %v340, 2
    %v1387 = vpop.permute.xlu0 %1386
    %1388 = vrot.lane.b32.xlu0 %v344, 2
    %v1389 = vpop.permute.xlu0 %1388
    %1390 = vrot.lane.b32.xlu0 %v348, 2
    %v1391 = vpop.permute.xlu0 %1390
    %1392 = vrot.lane.b32.xlu0 %v337, 2
    %v1393 = vpop.permute.xlu0 %1392
    %1394 = vrot.lane.b32.xlu0 %v341, 2
    %v1395 = vpop.permute.xlu0 %1394
    %1396 = vrot.lane.b32.xlu0 %v345, 2
    %v1397 = vpop.permute.xlu0 %1396
    %1398 = vrot.lane.b32.xlu0 %v349, 2
    %v1399 = vpop.permute.xlu0 %1398
    %1400 = vrot.lane.b32.xlu0 %v338, 2
    %v1401 = vpop.permute.xlu0 %1400
    %1402 = vrot.lane.b32.xlu0 %v342, 2
    %v1403 = vpop.permute.xlu0 %1402
    %1404 = vrot.lane.b32.xlu0 %v346, 2
    %v1405 = vpop.permute.xlu0 %1404
    %1406 = vrot.lane.b32.xlu0 %v350, 2
    %v1407 = vpop.permute.xlu0 %1406
    %vm1408 = vcmp.lt.s32.totalorder %v456, 2
    %v1409 = vsel %vm1408, %v1393, %v1401
    %v1410 = vsel %vm1408, %v1395, %v1403
    %v1411 = vsel %vm1408, %v1397, %v1405
    %v1412 = vsel %vm1408, %v1399, %v1407
    %v1413 = vsel %vm1408, %v1385, %v1393
    %v1414 = vsel %vm1408, %v1387, %v1395
    %v1415 = vsel %vm1408, %v1389, %v1397
    %v1416 = vsel %vm1408, %v1391, %v1399
    %v1417 = vsel %vm1408, %v1377, %v1385
    %v1418 = vsel %vm1408, %v1379, %v1387
    %v1419 = vsel %vm1408, %v1381, %v1389
    %v1420 = vsel %vm1408, %v1383, %v1391
    %v1421 = vsel %vm1408, %v1401, %v1377
    %v1422 = vsel %vm1408, %v1403, %v1379
    %v1423 = vsel %vm1408, %v1405, %v1381
    %v1424 = vsel %vm1408, %v1407, %v1383
    %s1425 = scalar_lea.vmem %s3, 36
    %v1426 = vld [vmem:[%s1425] ss:$8 sm:$0xf]
    %v1428 = vlaneseq
    %v1429 = vshrl.u32 %v1428, 7
    %v1430 = vsub.s32 0, %v1429
    %v1431 = vrot.slane %v1426, %v1430
    %v1432 = vlaneseq
    %v1433 = vshrl.u32 %v1432, 7
    %v1434 = vsub.s32 1, %v1433
    %v1435 = vrot.slane %v1426, %v1434
    %v1436 = vlaneseq
    %v1437 = vshrl.u32 %v1436, 7
    %v1438 = vsub.s32 2, %v1437
    %v1439 = vrot.slane %v1426, %v1438
    %v1440 = vlaneseq
    %v1441 = vshrl.u32 %v1440, 7
    %v1442 = vsub.s32 3, %v1441
    %v1443 = vrot.slane %v1426, %v1442
    %v1448 = vmul.f32 %v1421, %v1431
    %v1449 = vmul.f32 %v1417, %v1435
    %v1450 = vmul.f32 %v1413, %v1439
    %v1451 = vmul.f32 %v1409, %v1443
    %v1452 = vmul.f32 %v1422, %v1431
    %v1453 = vmul.f32 %v1418, %v1435
    %v1454 = vmul.f32 %v1414, %v1439
    %v1455 = vmul.f32 %v1410, %v1443
    %v1456 = vmul.f32 %v1423, %v1431
    %v1457 = vmul.f32 %v1419, %v1435
    %v1458 = vmul.f32 %v1415, %v1439
    %v1459 = vmul.f32 %v1411, %v1443
    %v1460 = vmul.f32 %v1424, %v1431
    %v1461 = vmul.f32 %v1420, %v1435
    %v1462 = vmul.f32 %v1416, %v1439
    %v1463 = vmul.f32 %v1412, %v1443
    %1464 = vset.pattern.permute.xlu0 12
    %1465 = vperm.xlu0 %1464, %v351
    %v1466 = vpop.permute.xlu0 %1465
    %1468 = vset.pattern.permute.xlu0 12
    %1469 = vperm.xlu0 %1468, %v352
    %v1470 = vpop.permute.xlu0 %1469
    %1472 = vset.pattern.permute.xlu0 12
    %1473 = vperm.xlu0 %1472, %v353
    %v1474 = vpop.permute.xlu0 %1473
    %1476 = vset.pattern.permute.xlu0 12
    %1477 = vperm.xlu0 %1476, %v354
    %v1478 = vpop.permute.xlu0 %1477
    %v1480 = vmul.f32 %v1466, %v1448
    %v1481 = vmul.f32 %v1466, %v1449
    %v1482 = vmul.f32 %v1466, %v1450
    %v1483 = vmul.f32 %v1466, %v1451
    %v1484 = vmul.f32 %v1470, %v1452
    %v1485 = vmul.f32 %v1470, %v1453
    %v1486 = vmul.f32 %v1470, %v1454
    %v1487 = vmul.f32 %v1470, %v1455
    %v1488 = vmul.f32 %v1474, %v1456
    %v1489 = vmul.f32 %v1474, %v1457
    %v1490 = vmul.f32 %v1474, %v1458
    %v1491 = vmul.f32 %v1474, %v1459
    %v1492 = vmul.f32 %v1478, %v1460
    %v1493 = vmul.f32 %v1478, %v1461
    %v1494 = vmul.f32 %v1478, %v1462
    %v1495 = vmul.f32 %v1478, %v1463
    %v1496 = vadd.f32 %v1224, %v1480
    %v1497 = vadd.f32 %v1225, %v1481
    %v1498 = vadd.f32 %v1226, %v1482
    %v1499 = vadd.f32 %v1227, %v1483
    %v1500 = vadd.f32 %v1228, %v1484
    %v1501 = vadd.f32 %v1229, %v1485
    %v1502 = vadd.f32 %v1230, %v1486
    %v1503 = vadd.f32 %v1231, %v1487
    %v1504 = vadd.f32 %v1232, %v1488
    %v1505 = vadd.f32 %v1233, %v1489
    %v1506 = vadd.f32 %v1234, %v1490
    %v1507 = vadd.f32 %v1235, %v1491
    %v1508 = vadd.f32 %v1236, %v1492
    %v1509 = vadd.f32 %v1237, %v1493
    %v1510 = vadd.f32 %v1238, %v1494
    %v1511 = vadd.f32 %v1239, %v1495
    %1512 = vrot.lane.b32.xlu0 %v335, 127
    %v1513 = vpop.permute.xlu0 %1512
    %1514 = vrot.lane.b32.xlu0 %v339, 127
    %v1515 = vpop.permute.xlu0 %1514
    %1516 = vrot.lane.b32.xlu0 %v343, 127
    %v1517 = vpop.permute.xlu0 %1516
    %1518 = vrot.lane.b32.xlu0 %v347, 127
    %v1519 = vpop.permute.xlu0 %1518
    %1520 = vrot.lane.b32.xlu0 %v336, 127
    %v1521 = vpop.permute.xlu0 %1520
    %1522 = vrot.lane.b32.xlu0 %v340, 127
    %v1523 = vpop.permute.xlu0 %1522
    %1524 = vrot.lane.b32.xlu0 %v344, 127
    %v1525 = vpop.permute.xlu0 %1524
    %1526 = vrot.lane.b32.xlu0 %v348, 127
    %v1527 = vpop.permute.xlu0 %1526
    %1528 = vrot.lane.b32.xlu0 %v337, 127
    %v1529 = vpop.permute.xlu0 %1528
    %1530 = vrot.lane.b32.xlu0 %v341, 127
    %v1531 = vpop.permute.xlu0 %1530
    %1532 = vrot.lane.b32.xlu0 %v345, 127
    %v1533 = vpop.permute.xlu0 %1532
    %1534 = vrot.lane.b32.xlu0 %v349, 127
    %v1535 = vpop.permute.xlu0 %1534
    %1536 = vrot.lane.b32.xlu0 %v338, 127
    %v1537 = vpop.permute.xlu0 %1536
    %1538 = vrot.lane.b32.xlu0 %v342, 127
    %v1539 = vpop.permute.xlu0 %1538
    %1540 = vrot.lane.b32.xlu0 %v346, 127
    %v1541 = vpop.permute.xlu0 %1540
    %1542 = vrot.lane.b32.xlu0 %v350, 127
    %v1543 = vpop.permute.xlu0 %1542
    %vm1544 = vcmp.lt.s32.totalorder %v456, 127
    %v1545 = vsel %vm1544, %v1529, %v1537
    %v1546 = vsel %vm1544, %v1531, %v1539
    %v1547 = vsel %vm1544, %v1533, %v1541
    %v1548 = vsel %vm1544, %v1535, %v1543
    %v1549 = vsel %vm1544, %v1521, %v1529
    %v1550 = vsel %vm1544, %v1523, %v1531
    %v1551 = vsel %vm1544, %v1525, %v1533
    %v1552 = vsel %vm1544, %v1527, %v1535
    %v1553 = vsel %vm1544, %v1513, %v1521
    %v1554 = vsel %vm1544, %v1515, %v1523
    %v1555 = vsel %vm1544, %v1517, %v1525
    %v1556 = vsel %vm1544, %v1519, %v1527
    %v1557 = vsel %vm1544, %v1537, %v1513
    %v1558 = vsel %vm1544, %v1539, %v1515
    %v1559 = vsel %vm1544, %v1541, %v1517
    %v1560 = vsel %vm1544, %v1543, %v1519
    %s1561 = scalar_lea.vmem %s3, 5
    %v1562 = vld [vmem:[%s1561] ss:$8 sm:$0xf]
    %v1564 = vlaneseq
    %v1565 = vshrl.u32 %v1564, 7
    %v1566 = vsub.s32 0, %v1565
    %v1567 = vrot.slane %v1562, %v1566
    %v1568 = vlaneseq
    %v1569 = vshrl.u32 %v1568, 7
    %v1570 = vsub.s32 1, %v1569
    %v1571 = vrot.slane %v1562, %v1570
    %v1572 = vlaneseq
    %v1573 = vshrl.u32 %v1572, 7
    %v1574 = vsub.s32 2, %v1573
    %v1575 = vrot.slane %v1562, %v1574
    %v1576 = vlaneseq
    %v1577 = vshrl.u32 %v1576, 7
    %v1578 = vsub.s32 3, %v1577
    %v1579 = vrot.slane %v1562, %v1578
    %v1584 = vmul.f32 %v1553, %v1567
    %v1585 = vmul.f32 %v1549, %v1571
    %v1586 = vmul.f32 %v1545, %v1575
    %v1587 = vmul.f32 %v1557, %v1579
    %v1588 = vmul.f32 %v1554, %v1567
    %v1589 = vmul.f32 %v1550, %v1571
    %v1590 = vmul.f32 %v1546, %v1575
    %v1591 = vmul.f32 %v1558, %v1579
    %v1592 = vmul.f32 %v1555, %v1567
    %v1593 = vmul.f32 %v1551, %v1571
    %v1594 = vmul.f32 %v1547, %v1575
    %v1595 = vmul.f32 %v1559, %v1579
    %v1596 = vmul.f32 %v1556, %v1567
    %v1597 = vmul.f32 %v1552, %v1571
    %v1598 = vmul.f32 %v1548, %v1575
    %v1599 = vmul.f32 %v1560, %v1579
    %1600 = vset.pattern.permute.xlu0 5
    %1601 = vperm.xlu0 %1600, %v351
    %v1602 = vpop.permute.xlu0 %1601
    %1604 = vset.pattern.permute.xlu0 5
    %1605 = vperm.xlu0 %1604, %v352
    %v1606 = vpop.permute.xlu0 %1605
    %1608 = vset.pattern.permute.xlu0 5
    %1609 = vperm.xlu0 %1608, %v353
    %v1610 = vpop.permute.xlu0 %1609
    %1612 = vset.pattern.permute.xlu0 5
    %1613 = vperm.xlu0 %1612, %v354
    %v1614 = vpop.permute.xlu0 %1613
    %v1616 = vmul.f32 %v1602, %v1584
    %v1617 = vmul.f32 %v1602, %v1585
    %v1618 = vmul.f32 %v1602, %v1586
    %v1619 = vmul.f32 %v1602, %v1587
    %v1620 = vmul.f32 %v1606, %v1588
    %v1621 = vmul.f32 %v1606, %v1589
    %v1622 = vmul.f32 %v1606, %v1590
    %v1623 = vmul.f32 %v1606, %v1591
    %v1624 = vmul.f32 %v1610, %v1592
    %v1625 = vmul.f32 %v1610, %v1593
    %v1626 = vmul.f32 %v1610, %v1594
    %v1627 = vmul.f32 %v1610, %v1595
    %v1628 = vmul.f32 %v1614, %v1596
    %v1629 = vmul.f32 %v1614, %v1597
    %v1630 = vmul.f32 %v1614, %v1598
    %v1631 = vmul.f32 %v1614, %v1599
    %v1632 = vadd.f32 %v1360, %v1616
    %v1633 = vadd.f32 %v1361, %v1617
    %v1634 = vadd.f32 %v1362, %v1618
    %v1635 = vadd.f32 %v1363, %v1619
    %v1636 = vadd.f32 %v1364, %v1620
    %v1637 = vadd.f32 %v1365, %v1621
    %v1638 = vadd.f32 %v1366, %v1622
    %v1639 = vadd.f32 %v1367, %v1623
    %v1640 = vadd.f32 %v1368, %v1624
    %v1641 = vadd.f32 %v1369, %v1625
    %v1642 = vadd.f32 %v1370, %v1626
    %v1643 = vadd.f32 %v1371, %v1627
    %v1644 = vadd.f32 %v1372, %v1628
    %v1645 = vadd.f32 %v1373, %v1629
    %v1646 = vadd.f32 %v1374, %v1630
    %v1647 = vadd.f32 %v1375, %v1631
    %1648 = vrot.lane.b32.xlu0 %v335, 126
    %v1649 = vpop.permute.xlu0 %1648
    %1650 = vrot.lane.b32.xlu0 %v339, 126
    %v1651 = vpop.permute.xlu0 %1650
    %1652 = vrot.lane.b32.xlu0 %v343, 126
    %v1653 = vpop.permute.xlu0 %1652
    %1654 = vrot.lane.b32.xlu0 %v347, 126
    %v1655 = vpop.permute.xlu0 %1654
    %1656 = vrot.lane.b32.xlu0 %v336, 126
    %v1657 = vpop.permute.xlu0 %1656
    %1658 = vrot.lane.b32.xlu0 %v340, 126
    %v1659 = vpop.permute.xlu0 %1658
    %1660 = vrot.lane.b32.xlu0 %v344, 126
    %v1661 = vpop.permute.xlu0 %1660
    %1662 = vrot.lane.b32.xlu0 %v348, 126
    %v1663 = vpop.permute.xlu0 %1662
    %1664 = vrot.lane.b32.xlu0 %v337, 126
    %v1665 = vpop.permute.xlu0 %1664
    %1666 = vrot.lane.b32.xlu0 %v341, 126
    %v1667 = vpop.permute.xlu0 %1666
    %1668 = vrot.lane.b32.xlu0 %v345, 126
    %v1669 = vpop.permute.xlu0 %1668
    %1670 = vrot.lane.b32.xlu0 %v349, 126
    %v1671 = vpop.permute.xlu0 %1670
    %1672 = vrot.lane.b32.xlu0 %v338, 126
    %v1673 = vpop.permute.xlu0 %1672
    %1674 = vrot.lane.b32.xlu0 %v342, 126
    %v1675 = vpop.permute.xlu0 %1674
    %1676 = vrot.lane.b32.xlu0 %v346, 126
    %v1677 = vpop.permute.xlu0 %1676
    %1678 = vrot.lane.b32.xlu0 %v350, 126
    %v1679 = vpop.permute.xlu0 %1678
    %vm1680 = vcmp.lt.s32.totalorder %v456, 126
    %v1681 = vsel %vm1680, %v1665, %v1673
    %v1682 = vsel %vm1680, %v1667, %v1675
    %v1683 = vsel %vm1680, %v1669, %v1677
    %v1684 = vsel %vm1680, %v1671, %v1679
    %v1685 = vsel %vm1680, %v1657, %v1665
    %v1686 = vsel %vm1680, %v1659, %v1667
    %v1687 = vsel %vm1680, %v1661, %v1669
    %v1688 = vsel %vm1680, %v1663, %v1671
    %v1689 = vsel %vm1680, %v1649, %v1657
    %v1690 = vsel %vm1680, %v1651, %v1659
    %v1691 = vsel %vm1680, %v1653, %v1661
    %v1692 = vsel %vm1680, %v1655, %v1663
    %v1693 = vsel %vm1680, %v1673, %v1649
    %v1694 = vsel %vm1680, %v1675, %v1651
    %v1695 = vsel %vm1680, %v1677, %v1653
    %v1696 = vsel %vm1680, %v1679, %v1655
    %s1697 = scalar_lea.vmem %s3, 38
    %v1698 = vld [vmem:[%s1697] ss:$8 sm:$0xf]
    %v1700 = vlaneseq
    %v1701 = vshrl.u32 %v1700, 7
    %v1702 = vsub.s32 0, %v1701
    %v1703 = vrot.slane %v1698, %v1702
    %v1704 = vlaneseq
    %v1705 = vshrl.u32 %v1704, 7
    %v1706 = vsub.s32 1, %v1705
    %v1707 = vrot.slane %v1698, %v1706
    %v1708 = vlaneseq
    %v1709 = vshrl.u32 %v1708, 7
    %v1710 = vsub.s32 2, %v1709
    %v1711 = vrot.slane %v1698, %v1710
    %v1712 = vlaneseq
    %v1713 = vshrl.u32 %v1712, 7
    %v1714 = vsub.s32 3, %v1713
    %v1715 = vrot.slane %v1698, %v1714
    %v1720 = vmul.f32 %v1689, %v1703
    %v1721 = vmul.f32 %v1685, %v1707
    %v1722 = vmul.f32 %v1681, %v1711
    %v1723 = vmul.f32 %v1693, %v1715
    %v1724 = vmul.f32 %v1690, %v1703
    %v1725 = vmul.f32 %v1686, %v1707
    %v1726 = vmul.f32 %v1682, %v1711
    %v1727 = vmul.f32 %v1694, %v1715
    %v1728 = vmul.f32 %v1691, %v1703
    %v1729 = vmul.f32 %v1687, %v1707
    %v1730 = vmul.f32 %v1683, %v1711
    %v1731 = vmul.f32 %v1695, %v1715
    %v1732 = vmul.f32 %v1692, %v1703
    %v1733 = vmul.f32 %v1688, %v1707
    %v1734 = vmul.f32 %v1684, %v1711
    %v1735 = vmul.f32 %v1696, %v1715
    %1736 = vset.pattern.permute.xlu0 14
    %1737 = vperm.xlu0 %1736, %v351
    %v1738 = vpop.permute.xlu0 %1737
    %1740 = vset.pattern.permute.xlu0 14
    %1741 = vperm.xlu0 %1740, %v352
    %v1742 = vpop.permute.xlu0 %1741
    %1744 = vset.pattern.permute.xlu0 14
    %1745 = vperm.xlu0 %1744, %v353
    %v1746 = vpop.permute.xlu0 %1745
    %1748 = vset.pattern.permute.xlu0 14
    %1749 = vperm.xlu0 %1748, %v354
    %v1750 = vpop.permute.xlu0 %1749
    %v1752 = vmul.f32 %v1738, %v1720
    %v1753 = vmul.f32 %v1738, %v1721
    %v1754 = vmul.f32 %v1738, %v1722
    %v1755 = vmul.f32 %v1738, %v1723
    %v1756 = vmul.f32 %v1742, %v1724
    %v1757 = vmul.f32 %v1742, %v1725
    %v1758 = vmul.f32 %v1742, %v1726
    %v1759 = vmul.f32 %v1742, %v1727
    %v1760 = vmul.f32 %v1746, %v1728
    %v1761 = vmul.f32 %v1746, %v1729
    %v1762 = vmul.f32 %v1746, %v1730
    %v1763 = vmul.f32 %v1746, %v1731
    %v1764 = vmul.f32 %v1750, %v1732
    %v1765 = vmul.f32 %v1750, %v1733
    %v1766 = vmul.f32 %v1750, %v1734
    %v1767 = vmul.f32 %v1750, %v1735
    %v1768 = vadd.f32 %v1496, %v1752
    %v1769 = vadd.f32 %v1497, %v1753
    %v1770 = vadd.f32 %v1498, %v1754
    %v1771 = vadd.f32 %v1499, %v1755
    %v1772 = vadd.f32 %v1500, %v1756
    %v1773 = vadd.f32 %v1501, %v1757
    %v1774 = vadd.f32 %v1502, %v1758
    %v1775 = vadd.f32 %v1503, %v1759
    %v1776 = vadd.f32 %v1504, %v1760
    %v1777 = vadd.f32 %v1505, %v1761
    %v1778 = vadd.f32 %v1506, %v1762
    %v1779 = vadd.f32 %v1507, %v1763
    %v1780 = vadd.f32 %v1508, %v1764
    %v1781 = vadd.f32 %v1509, %v1765
    %v1782 = vadd.f32 %v1510, %v1766
    %v1783 = vadd.f32 %v1511, %v1767
    %1784 = vrot.lane.b32.xlu0 %v335, 113
    %v1785 = vpop.permute.xlu0 %1784
    %1786 = vrot.lane.b32.xlu0 %v339, 113
    %v1787 = vpop.permute.xlu0 %1786
    %1788 = vrot.lane.b32.xlu0 %v343, 113
    %v1789 = vpop.permute.xlu0 %1788
    %1790 = vrot.lane.b32.xlu0 %v347, 113
    %v1791 = vpop.permute.xlu0 %1790
    %1792 = vrot.lane.b32.xlu0 %v336, 113
    %v1793 = vpop.permute.xlu0 %1792
    %1794 = vrot.lane.b32.xlu0 %v340, 113
    %v1795 = vpop.permute.xlu0 %1794
    %1796 = vrot.lane.b32.xlu0 %v344, 113
    %v1797 = vpop.permute.xlu0 %1796
    %1798 = vrot.lane.b32.xlu0 %v348, 113
    %v1799 = vpop.permute.xlu0 %1798
    %1800 = vrot.lane.b32.xlu0 %v337, 113
    %v1801 = vpop.permute.xlu0 %1800
    %1802 = vrot.lane.b32.xlu0 %v341, 113
    %v1803 = vpop.permute.xlu0 %1802
    %1804 = vrot.lane.b32.xlu0 %v345, 113
    %v1805 = vpop.permute.xlu0 %1804
    %1806 = vrot.lane.b32.xlu0 %v349, 113
    %v1807 = vpop.permute.xlu0 %1806
    %1808 = vrot.lane.b32.xlu0 %v338, 113
    %v1809 = vpop.permute.xlu0 %1808
    %1810 = vrot.lane.b32.xlu0 %v342, 113
    %v1811 = vpop.permute.xlu0 %1810
    %1812 = vrot.lane.b32.xlu0 %v346, 113
    %v1813 = vpop.permute.xlu0 %1812
    %1814 = vrot.lane.b32.xlu0 %v350, 113
    %v1815 = vpop.permute.xlu0 %1814
    %vm1816 = vcmp.lt.s32.totalorder %v456, 113
    %v1817 = vsel %vm1816, %v1801, %v1809
    %v1818 = vsel %vm1816, %v1803, %v1811
    %v1819 = vsel %vm1816, %v1805, %v1813
    %v1820 = vsel %vm1816, %v1807, %v1815
    %v1821 = vsel %vm1816, %v1793, %v1801
    %v1822 = vsel %vm1816, %v1795, %v1803
    %v1823 = vsel %vm1816, %v1797, %v1805
    %v1824 = vsel %vm1816, %v1799, %v1807
    %v1825 = vsel %vm1816, %v1785, %v1793
    %v1826 = vsel %vm1816, %v1787, %v1795
    %v1827 = vsel %vm1816, %v1789, %v1797
    %v1828 = vsel %vm1816, %v1791, %v1799
    %v1829 = vsel %vm1816, %v1809, %v1785
    %v1830 = vsel %vm1816, %v1811, %v1787
    %v1831 = vsel %vm1816, %v1813, %v1789
    %v1832 = vsel %vm1816, %v1815, %v1791
    %s1833 = scalar_lea.vmem %s3, 6
    %v1834 = vld [vmem:[%s1833] ss:$8 sm:$0xf]
    %v1836 = vlaneseq
    %v1837 = vshrl.u32 %v1836, 7
    %v1838 = vsub.s32 0, %v1837
    %v1839 = vrot.slane %v1834, %v1838
    %v1840 = vlaneseq
    %v1841 = vshrl.u32 %v1840, 7
    %v1842 = vsub.s32 1, %v1841
    %v1843 = vrot.slane %v1834, %v1842
    %v1844 = vlaneseq
    %v1845 = vshrl.u32 %v1844, 7
    %v1846 = vsub.s32 2, %v1845
    %v1847 = vrot.slane %v1834, %v1846
    %v1848 = vlaneseq
    %v1849 = vshrl.u32 %v1848, 7
    %v1850 = vsub.s32 3, %v1849
    %v1851 = vrot.slane %v1834, %v1850
    %v1856 = vmul.f32 %v1825, %v1839
    %v1857 = vmul.f32 %v1821, %v1843
    %v1858 = vmul.f32 %v1817, %v1847
    %v1859 = vmul.f32 %v1829, %v1851
    %v1860 = vmul.f32 %v1826, %v1839
    %v1861 = vmul.f32 %v1822, %v1843
    %v1862 = vmul.f32 %v1818, %v1847
    %v1863 = vmul.f32 %v1830, %v1851
    %v1864 = vmul.f32 %v1827, %v1839
    %v1865 = vmul.f32 %v1823, %v1843
    %v1866 = vmul.f32 %v1819, %v1847
    %v1867 = vmul.f32 %v1831, %v1851
    %v1868 = vmul.f32 %v1828, %v1839
    %v1869 = vmul.f32 %v1824, %v1843
    %v1870 = vmul.f32 %v1820, %v1847
    %v1871 = vmul.f32 %v1832, %v1851
    %1872 = vset.pattern.permute.xlu0 6
    %1873 = vperm.xlu0 %1872, %v351
    %v1874 = vpop.permute.xlu0 %1873
    %1876 = vset.pattern.permute.xlu0 6
    %1877 = vperm.xlu0 %1876, %v352
    %v1878 = vpop.permute.xlu0 %1877
    %1880 = vset.pattern.permute.xlu0 6
    %1881 = vperm.xlu0 %1880, %v353
    %v1882 = vpop.permute.xlu0 %1881
    %1884 = vset.pattern.permute.xlu0 6
    %1885 = vperm.xlu0 %1884, %v354
    %v1886 = vpop.permute.xlu0 %1885
    %v1888 = vmul.f32 %v1874, %v1856
    %v1889 = vmul.f32 %v1874, %v1857
    %v1890 = vmul.f32 %v1874, %v1858
    %v1891 = vmul.f32 %v1874, %v1859
    %v1892 = vmul.f32 %v1878, %v1860
    %v1893 = vmul.f32 %v1878, %v1861
    %v1894 = vmul.f32 %v1878, %v1862
    %v1895 = vmul.f32 %v1878, %v1863
    %v1896 = vmul.f32 %v1882, %v1864
    %v1897 = vmul.f32 %v1882, %v1865
    %v1898 = vmul.f32 %v1882, %v1866
    %v1899 = vmul.f32 %v1882, %v1867
    %v1900 = vmul.f32 %v1886, %v1868
    %v1901 = vmul.f32 %v1886, %v1869
    %v1902 = vmul.f32 %v1886, %v1870
    %v1903 = vmul.f32 %v1886, %v1871
    %v1904 = vadd.f32 %v1632, %v1888
    %v1905 = vadd.f32 %v1633, %v1889
    %v1906 = vadd.f32 %v1634, %v1890
    %v1907 = vadd.f32 %v1635, %v1891
    %v1908 = vadd.f32 %v1636, %v1892
    %v1909 = vadd.f32 %v1637, %v1893
    %v1910 = vadd.f32 %v1638, %v1894
    %v1911 = vadd.f32 %v1639, %v1895
    %v1912 = vadd.f32 %v1640, %v1896
    %v1913 = vadd.f32 %v1641, %v1897
    %v1914 = vadd.f32 %v1642, %v1898
    %v1915 = vadd.f32 %v1643, %v1899
    %v1916 = vadd.f32 %v1644, %v1900
    %v1917 = vadd.f32 %v1645, %v1901
    %v1918 = vadd.f32 %v1646, %v1902
    %v1919 = vadd.f32 %v1647, %v1903
    %1920 = vrot.lane.b32.xlu0 %v335, 98
    %v1921 = vpop.permute.xlu0 %1920
    %1922 = vrot.lane.b32.xlu0 %v339, 98
    %v1923 = vpop.permute.xlu0 %1922
    %1924 = vrot.lane.b32.xlu0 %v343, 98
    %v1925 = vpop.permute.xlu0 %1924
    %1926 = vrot.lane.b32.xlu0 %v347, 98
    %v1927 = vpop.permute.xlu0 %1926
    %1928 = vrot.lane.b32.xlu0 %v336, 98
    %v1929 = vpop.permute.xlu0 %1928
    %1930 = vrot.lane.b32.xlu0 %v340, 98
    %v1931 = vpop.permute.xlu0 %1930
    %1932 = vrot.lane.b32.xlu0 %v344, 98
    %v1933 = vpop.permute.xlu0 %1932
    %1934 = vrot.lane.b32.xlu0 %v348, 98
    %v1935 = vpop.permute.xlu0 %1934
    %1936 = vrot.lane.b32.xlu0 %v337, 98
    %v1937 = vpop.permute.xlu0 %1936
    %1938 = vrot.lane.b32.xlu0 %v341, 98
    %v1939 = vpop.permute.xlu0 %1938
    %1940 = vrot.lane.b32.xlu0 %v345, 98
    %v1941 = vpop.permute.xlu0 %1940
    %1942 = vrot.lane.b32.xlu0 %v349, 98
    %v1943 = vpop.permute.xlu0 %1942
    %1944 = vrot.lane.b32.xlu0 %v338, 98
    %v1945 = vpop.permute.xlu0 %1944
    %1946 = vrot.lane.b32.xlu0 %v342, 98
    %v1947 = vpop.permute.xlu0 %1946
    %1948 = vrot.lane.b32.xlu0 %v346, 98
    %v1949 = vpop.permute.xlu0 %1948
    %1950 = vrot.lane.b32.xlu0 %v350, 98
    %v1951 = vpop.permute.xlu0 %1950
    %vm1952 = vcmp.lt.s32.totalorder %v456, 98
    %v1953 = vsel %vm1952, %v1937, %v1945
    %v1954 = vsel %vm1952, %v1939, %v1947
    %v1955 = vsel %vm1952, %v1941, %v1949
    %v1956 = vsel %vm1952, %v1943, %v1951
    %v1957 = vsel %vm1952, %v1929, %v1937
    %v1958 = vsel %vm1952, %v1931, %v1939
    %v1959 = vsel %vm1952, %v1933, %v1941
    %v1960 = vsel %vm1952, %v1935, %v1943
    %v1961 = vsel %vm1952, %v1921, %v1929
    %v1962 = vsel %vm1952, %v1923, %v1931
    %v1963 = vsel %vm1952, %v1925, %v1933
    %v1964 = vsel %vm1952, %v1927, %v1935
    %v1965 = vsel %vm1952, %v1945, %v1921
    %v1966 = vsel %vm1952, %v1947, %v1923
    %v1967 = vsel %vm1952, %v1949, %v1925
    %v1968 = vsel %vm1952, %v1951, %v1927
    %s1969 = scalar_lea.vmem %s3, 39
    %v1970 = vld [vmem:[%s1969] ss:$8 sm:$0xf]
    %v1972 = vlaneseq
    %v1973 = vshrl.u32 %v1972, 7
    %v1974 = vsub.s32 0, %v1973
    %v1975 = vrot.slane %v1970, %v1974
    %v1976 = vlaneseq
    %v1977 = vshrl.u32 %v1976, 7
    %v1978 = vsub.s32 1, %v1977
    %v1979 = vrot.slane %v1970, %v1978
    %v1980 = vlaneseq
    %v1981 = vshrl.u32 %v1980, 7
    %v1982 = vsub.s32 2, %v1981
    %v1983 = vrot.slane %v1970, %v1982
    %v1984 = vlaneseq
    %v1985 = vshrl.u32 %v1984, 7
    %v1986 = vsub.s32 3, %v1985
    %v1987 = vrot.slane %v1970, %v1986
    %v1992 = vmul.f32 %v1961, %v1975
    %v1993 = vmul.f32 %v1957, %v1979
    %v1994 = vmul.f32 %v1953, %v1983
    %v1995 = vmul.f32 %v1965, %v1987
    %v1996 = vmul.f32 %v1962, %v1975
    %v1997 = vmul.f32 %v1958, %v1979
    %v1998 = vmul.f32 %v1954, %v1983
    %v1999 = vmul.f32 %v1966, %v1987
    %v2000 = vmul.f32 %v1963, %v1975
    %v2001 = vmul.f32 %v1959, %v1979
    %v2002 = vmul.f32 %v1955, %v1983
    %v2003 = vmul.f32 %v1967, %v1987
    %v2004 = vmul.f32 %v1964, %v1975
    %v2005 = vmul.f32 %v1960, %v1979
    %v2006 = vmul.f32 %v1956, %v1983
    %v2007 = vmul.f32 %v1968, %v1987
    %2008 = vset.pattern.permute.xlu0 15
    %2009 = vperm.xlu0 %2008, %v351
    %v2010 = vpop.permute.xlu0 %2009
    %2012 = vset.pattern.permute.xlu0 15
    %2013 = vperm.xlu0 %2012, %v352
    %v2014 = vpop.permute.xlu0 %2013
    %2016 = vset.pattern.permute.xlu0 15
    %2017 = vperm.xlu0 %2016, %v353
    %v2018 = vpop.permute.xlu0 %2017
    %2020 = vset.pattern.permute.xlu0 15
    %2021 = vperm.xlu0 %2020, %v354
    %v2022 = vpop.permute.xlu0 %2021
    %v2024 = vmul.f32 %v2010, %v1992
    %v2025 = vmul.f32 %v2010, %v1993
    %v2026 = vmul.f32 %v2010, %v1994
    %v2027 = vmul.f32 %v2010, %v1995
    %v2028 = vmul.f32 %v2014, %v1996
    %v2029 = vmul.f32 %v2014, %v1997
    %v2030 = vmul.f32 %v2014, %v1998
    %v2031 = vmul.f32 %v2014, %v1999
    %v2032 = vmul.f32 %v2018, %v2000
    %v2033 = vmul.f32 %v2018, %v2001
    %v2034 = vmul.f32 %v2018, %v2002
    %v2035 = vmul.f32 %v2018, %v2003
    %v2036 = vmul.f32 %v2022, %v2004
    %v2037 = vmul.f32 %v2022, %v2005
    %v2038 = vmul.f32 %v2022, %v2006
    %v2039 = vmul.f32 %v2022, %v2007
    %v2040 = vadd.f32 %v1768, %v2024
    %v2041 = vadd.f32 %v1769, %v2025
    %v2042 = vadd.f32 %v1770, %v2026
    %v2043 = vadd.f32 %v1771, %v2027
    %v2044 = vadd.f32 %v1772, %v2028
    %v2045 = vadd.f32 %v1773, %v2029
    %v2046 = vadd.f32 %v1774, %v2030
    %v2047 = vadd.f32 %v1775, %v2031
    %v2048 = vadd.f32 %v1776, %v2032
    %v2049 = vadd.f32 %v1777, %v2033
    %v2050 = vadd.f32 %v1778, %v2034
    %v2051 = vadd.f32 %v1779, %v2035
    %v2052 = vadd.f32 %v1780, %v2036
    %v2053 = vadd.f32 %v1781, %v2037
    %v2054 = vadd.f32 %v1782, %v2038
    %v2055 = vadd.f32 %v1783, %v2039
    %2056 = vrot.lane.b32.xlu0 %v335, 112
    %v2057 = vpop.permute.xlu0 %2056
    %2058 = vrot.lane.b32.xlu0 %v339, 112
    %v2059 = vpop.permute.xlu0 %2058
    %2060 = vrot.lane.b32.xlu0 %v343, 112
    %v2061 = vpop.permute.xlu0 %2060
    %2062 = vrot.lane.b32.xlu0 %v347, 112
    %v2063 = vpop.permute.xlu0 %2062
    %2064 = vrot.lane.b32.xlu0 %v336, 112
    %v2065 = vpop.permute.xlu0 %2064
    %2066 = vrot.lane.b32.xlu0 %v340, 112
    %v2067 = vpop.permute.xlu0 %2066
    %2068 = vrot.lane.b32.xlu0 %v344, 112
    %v2069 = vpop.permute.xlu0 %2068
    %2070 = vrot.lane.b32.xlu0 %v348, 112
    %v2071 = vpop.permute.xlu0 %2070
    %2072 = vrot.lane.b32.xlu0 %v337, 112
    %v2073 = vpop.permute.xlu0 %2072
    %2074 = vrot.lane.b32.xlu0 %v341, 112
    %v2075 = vpop.permute.xlu0 %2074
    %2076 = vrot.lane.b32.xlu0 %v345, 112
    %v2077 = vpop.permute.xlu0 %2076
    %2078 = vrot.lane.b32.xlu0 %v349, 112
    %v2079 = vpop.permute.xlu0 %2078
    %2080 = vrot.lane.b32.xlu0 %v338, 112
    %v2081 = vpop.permute.xlu0 %2080
    %2082 = vrot.lane.b32.xlu0 %v342, 112
    %v2083 = vpop.permute.xlu0 %2082
    %2084 = vrot.lane.b32.xlu0 %v346, 112
    %v2085 = vpop.permute.xlu0 %2084
    %2086 = vrot.lane.b32.xlu0 %v350, 112
    %v2087 = vpop.permute.xlu0 %2086
    %vm2088 = vcmp.lt.s32.totalorder %v456, 112
    %v2089 = vsel %vm2088, %v2073, %v2081
    %v2090 = vsel %vm2088, %v2075, %v2083
    %v2091 = vsel %vm2088, %v2077, %v2085
    %v2092 = vsel %vm2088, %v2079, %v2087
    %v2093 = vsel %vm2088, %v2065, %v2073
    %v2094 = vsel %vm2088, %v2067, %v2075
    %v2095 = vsel %vm2088, %v2069, %v2077
    %v2096 = vsel %vm2088, %v2071, %v2079
    %v2097 = vsel %vm2088, %v2057, %v2065
    %v2098 = vsel %vm2088, %v2059, %v2067
    %v2099 = vsel %vm2088, %v2061, %v2069
    %v2100 = vsel %vm2088, %v2063, %v2071
    %v2101 = vsel %vm2088, %v2081, %v2057
    %v2102 = vsel %vm2088, %v2083, %v2059
    %v2103 = vsel %vm2088, %v2085, %v2061
    %v2104 = vsel %vm2088, %v2087, %v2063
    %s2105 = scalar_lea.vmem %s3, 7
    %v2106 = vld [vmem:[%s2105] ss:$8 sm:$0xf]
    %v2108 = vlaneseq
    %v2109 = vshrl.u32 %v2108, 7
    %v2110 = vsub.s32 0, %v2109
    %v2111 = vrot.slane %v2106, %v2110
    %v2112 = vlaneseq
    %v2113 = vshrl.u32 %v2112, 7
    %v2114 = vsub.s32 1, %v2113
    %v2115 = vrot.slane %v2106, %v2114
    %v2116 = vlaneseq
    %v2117 = vshrl.u32 %v2116, 7
    %v2118 = vsub.s32 2, %v2117
    %v2119 = vrot.slane %v2106, %v2118
    %v2120 = vlaneseq
    %v2121 = vshrl.u32 %v2120, 7
    %v2122 = vsub.s32 3, %v2121
    %v2123 = vrot.slane %v2106, %v2122
    %v2128 = vmul.f32 %v2097, %v2111
    %v2129 = vmul.f32 %v2093, %v2115
    %v2130 = vmul.f32 %v2089, %v2119
    %v2131 = vmul.f32 %v2101, %v2123
    %v2132 = vmul.f32 %v2098, %v2111
    %v2133 = vmul.f32 %v2094, %v2115
    %v2134 = vmul.f32 %v2090, %v2119
    %v2135 = vmul.f32 %v2102, %v2123
    %v2136 = vmul.f32 %v2099, %v2111
    %v2137 = vmul.f32 %v2095, %v2115
    %v2138 = vmul.f32 %v2091, %v2119
    %v2139 = vmul.f32 %v2103, %v2123
    %v2140 = vmul.f32 %v2100, %v2111
    %v2141 = vmul.f32 %v2096, %v2115
    %v2142 = vmul.f32 %v2092, %v2119
    %v2143 = vmul.f32 %v2104, %v2123
    %2144 = vset.pattern.permute.xlu0 7
    %2145 = vperm.xlu0 %2144, %v351
    %v2146 = vpop.permute.xlu0 %2145
    %2148 = vset.pattern.permute.xlu0 7
    %2149 = vperm.xlu0 %2148, %v352
    %v2150 = vpop.permute.xlu0 %2149
    %2152 = vset.pattern.permute.xlu0 7
    %2153 = vperm.xlu0 %2152, %v353
    %v2154 = vpop.permute.xlu0 %2153
    %2156 = vset.pattern.permute.xlu0 7
    %2157 = vperm.xlu0 %2156, %v354
    %v2158 = vpop.permute.xlu0 %2157
    %v2160 = vmul.f32 %v2146, %v2128
    %v2161 = vmul.f32 %v2146, %v2129
    %v2162 = vmul.f32 %v2146, %v2130
    %v2163 = vmul.f32 %v2146, %v2131
    %v2164 = vmul.f32 %v2150, %v2132
    %v2165 = vmul.f32 %v2150, %v2133
    %v2166 = vmul.f32 %v2150, %v2134
    %v2167 = vmul.f32 %v2150, %v2135
    %v2168 = vmul.f32 %v2154, %v2136
    %v2169 = vmul.f32 %v2154, %v2137
    %v2170 = vmul.f32 %v2154, %v2138
    %v2171 = vmul.f32 %v2154, %v2139
    %v2172 = vmul.f32 %v2158, %v2140
    %v2173 = vmul.f32 %v2158, %v2141
    %v2174 = vmul.f32 %v2158, %v2142
    %v2175 = vmul.f32 %v2158, %v2143
    %v2176 = vadd.f32 %v1904, %v2160
    %v2177 = vadd.f32 %v1905, %v2161
    %v2178 = vadd.f32 %v1906, %v2162
    %v2179 = vadd.f32 %v1907, %v2163
    %v2180 = vadd.f32 %v1908, %v2164
    %v2181 = vadd.f32 %v1909, %v2165
    %v2182 = vadd.f32 %v1910, %v2166
    %v2183 = vadd.f32 %v1911, %v2167
    %v2184 = vadd.f32 %v1912, %v2168
    %v2185 = vadd.f32 %v1913, %v2169
    %v2186 = vadd.f32 %v1914, %v2170
    %v2187 = vadd.f32 %v1915, %v2171
    %v2188 = vadd.f32 %v1916, %v2172
    %v2189 = vadd.f32 %v1917, %v2173
    %v2190 = vadd.f32 %v1918, %v2174
    %v2191 = vadd.f32 %v1919, %v2175
    %2192 = vrot.lane.b32.xlu0 %v335, 96
    %v2193 = vpop.permute.xlu0 %2192
    %2194 = vrot.lane.b32.xlu0 %v339, 96
    %v2195 = vpop.permute.xlu0 %2194
    %2196 = vrot.lane.b32.xlu0 %v343, 96
    %v2197 = vpop.permute.xlu0 %2196
    %2198 = vrot.lane.b32.xlu0 %v347, 96
    %v2199 = vpop.permute.xlu0 %2198
    %2200 = vrot.lane.b32.xlu0 %v336, 96
    %v2201 = vpop.permute.xlu0 %2200
    %2202 = vrot.lane.b32.xlu0 %v340, 96
    %v2203 = vpop.permute.xlu0 %2202
    %2204 = vrot.lane.b32.xlu0 %v344, 96
    %v2205 = vpop.permute.xlu0 %2204
    %2206 = vrot.lane.b32.xlu0 %v348, 96
    %v2207 = vpop.permute.xlu0 %2206
    %2208 = vrot.lane.b32.xlu0 %v337, 96
    %v2209 = vpop.permute.xlu0 %2208
    %2210 = vrot.lane.b32.xlu0 %v341, 96
    %v2211 = vpop.permute.xlu0 %2210
    %2212 = vrot.lane.b32.xlu0 %v345, 96
    %v2213 = vpop.permute.xlu0 %2212
    %2214 = vrot.lane.b32.xlu0 %v349, 96
    %v2215 = vpop.permute.xlu0 %2214
    %2216 = vrot.lane.b32.xlu0 %v338, 96
    %v2217 = vpop.permute.xlu0 %2216
    %2218 = vrot.lane.b32.xlu0 %v342, 96
    %v2219 = vpop.permute.xlu0 %2218
    %2220 = vrot.lane.b32.xlu0 %v346, 96
    %v2221 = vpop.permute.xlu0 %2220
    %2222 = vrot.lane.b32.xlu0 %v350, 96
    %v2223 = vpop.permute.xlu0 %2222
    %vm2224 = vcmp.lt.s32.totalorder %v456, 96
    %v2225 = vsel %vm2224, %v2209, %v2217
    %v2226 = vsel %vm2224, %v2211, %v2219
    %v2227 = vsel %vm2224, %v2213, %v2221
    %v2228 = vsel %vm2224, %v2215, %v2223
    %v2229 = vsel %vm2224, %v2201, %v2209
    %v2230 = vsel %vm2224, %v2203, %v2211
    %v2231 = vsel %vm2224, %v2205, %v2213
    %v2232 = vsel %vm2224, %v2207, %v2215
    %v2233 = vsel %vm2224, %v2193, %v2201
    %v2234 = vsel %vm2224, %v2195, %v2203
    %v2235 = vsel %vm2224, %v2197, %v2205
    %v2236 = vsel %vm2224, %v2199, %v2207
    %v2237 = vsel %vm2224, %v2217, %v2193
    %v2238 = vsel %vm2224, %v2219, %v2195
    %v2239 = vsel %vm2224, %v2221, %v2197
    %v2240 = vsel %vm2224, %v2223, %v2199
    %s2241 = scalar_lea.vmem %s3, 64
    %v2242 = vld [vmem:[%s2241] ss:$8 sm:$0xf]
    %v2244 = vlaneseq
    %v2245 = vshrl.u32 %v2244, 7
    %v2246 = vsub.s32 0, %v2245
    %v2247 = vrot.slane %v2242, %v2246
    %v2248 = vlaneseq
    %v2249 = vshrl.u32 %v2248, 7
    %v2250 = vsub.s32 1, %v2249
    %v2251 = vrot.slane %v2242, %v2250
    %v2252 = vlaneseq
    %v2253 = vshrl.u32 %v2252, 7
    %v2254 = vsub.s32 2, %v2253
    %v2255 = vrot.slane %v2242, %v2254
    %v2256 = vlaneseq
    %v2257 = vshrl.u32 %v2256, 7
    %v2258 = vsub.s32 3, %v2257
    %v2259 = vrot.slane %v2242, %v2258
    %v2264 = vmul.f32 %v2233, %v2247
    %v2265 = vmul.f32 %v2229, %v2251
    %v2266 = vmul.f32 %v2225, %v2255
    %v2267 = vmul.f32 %v2237, %v2259
    %v2268 = vmul.f32 %v2234, %v2247
    %v2269 = vmul.f32 %v2230, %v2251
    %v2270 = vmul.f32 %v2226, %v2255
    %v2271 = vmul.f32 %v2238, %v2259
    %v2272 = vmul.f32 %v2235, %v2247
    %v2273 = vmul.f32 %v2231, %v2251
    %v2274 = vmul.f32 %v2227, %v2255
    %v2275 = vmul.f32 %v2239, %v2259
    %v2276 = vmul.f32 %v2236, %v2247
    %v2277 = vmul.f32 %v2232, %v2251
    %v2278 = vmul.f32 %v2228, %v2255
    %v2279 = vmul.f32 %v2240, %v2259
    %2280 = vset.pattern.permute.xlu0 16
    %2281 = vperm.xlu0 %2280, %v351
    %v2282 = vpop.permute.xlu0 %2281
    %2284 = vset.pattern.permute.xlu0 16
    %2285 = vperm.xlu0 %2284, %v352
    %v2286 = vpop.permute.xlu0 %2285
    %2288 = vset.pattern.permute.xlu0 16
    %2289 = vperm.xlu0 %2288, %v353
    %v2290 = vpop.permute.xlu0 %2289
    %2292 = vset.pattern.permute.xlu0 16
    %2293 = vperm.xlu0 %2292, %v354
    %v2294 = vpop.permute.xlu0 %2293
    %v2296 = vmul.f32 %v2282, %v2264
    %v2297 = vmul.f32 %v2282, %v2265
    %v2298 = vmul.f32 %v2282, %v2266
    %v2299 = vmul.f32 %v2282, %v2267
    %v2300 = vmul.f32 %v2286, %v2268
    %v2301 = vmul.f32 %v2286, %v2269
    %v2302 = vmul.f32 %v2286, %v2270
    %v2303 = vmul.f32 %v2286, %v2271
    %v2304 = vmul.f32 %v2290, %v2272
    %v2305 = vmul.f32 %v2290, %v2273
    %v2306 = vmul.f32 %v2290, %v2274
    %v2307 = vmul.f32 %v2290, %v2275
    %v2308 = vmul.f32 %v2294, %v2276
    %v2309 = vmul.f32 %v2294, %v2277
    %v2310 = vmul.f32 %v2294, %v2278
    %v2311 = vmul.f32 %v2294, %v2279
    %v2312 = vadd.f32 %v2040, %v2296
    %v2313 = vadd.f32 %v2041, %v2297
    %v2314 = vadd.f32 %v2042, %v2298
    %v2315 = vadd.f32 %v2043, %v2299
    %v2316 = vadd.f32 %v2044, %v2300
    %v2317 = vadd.f32 %v2045, %v2301
    %v2318 = vadd.f32 %v2046, %v2302
    %v2319 = vadd.f32 %v2047, %v2303
    %v2320 = vadd.f32 %v2048, %v2304
    %v2321 = vadd.f32 %v2049, %v2305
    %v2322 = vadd.f32 %v2050, %v2306
    %v2323 = vadd.f32 %v2051, %v2307
    %v2324 = vadd.f32 %v2052, %v2308
    %v2325 = vadd.f32 %v2053, %v2309
    %v2326 = vadd.f32 %v2054, %v2310
    %v2327 = vadd.f32 %v2055, %v2311
    %2328 = vrot.lane.b32.xlu0 %v335, 111
    %v2329 = vpop.permute.xlu0 %2328
    %2330 = vrot.lane.b32.xlu0 %v339, 111
    %v2331 = vpop.permute.xlu0 %2330
    %2332 = vrot.lane.b32.xlu0 %v343, 111
    %v2333 = vpop.permute.xlu0 %2332
    %2334 = vrot.lane.b32.xlu0 %v347, 111
    %v2335 = vpop.permute.xlu0 %2334
    %2336 = vrot.lane.b32.xlu0 %v336, 111
    %v2337 = vpop.permute.xlu0 %2336
    %2338 = vrot.lane.b32.xlu0 %v340, 111
    %v2339 = vpop.permute.xlu0 %2338
    %2340 = vrot.lane.b32.xlu0 %v344, 111
    %v2341 = vpop.permute.xlu0 %2340
    %2342 = vrot.lane.b32.xlu0 %v348, 111
    %v2343 = vpop.permute.xlu0 %2342
    %2344 = vrot.lane.b32.xlu0 %v337, 111
    %v2345 = vpop.permute.xlu0 %2344
    %2346 = vrot.lane.b32.xlu0 %v341, 111
    %v2347 = vpop.permute.xlu0 %2346
    %2348 = vrot.lane.b32.xlu0 %v345, 111
    %v2349 = vpop.permute.xlu0 %2348
    %2350 = vrot.lane.b32.xlu0 %v349, 111
    %v2351 = vpop.permute.xlu0 %2350
    %2352 = vrot.lane.b32.xlu0 %v338, 111
    %v2353 = vpop.permute.xlu0 %2352
    %2354 = vrot.lane.b32.xlu0 %v342, 111
    %v2355 = vpop.permute.xlu0 %2354
    %2356 = vrot.lane.b32.xlu0 %v346, 111
    %v2357 = vpop.permute.xlu0 %2356
    %2358 = vrot.lane.b32.xlu0 %v350, 111
    %v2359 = vpop.permute.xlu0 %2358
    %vm2360 = vcmp.lt.s32.totalorder %v456, 111
    %v2361 = vsel %vm2360, %v2345, %v2353
    %v2362 = vsel %vm2360, %v2347, %v2355
    %v2363 = vsel %vm2360, %v2349, %v2357
    %v2364 = vsel %vm2360, %v2351, %v2359
    %v2365 = vsel %vm2360, %v2337, %v2345
    %v2366 = vsel %vm2360, %v2339, %v2347
    %v2367 = vsel %vm2360, %v2341, %v2349
    %v2368 = vsel %vm2360, %v2343, %v2351
    %v2369 = vsel %vm2360, %v2329, %v2337
    %v2370 = vsel %vm2360, %v2331, %v2339
    %v2371 = vsel %vm2360, %v2333, %v2341
    %v2372 = vsel %vm2360, %v2335, %v2343
    %v2373 = vsel %vm2360, %v2353, %v2329
    %v2374 = vsel %vm2360, %v2355, %v2331
    %v2375 = vsel %vm2360, %v2357, %v2333
    %v2376 = vsel %vm2360, %v2359, %v2335
    %s2377 = scalar_lea.vmem %s3, 32
    %v2378 = vld [vmem:[%s2377] ss:$8 sm:$0xf]
    %v2380 = vlaneseq
    %v2381 = vshrl.u32 %v2380, 7
    %v2382 = vsub.s32 0, %v2381
    %v2383 = vrot.slane %v2378, %v2382
    %v2384 = vlaneseq
    %v2385 = vshrl.u32 %v2384, 7
    %v2386 = vsub.s32 1, %v2385
    %v2387 = vrot.slane %v2378, %v2386
    %v2388 = vlaneseq
    %v2389 = vshrl.u32 %v2388, 7
    %v2390 = vsub.s32 2, %v2389
    %v2391 = vrot.slane %v2378, %v2390
    %v2392 = vlaneseq
    %v2393 = vshrl.u32 %v2392, 7
    %v2394 = vsub.s32 3, %v2393
    %v2395 = vrot.slane %v2378, %v2394
    %v2400 = vmul.f32 %v2369, %v2383
    %v2401 = vmul.f32 %v2365, %v2387
    %v2402 = vmul.f32 %v2361, %v2391
    %v2403 = vmul.f32 %v2373, %v2395
    %v2404 = vmul.f32 %v2370, %v2383
    %v2405 = vmul.f32 %v2366, %v2387
    %v2406 = vmul.f32 %v2362, %v2391
    %v2407 = vmul.f32 %v2374, %v2395
    %v2408 = vmul.f32 %v2371, %v2383
    %v2409 = vmul.f32 %v2367, %v2387
    %v2410 = vmul.f32 %v2363, %v2391
    %v2411 = vmul.f32 %v2375, %v2395
    %v2412 = vmul.f32 %v2372, %v2383
    %v2413 = vmul.f32 %v2368, %v2387
    %v2414 = vmul.f32 %v2364, %v2391
    %v2415 = vmul.f32 %v2376, %v2395
    %2416 = vset.pattern.permute.xlu0 8
    %2417 = vperm.xlu0 %2416, %v351
    %v2418 = vpop.permute.xlu0 %2417
    %2420 = vset.pattern.permute.xlu0 8
    %2421 = vperm.xlu0 %2420, %v352
    %v2422 = vpop.permute.xlu0 %2421
    %2424 = vset.pattern.permute.xlu0 8
    %2425 = vperm.xlu0 %2424, %v353
    %v2426 = vpop.permute.xlu0 %2425
    %2428 = vset.pattern.permute.xlu0 8
    %2429 = vperm.xlu0 %2428, %v354
    %v2430 = vpop.permute.xlu0 %2429
    %v2432 = vmul.f32 %v2418, %v2400
    %v2433 = vmul.f32 %v2418, %v2401
    %v2434 = vmul.f32 %v2418, %v2402
    %v2435 = vmul.f32 %v2418, %v2403
    %v2436 = vmul.f32 %v2422, %v2404
    %v2437 = vmul.f32 %v2422, %v2405
    %v2438 = vmul.f32 %v2422, %v2406
    %v2439 = vmul.f32 %v2422, %v2407
    %v2440 = vmul.f32 %v2426, %v2408
    %v2441 = vmul.f32 %v2426, %v2409
    %v2442 = vmul.f32 %v2426, %v2410
    %v2443 = vmul.f32 %v2426, %v2411
    %v2444 = vmul.f32 %v2430, %v2412
    %v2445 = vmul.f32 %v2430, %v2413
    %v2446 = vmul.f32 %v2430, %v2414
    %v2447 = vmul.f32 %v2430, %v2415
    %v2448 = vadd.f32 %v2176, %v2432
    %v2449 = vadd.f32 %v2177, %v2433
    %v2450 = vadd.f32 %v2178, %v2434
    %v2451 = vadd.f32 %v2179, %v2435
    %v2452 = vadd.f32 %v2180, %v2436
    %v2453 = vadd.f32 %v2181, %v2437
    %v2454 = vadd.f32 %v2182, %v2438
    %v2455 = vadd.f32 %v2183, %v2439
    %v2456 = vadd.f32 %v2184, %v2440
    %v2457 = vadd.f32 %v2185, %v2441
    %v2458 = vadd.f32 %v2186, %v2442
    %v2459 = vadd.f32 %v2187, %v2443
    %v2460 = vadd.f32 %v2188, %v2444
    %v2461 = vadd.f32 %v2189, %v2445
    %v2462 = vadd.f32 %v2190, %v2446
    %v2463 = vadd.f32 %v2191, %v2447
    %2464 = vrot.lane.b32.xlu0 %v335, 94
    %v2465 = vpop.permute.xlu0 %2464
    %2466 = vrot.lane.b32.xlu0 %v339, 94
    %v2467 = vpop.permute.xlu0 %2466
    %2468 = vrot.lane.b32.xlu0 %v343, 94
    %v2469 = vpop.permute.xlu0 %2468
    %2470 = vrot.lane.b32.xlu0 %v347, 94
    %v2471 = vpop.permute.xlu0 %2470
    %2472 = vrot.lane.b32.xlu0 %v336, 94
    %v2473 = vpop.permute.xlu0 %2472
    %2474 = vrot.lane.b32.xlu0 %v340, 94
    %v2475 = vpop.permute.xlu0 %2474
    %2476 = vrot.lane.b32.xlu0 %v344, 94
    %v2477 = vpop.permute.xlu0 %2476
    %2478 = vrot.lane.b32.xlu0 %v348, 94
    %v2479 = vpop.permute.xlu0 %2478
    %2480 = vrot.lane.b32.xlu0 %v337, 94
    %v2481 = vpop.permute.xlu0 %2480
    %2482 = vrot.lane.b32.xlu0 %v341, 94
    %v2483 = vpop.permute.xlu0 %2482
    %2484 = vrot.lane.b32.xlu0 %v345, 94
    %v2485 = vpop.permute.xlu0 %2484
    %2486 = vrot.lane.b32.xlu0 %v349, 94
    %v2487 = vpop.permute.xlu0 %2486
    %2488 = vrot.lane.b32.xlu0 %v338, 94
    %v2489 = vpop.permute.xlu0 %2488
    %2490 = vrot.lane.b32.xlu0 %v342, 94
    %v2491 = vpop.permute.xlu0 %2490
    %2492 = vrot.lane.b32.xlu0 %v346, 94
    %v2493 = vpop.permute.xlu0 %2492
    %2494 = vrot.lane.b32.xlu0 %v350, 94
    %v2495 = vpop.permute.xlu0 %2494
    %vm2496 = vcmp.lt.s32.totalorder %v456, 94
    %v2497 = vsel %vm2496, %v2481, %v2489
    %v2498 = vsel %vm2496, %v2483, %v2491
    %v2499 = vsel %vm2496, %v2485, %v2493
    %v2500 = vsel %vm2496, %v2487, %v2495
    %v2501 = vsel %vm2496, %v2473, %v2481
    %v2502 = vsel %vm2496, %v2475, %v2483
    %v2503 = vsel %vm2496, %v2477, %v2485
    %v2504 = vsel %vm2496, %v2479, %v2487
    %v2505 = vsel %vm2496, %v2465, %v2473
    %v2506 = vsel %vm2496, %v2467, %v2475
    %v2507 = vsel %vm2496, %v2469, %v2477
    %v2508 = vsel %vm2496, %v2471, %v2479
    %v2509 = vsel %vm2496, %v2489, %v2465
    %v2510 = vsel %vm2496, %v2491, %v2467
    %v2511 = vsel %vm2496, %v2493, %v2469
    %v2512 = vsel %vm2496, %v2495, %v2471
    %s2513 = scalar_lea.vmem %s3, 65
    %v2514 = vld [vmem:[%s2513] ss:$8 sm:$0xf]
    %v2516 = vlaneseq
    %v2517 = vshrl.u32 %v2516, 7
    %v2518 = vsub.s32 0, %v2517
    %v2519 = vrot.slane %v2514, %v2518
    %v2520 = vlaneseq
    %v2521 = vshrl.u32 %v2520, 7
    %v2522 = vsub.s32 1, %v2521
    %v2523 = vrot.slane %v2514, %v2522
    %v2524 = vlaneseq
    %v2525 = vshrl.u32 %v2524, 7
    %v2526 = vsub.s32 2, %v2525
    %v2527 = vrot.slane %v2514, %v2526
    %v2528 = vlaneseq
    %v2529 = vshrl.u32 %v2528, 7
    %v2530 = vsub.s32 3, %v2529
    %v2531 = vrot.slane %v2514, %v2530
    %v2536 = vmul.f32 %v2505, %v2519
    %v2537 = vmul.f32 %v2501, %v2523
    %v2538 = vmul.f32 %v2497, %v2527
    %v2539 = vmul.f32 %v2509, %v2531
    %v2540 = vmul.f32 %v2506, %v2519
    %v2541 = vmul.f32 %v2502, %v2523
    %v2542 = vmul.f32 %v2498, %v2527
    %v2543 = vmul.f32 %v2510, %v2531
    %v2544 = vmul.f32 %v2507, %v2519
    %v2545 = vmul.f32 %v2503, %v2523
    %v2546 = vmul.f32 %v2499, %v2527
    %v2547 = vmul.f32 %v2511, %v2531
    %v2548 = vmul.f32 %v2508, %v2519
    %v2549 = vmul.f32 %v2504, %v2523
    %v2550 = vmul.f32 %v2500, %v2527
    %v2551 = vmul.f32 %v2512, %v2531
    %2552 = vset.pattern.permute.xlu0 17
    %2553 = vperm.xlu0 %2552, %v351
    %v2554 = vpop.permute.xlu0 %2553
    %2556 = vset.pattern.permute.xlu0 17
    %2557 = vperm.xlu0 %2556, %v352
    %v2558 = vpop.permute.xlu0 %2557
    %2560 = vset.pattern.permute.xlu0 17
    %2561 = vperm.xlu0 %2560, %v353
    %v2562 = vpop.permute.xlu0 %2561
    %2564 = vset.pattern.permute.xlu0 17
    %2565 = vperm.xlu0 %2564, %v354
    %v2566 = vpop.permute.xlu0 %2565
    %v2568 = vmul.f32 %v2554, %v2536
    %v2569 = vmul.f32 %v2554, %v2537
    %v2570 = vmul.f32 %v2554, %v2538
    %v2571 = vmul.f32 %v2554, %v2539
    %v2572 = vmul.f32 %v2558, %v2540
    %v2573 = vmul.f32 %v2558, %v2541
    %v2574 = vmul.f32 %v2558, %v2542
    %v2575 = vmul.f32 %v2558, %v2543
    %v2576 = vmul.f32 %v2562, %v2544
    %v2577 = vmul.f32 %v2562, %v2545
    %v2578 = vmul.f32 %v2562, %v2546
    %v2579 = vmul.f32 %v2562, %v2547
    %v2580 = vmul.f32 %v2566, %v2548
    %v2581 = vmul.f32 %v2566, %v2549
    %v2582 = vmul.f32 %v2566, %v2550
    %v2583 = vmul.f32 %v2566, %v2551
    %v2584 = vadd.f32 %v2312, %v2568
    %v2585 = vadd.f32 %v2313, %v2569
    %v2586 = vadd.f32 %v2314, %v2570
    %v2587 = vadd.f32 %v2315, %v2571
    %v2588 = vadd.f32 %v2316, %v2572
    %v2589 = vadd.f32 %v2317, %v2573
    %v2590 = vadd.f32 %v2318, %v2574
    %v2591 = vadd.f32 %v2319, %v2575
    %v2592 = vadd.f32 %v2320, %v2576
    %v2593 = vadd.f32 %v2321, %v2577
    %v2594 = vadd.f32 %v2322, %v2578
    %v2595 = vadd.f32 %v2323, %v2579
    %v2596 = vadd.f32 %v2324, %v2580
    %v2597 = vadd.f32 %v2325, %v2581
    %v2598 = vadd.f32 %v2326, %v2582
    %v2599 = vadd.f32 %v2327, %v2583
    %2600 = vset.pattern.permute.xlu0 0
    %2601 = vperm.xlu0 %2600, %v47
    %v2602 = vpop.permute.xlu0 %2601
    %2604 = vset.pattern.permute.xlu0 0
    %2605 = vperm.xlu0 %2604, %v48
    %v2606 = vpop.permute.xlu0 %2605
    %2608 = vset.pattern.permute.xlu0 0
    %2609 = vperm.xlu0 %2608, %v49
    %v2610 = vpop.permute.xlu0 %2609
    %2612 = vset.pattern.permute.xlu0 0
    %2613 = vperm.xlu0 %2612, %v50
    %v2614 = vpop.permute.xlu0 %2613
    %v2616 = vmul.f32 %v2448, %v2602
    %v2617 = vmul.f32 %v2449, %v2602
    %v2618 = vmul.f32 %v2450, %v2602
    %v2619 = vmul.f32 %v2451, %v2602
    %v2620 = vmul.f32 %v2452, %v2606
    %v2621 = vmul.f32 %v2453, %v2606
    %v2622 = vmul.f32 %v2454, %v2606
    %v2623 = vmul.f32 %v2455, %v2606
    %v2624 = vmul.f32 %v2456, %v2610
    %v2625 = vmul.f32 %v2457, %v2610
    %v2626 = vmul.f32 %v2458, %v2610
    %v2627 = vmul.f32 %v2459, %v2610
    %v2628 = vmul.f32 %v2460, %v2614
    %v2629 = vmul.f32 %v2461, %v2614
    %v2630 = vmul.f32 %v2462, %v2614
    %v2631 = vmul.f32 %v2463, %v2614
    %2632 = vset.pattern.permute.xlu0 1
    %2633 = vperm.xlu0 %2632, %v47
    %v2634 = vpop.permute.xlu0 %2633
    %2636 = vset.pattern.permute.xlu0 1
    %2637 = vperm.xlu0 %2636, %v48
    %v2638 = vpop.permute.xlu0 %2637
    %2640 = vset.pattern.permute.xlu0 1
    %2641 = vperm.xlu0 %2640, %v49
    %v2642 = vpop.permute.xlu0 %2641
    %2644 = vset.pattern.permute.xlu0 1
    %2645 = vperm.xlu0 %2644, %v50
    %v2646 = vpop.permute.xlu0 %2645
    %v2648 = vadd.f32 %v2616, %v2634
    %v2649 = vadd.f32 %v2617, %v2634
    %v2650 = vadd.f32 %v2618, %v2634
    %v2651 = vadd.f32 %v2619, %v2634
    %v2652 = vadd.f32 %v2620, %v2638
    %v2653 = vadd.f32 %v2621, %v2638
    %v2654 = vadd.f32 %v2622, %v2638
    %v2655 = vadd.f32 %v2623, %v2638
    %v2656 = vadd.f32 %v2624, %v2642
    %v2657 = vadd.f32 %v2625, %v2642
    %v2658 = vadd.f32 %v2626, %v2642
    %v2659 = vadd.f32 %v2627, %v2642
    %v2660 = vadd.f32 %v2628, %v2646
    %v2661 = vadd.f32 %v2629, %v2646
    %v2662 = vadd.f32 %v2630, %v2646
    %v2663 = vadd.f32 %v2631, %v2646
    %2665 = vset.pattern.permute.xlu0 0
    %2666 = vperm.xlu0 %2665, %v51
    %v2667 = vpop.permute.xlu0 %2666
    %2670 = vset.pattern.permute.xlu0 0
    %2671 = vperm.xlu0 %2670, %v52
    %v2672 = vpop.permute.xlu0 %2671
    %2675 = vset.pattern.permute.xlu0 0
    %2676 = vperm.xlu0 %2675, %v53
    %v2677 = vpop.permute.xlu0 %2676
    %2680 = vset.pattern.permute.xlu0 0
    %2681 = vperm.xlu0 %2680, %v54
    %v2682 = vpop.permute.xlu0 %2681
    %v2684 = vmul.f32 %v2584, %v2667
    %v2685 = vmul.f32 %v2585, %v2667
    %v2686 = vmul.f32 %v2586, %v2667
    %v2687 = vmul.f32 %v2587, %v2667
    %v2688 = vmul.f32 %v2588, %v2672
    %v2689 = vmul.f32 %v2589, %v2672
    %v2690 = vmul.f32 %v2590, %v2672
    %v2691 = vmul.f32 %v2591, %v2672
    %v2692 = vmul.f32 %v2592, %v2677
    %v2693 = vmul.f32 %v2593, %v2677
    %v2694 = vmul.f32 %v2594, %v2677
    %v2695 = vmul.f32 %v2595, %v2677
    %v2696 = vmul.f32 %v2596, %v2682
    %v2697 = vmul.f32 %v2597, %v2682
    %v2698 = vmul.f32 %v2598, %v2682
    %v2699 = vmul.f32 %v2599, %v2682
    %2700 = vset.pattern.permute.xlu0 1
    %2701 = vperm.xlu0 %2700, %v51
    %v2702 = vpop.permute.xlu0 %2701
    %2704 = vset.pattern.permute.xlu0 1
    %2705 = vperm.xlu0 %2704, %v52
    %v2706 = vpop.permute.xlu0 %2705
    %2708 = vset.pattern.permute.xlu0 1
    %2709 = vperm.xlu0 %2708, %v53
    %v2710 = vpop.permute.xlu0 %2709
    %2712 = vset.pattern.permute.xlu0 1
    %2713 = vperm.xlu0 %2712, %v54
    %v2714 = vpop.permute.xlu0 %2713
    %v2716 = vadd.f32 %v2684, %v2702
    %v2717 = vadd.f32 %v2685, %v2702
    %v2718 = vadd.f32 %v2686, %v2702
    %v2719 = vadd.f32 %v2687, %v2702
    %v2720 = vadd.f32 %v2688, %v2706
    %v2721 = vadd.f32 %v2689, %v2706
    %v2722 = vadd.f32 %v2690, %v2706
    %v2723 = vadd.f32 %v2691, %v2706
    %v2724 = vadd.f32 %v2692, %v2710
    %v2725 = vadd.f32 %v2693, %v2710
    %v2726 = vadd.f32 %v2694, %v2710
    %v2727 = vadd.f32 %v2695, %v2710
    %v2728 = vadd.f32 %v2696, %v2714
    %v2729 = vadd.f32 %v2697, %v2714
    %v2730 = vadd.f32 %v2698, %v2714
    %v2731 = vadd.f32 %v2699, %v2714
    %vm2732 = vcmp.ge.f32.partialorder %v2648, 0.0
    %vm2733 = vcmp.ge.f32.partialorder %v2649, 0.0
    %vm2734 = vcmp.ge.f32.partialorder %v2650, 0.0
    %vm2735 = vcmp.ge.f32.partialorder %v2651, 0.0
    %vm2736 = vcmp.ge.f32.partialorder %v2652, 0.0
    %vm2737 = vcmp.ge.f32.partialorder %v2653, 0.0
    %vm2738 = vcmp.ge.f32.partialorder %v2654, 0.0
    %vm2739 = vcmp.ge.f32.partialorder %v2655, 0.0
    %vm2740 = vcmp.ge.f32.partialorder %v2656, 0.0
    %vm2741 = vcmp.ge.f32.partialorder %v2657, 0.0
    %vm2742 = vcmp.ge.f32.partialorder %v2658, 0.0
    %vm2743 = vcmp.ge.f32.partialorder %v2659, 0.0
    %vm2744 = vcmp.ge.f32.partialorder %v2660, 0.0
    %vm2745 = vcmp.ge.f32.partialorder %v2661, 0.0
    %vm2746 = vcmp.ge.f32.partialorder %v2662, 0.0
    %vm2747 = vcmp.ge.f32.partialorder %v2663, 0.0
    %v2748 = vstv %s46
    %v2749 = vmul.f32 %v2748, %v2648
    %v2750 = vmul.f32 %v2748, %v2649
    %v2751 = vmul.f32 %v2748, %v2650
    %v2752 = vmul.f32 %v2748, %v2651
    %v2753 = vmul.f32 %v2748, %v2652
    %v2754 = vmul.f32 %v2748, %v2653
    %v2755 = vmul.f32 %v2748, %v2654
    %v2756 = vmul.f32 %v2748, %v2655
    %v2757 = vmul.f32 %v2748, %v2656
    %v2758 = vmul.f32 %v2748, %v2657
    %v2759 = vmul.f32 %v2748, %v2658
    %v2760 = vmul.f32 %v2748, %v2659
    %v2761 = vmul.f32 %v2748, %v2660
    %v2762 = vmul.f32 %v2748, %v2661
    %v2763 = vmul.f32 %v2748, %v2662
    %v2764 = vmul.f32 %v2748, %v2663
    %v2765 = vsel %vm2732, %v2648, %v2749
    %v2766 = vsel %vm2733, %v2649, %v2750
    %v2767 = vsel %vm2734, %v2650, %v2751
    %v2768 = vsel %vm2735, %v2651, %v2752
    %v2769 = vsel %vm2736, %v2652, %v2753
    %v2770 = vsel %vm2737, %v2653, %v2754
    %v2771 = vsel %vm2738, %v2654, %v2755
    %v2772 = vsel %vm2739, %v2655, %v2756
    %v2773 = vsel %vm2740, %v2656, %v2757
    %v2774 = vsel %vm2741, %v2657, %v2758
    %v2775 = vsel %vm2742, %v2658, %v2759
    %v2776 = vsel %vm2743, %v2659, %v2760
    %v2777 = vsel %vm2744, %v2660, %v2761
    %v2778 = vsel %vm2745, %v2661, %v2762
    %v2779 = vsel %vm2746, %v2662, %v2763
    %v2780 = vsel %vm2747, %v2663, %v2764
    %vm2781 = vcmp.ge.f32.partialorder %v2716, 0.0
    %vm2782 = vcmp.ge.f32.partialorder %v2717, 0.0
    %vm2783 = vcmp.ge.f32.partialorder %v2718, 0.0
    %vm2784 = vcmp.ge.f32.partialorder %v2719, 0.0
    %vm2785 = vcmp.ge.f32.partialorder %v2720, 0.0
    %vm2786 = vcmp.ge.f32.partialorder %v2721, 0.0
    %vm2787 = vcmp.ge.f32.partialorder %v2722, 0.0
    %vm2788 = vcmp.ge.f32.partialorder %v2723, 0.0
    %vm2789 = vcmp.ge.f32.partialorder %v2724, 0.0
    %vm2790 = vcmp.ge.f32.partialorder %v2725, 0.0
    %vm2791 = vcmp.ge.f32.partialorder %v2726, 0.0
    %vm2792 = vcmp.ge.f32.partialorder %v2727, 0.0
    %vm2793 = vcmp.ge.f32.partialorder %v2728, 0.0
    %vm2794 = vcmp.ge.f32.partialorder %v2729, 0.0
    %vm2795 = vcmp.ge.f32.partialorder %v2730, 0.0
    %vm2796 = vcmp.ge.f32.partialorder %v2731, 0.0
    %v2797 = vmul.f32 %v2748, %v2716
    %v2798 = vmul.f32 %v2748, %v2717
    %v2799 = vmul.f32 %v2748, %v2718
    %v2800 = vmul.f32 %v2748, %v2719
    %v2801 = vmul.f32 %v2748, %v2720
    %v2802 = vmul.f32 %v2748, %v2721
    %v2803 = vmul.f32 %v2748, %v2722
    %v2804 = vmul.f32 %v2748, %v2723
    %v2805 = vmul.f32 %v2748, %v2724
    %v2806 = vmul.f32 %v2748, %v2725
    %v2807 = vmul.f32 %v2748, %v2726
    %v2808 = vmul.f32 %v2748, %v2727
    %v2809 = vmul.f32 %v2748, %v2728
    %v2810 = vmul.f32 %v2748, %v2729
    %v2811 = vmul.f32 %v2748, %v2730
    %v2812 = vmul.f32 %v2748, %v2731
    %v2813 = vsel %vm2781, %v2716, %v2797
    %v2814 = vsel %vm2782, %v2717, %v2798
    %v2815 = vsel %vm2783, %v2718, %v2799
    %v2816 = vsel %vm2784, %v2719, %v2800
    %v2817 = vsel %vm2785, %v2720, %v2801
    %v2818 = vsel %vm2786, %v2721, %v2802
    %v2819 = vsel %vm2787, %v2722, %v2803
    %v2820 = vsel %vm2788, %v2723, %v2804
    %v2821 = vsel %vm2789, %v2724, %v2805
    %v2822 = vsel %vm2790, %v2725, %v2806
    %v2823 = vsel %vm2791, %v2726, %v2807
    %v2824 = vsel %vm2792, %v2727, %v2808
    %v2825 = vsel %vm2793, %v2728, %v2809
    %v2826 = vsel %vm2794, %v2729, %v2810
    %v2827 = vsel %vm2795, %v2730, %v2811
    %v2828 = vsel %vm2796, %v2731, %v2812
    %v2829 = vld [vmem:[%s6] sm:$0xff]
    %v2830 = vld [vmem:[%s6 + $0x8] sm:$0xff]
    %v2831 = vld [vmem:[%s6 + $0x10] sm:$0xff]
    %v2832 = vld [vmem:[%s6 + $0x18] sm:$0xff]
    %v2833 = vld [vmem:[%s6 + $0x20] sm:$0xff]
    %v2834 = vld [vmem:[%s6 + $0x28] sm:$0xff]
    %v2835 = vld [vmem:[%s6 + $0x30] sm:$0xff]
    %v2836 = vld [vmem:[%s6 + $0x38] sm:$0xff]
    %v2837 = vld [vmem:[%s7] sm:$0x1]
    %v2838 = vld [vmem:[%s8] sm:$0xff]
    %v2839 = vld [vmem:[%s8 + $0x8] sm:$0xff]
    %v2840 = vld [vmem:[%s8 + $0x10] sm:$0xff]
    %v2841 = vld [vmem:[%s8 + $0x18] sm:$0xff]
    %v2842 = vld [vmem:[%s8 + $0x20] sm:$0xff]
    %v2843 = vld [vmem:[%s8 + $0x28] sm:$0xff]
    %v2844 = vld [vmem:[%s8 + $0x30] sm:$0xff]
    %v2845 = vld [vmem:[%s8 + $0x38] sm:$0xff]
    %v2846 = vmax.f32 %v2765, %v2766
    %2847 = vmax.xlane.f32.xlu0 %v2846
    %v2848 = vpop.xlane.xlu0 %2847
    %v2849 = vmax.f32 %v2769, %v2770
    %2850 = vmax.xlane.f32.xlu0 %v2849
    %v2851 = vpop.xlane.xlu0 %2850
    %v2852 = vmax.f32 %v2773, %v2774
    %2853 = vmax.xlane.f32.xlu0 %v2852
    %v2854 = vpop.xlane.xlu0 %2853
    %v2855 = vmax.f32 %v2777, %v2778
    %2856 = vmax.xlane.f32.xlu0 %v2855
    %v2857 = vpop.xlane.xlu0 %2856
    %v2858 = vmax.f32 %v2813, %v2814
    %2859 = vmax.xlane.f32.xlu0 %v2858
    %v2860 = vpop.xlane.xlu0 %2859
    %v2861 = vmax.f32 %v2817, %v2818
    %2862 = vmax.xlane.f32.xlu0 %v2861
    %v2863 = vpop.xlane.xlu0 %2862
    %v2864 = vmax.f32 %v2821, %v2822
    %2865 = vmax.xlane.f32.xlu0 %v2864
    %v2866 = vpop.xlane.xlu0 %2865
    %v2867 = vmax.f32 %v2825, %v2826
    %2868 = vmax.xlane.f32.xlu0 %v2867
    %v2869 = vpop.xlane.xlu0 %2868
    %v2870 = vmul.f32 %v2829, %v2848
    %v2871 = vmul.f32 %v2830, %v2851
    %v2872 = vmul.f32 %v2831, %v2854
    %v2873 = vmul.f32 %v2832, %v2857
    %vm2874 = vcmask 31744
    %v2875 = vsel %vm2874, %v2870, 0.0
    %v2876 = vsel %vm2874, %v2871, 0.0
    %v2877 = vadd.f32 %v2875, %v2876
    %v2878 = vsel %vm2874, %v2872, 0.0
    %v2879 = vadd.f32 %v2877, %v2878
    %v2880 = vsel %vm2874, %v2873, 0.0
    %v2881 = vadd.f32 %v2879, %v2880
    %v2882 = vrot.slane %v2881, 4
    %v2883 = vadd.f32 %v2881, %v2882
    %v2884 = vrot.slane %v2883, 2
    %v2885 = vadd.f32 %v2883, %v2884
    %v2886 = vrot.slane %v2885, 1
    %v2887 = vadd.f32 %v2885, %v2886
    %v2888 = vmul.f32 %v2833, %v2860
    %v2889 = vmul.f32 %v2834, %v2863
    %v2890 = vmul.f32 %v2835, %v2866
    %v2891 = vmul.f32 %v2836, %v2869
    %v2892 = vsel %vm2874, %v2888, 0.0
    %v2893 = vsel %vm2874, %v2889, 0.0
    %v2894 = vadd.f32 %v2892, %v2893
    %v2895 = vsel %vm2874, %v2890, 0.0
    %v2896 = vadd.f32 %v2894, %v2895
    %v2897 = vsel %vm2874, %v2891, 0.0
    %v2898 = vadd.f32 %v2896, %v2897
    %v2899 = vrot.slane %v2898, 4
    %v2900 = vadd.f32 %v2898, %v2899
    %v2901 = vrot.slane %v2900, 2
    %v2902 = vadd.f32 %v2900, %v2901
    %v2903 = vrot.slane %v2902, 1
    %v2904 = vadd.f32 %v2902, %v2903
    %v2905 = vadd.f32 %v2887, %v2904
    %v2906 = vadd.f32 %v2905, %v2837
    %v2907 = vmax.f32 %v2906, 0.0
    %v2908 = vlaneseq
    %v2909 = vshrl.u32 %v2908, 7
    %v2910 = vsub.s32 0, %v2909
    %v2911 = vrot.slane %v2907, %v2910
    %v2912 = vmul.f32 %v2838, %v2911
    %v2913 = vmul.f32 %v2839, %v2911
    %v2914 = vmul.f32 %v2840, %v2911
    %v2915 = vmul.f32 %v2841, %v2911
    %v2916 = vmul.f32 %v2842, %v2911
    %v2917 = vmul.f32 %v2843, %v2911
    %v2918 = vmul.f32 %v2844, %v2911
    %v2919 = vmul.f32 %v2845, %v2911
    %v2920 = vsel %vm2874, %v2912, 0.0
    %2921 = vadd.xlane.f32.xlu0 %v2920
    %v2922 = vpop.xlane.xlu0 %2921
    %v2923 = vsel %vm2874, %v2913, 0.0
    %2924 = vadd.xlane.f32.xlu0 %v2923
    %v2925 = vpop.xlane.xlu0 %2924
    %v2926 = vsel %vm2874, %v2914, 0.0
    %2927 = vadd.xlane.f32.xlu0 %v2926
    %v2928 = vpop.xlane.xlu0 %2927
    %v2929 = vsel %vm2874, %v2915, 0.0
    %2930 = vadd.xlane.f32.xlu0 %v2929
    %v2931 = vpop.xlane.xlu0 %2930
    %v2932 = vsel %vm2874, %v2916, 0.0
    %2933 = vadd.xlane.f32.xlu0 %v2932
    %v2934 = vpop.xlane.xlu0 %2933
    %v2935 = vsel %vm2874, %v2917, 0.0
    %2936 = vadd.xlane.f32.xlu0 %v2935
    %v2937 = vpop.xlane.xlu0 %2936
    %v2938 = vsel %vm2874, %v2918, 0.0
    %2939 = vadd.xlane.f32.xlu0 %v2938
    %v2940 = vpop.xlane.xlu0 %2939
    %v2941 = vsel %vm2874, %v2919, 0.0
    %2942 = vadd.xlane.f32.xlu0 %v2941
    %v2943 = vpop.xlane.xlu0 %2942
    %v2944 = vadd.f32 %v2922, %v47
    %v2945 = vadd.f32 %v2925, %v48
    %v2946 = vadd.f32 %v2928, %v49
    %v2947 = vadd.f32 %v2931, %v50
    %v2948 = vadd.f32 %v2934, %v51
    %v2949 = vadd.f32 %v2937, %v52
    %v2950 = vadd.f32 %v2940, %v53
    %v2951 = vadd.f32 %v2943, %v54
    %v2952 = vxor.u32 %v2944, 2147483648
    %v2953 = vxor.u32 %v2945, 2147483648
    %v2954 = vxor.u32 %v2946, 2147483648
    %v2955 = vxor.u32 %v2947, 2147483648
    %v2956 = vxor.u32 %v2948, 2147483648
    %v2957 = vxor.u32 %v2949, 2147483648
    %v2958 = vxor.u32 %v2950, 2147483648
    %v2959 = vxor.u32 %v2951, 2147483648
    %v2960 = vmul.f32 %v2952, 1.442695
    %v2961 = vpow.pop %v2960
    %v2962 = vmul.f32 %v2953, 1.442695
    %v2963 = vpow.pop %v2962
    %v2964 = vmul.f32 %v2954, 1.442695
    %v2965 = vpow.pop %v2964
    %v2966 = vmul.f32 %v2955, 1.442695
    %v2967 = vpow.pop %v2966
    %v2968 = vmul.f32 %v2956, 1.442695
    %v2969 = vpow.pop %v2968
    %v2970 = vmul.f32 %v2957, 1.442695
    %v2971 = vpow.pop %v2970
    %v2972 = vmul.f32 %v2958, 1.442695
    %v2973 = vpow.pop %v2972
    %v2974 = vmul.f32 %v2959, 1.442695
    %v2975 = vpow.pop %v2974
    %v2976 = vadd.f32 %v2961, 1.0
    %v2977 = vadd.f32 %v2963, 1.0
    %v2978 = vadd.f32 %v2965, 1.0
    %v2979 = vadd.f32 %v2967, 1.0
    %v2980 = vadd.f32 %v2969, 1.0
    %v2981 = vadd.f32 %v2971, 1.0
    %v2982 = vadd.f32 %v2973, 1.0
    %v2983 = vadd.f32 %v2975, 1.0
    %v2984 = vrcp.pop %v2976
    %v2985 = vmul.f32 1.0, %v2984
    %v2986 = vrcp.pop %v2977
    %v2987 = vmul.f32 1.0, %v2986
    %v2988 = vrcp.pop %v2978
    %v2989 = vmul.f32 1.0, %v2988
    %v2990 = vrcp.pop %v2979
    %v2991 = vmul.f32 1.0, %v2990
    %v2992 = vrcp.pop %v2980
    %v2993 = vmul.f32 1.0, %v2992
    %v2994 = vrcp.pop %v2981
    %v2995 = vmul.f32 1.0, %v2994
    %v2996 = vrcp.pop %v2982
    %v2997 = vmul.f32 1.0, %v2996
    %v2998 = vrcp.pop %v2983
    %v2999 = vmul.f32 1.0, %v2998
    %3001 = vset.pattern.permute.xlu0 2
    %3002 = vperm.xlu0 %3001, %v2985
    %v3003 = vpop.permute.xlu0 %3002
    %3006 = vset.pattern.permute.xlu0 2
    %3007 = vperm.xlu0 %3006, %v2987
    %v3008 = vpop.permute.xlu0 %3007
    %3011 = vset.pattern.permute.xlu0 2
    %3012 = vperm.xlu0 %3011, %v2989
    %v3013 = vpop.permute.xlu0 %3012
    %3016 = vset.pattern.permute.xlu0 2
    %3017 = vperm.xlu0 %3016, %v2991
    %v3018 = vpop.permute.xlu0 %3017
    %v3020 = vmul.f32 %v2765, %v3003
    %v3021 = vmul.f32 %v2766, %v3003
    %v3022 = vmul.f32 %v2769, %v3008
    %v3023 = vmul.f32 %v2770, %v3008
    %v3024 = vmul.f32 %v2773, %v3013
    %v3025 = vmul.f32 %v2774, %v3013
    %v3026 = vmul.f32 %v2777, %v3018
    %v3027 = vmul.f32 %v2778, %v3018
    %v3028 = vld [vmem:[%s0] sm:$0xff]
    %v3029 = vld [vmem:[%s0 + $0x8] sm:$0xff]
    %v3030 = vld [vmem:[%s0 + $0x20] sm:$0xff]
    %v3031 = vld [vmem:[%s0 + $0x28] sm:$0xff]
    %v3032 = vld [vmem:[%s0 + $0x40] sm:$0xff]
    %v3033 = vld [vmem:[%s0 + $0x48] sm:$0xff]
    %v3034 = vld [vmem:[%s0 + $0x60] sm:$0xff]
    %v3035 = vld [vmem:[%s0 + $0x68] sm:$0xff]
    %v3036 = vadd.f32 %v3020, %v3028
    %v3037 = vadd.f32 %v3021, %v3029
    %v3038 = vadd.f32 %v3022, %v3030
    %v3039 = vadd.f32 %v3023, %v3031
    %v3040 = vadd.f32 %v3024, %v3032
    %v3041 = vadd.f32 %v3025, %v3033
    %v3042 = vadd.f32 %v3026, %v3034
    %v3043 = vadd.f32 %v3027, %v3035
    %3044 = vst [vmem:[%s9] sm:$0xff] %v3036
    %3045 = vst [vmem:[%s9 + $0x8] sm:$0xff] %v3037
    %3046 = vst [vmem:[%s9 + $0x20] sm:$0xff] %v3038
    %3047 = vst [vmem:[%s9 + $0x28] sm:$0xff] %v3039
    %3048 = vst [vmem:[%s9 + $0x40] sm:$0xff] %v3040
    %3049 = vst [vmem:[%s9 + $0x48] sm:$0xff] %v3041
    %3050 = vst [vmem:[%s9 + $0x60] sm:$0xff] %v3042
    %3051 = vst [vmem:[%s9 + $0x68] sm:$0xff] %v3043
    %3053 = vset.pattern.permute.xlu0 2
    %3054 = vperm.xlu0 %3053, %v2993
    %v3055 = vpop.permute.xlu0 %3054
    %3058 = vset.pattern.permute.xlu0 2
    %3059 = vperm.xlu0 %3058, %v2995
    %v3060 = vpop.permute.xlu0 %3059
    %3063 = vset.pattern.permute.xlu0 2
    %3064 = vperm.xlu0 %3063, %v2997
    %v3065 = vpop.permute.xlu0 %3064
    %3068 = vset.pattern.permute.xlu0 2
    %3069 = vperm.xlu0 %3068, %v2999
    %v3070 = vpop.permute.xlu0 %3069
    %v3072 = vmul.f32 %v2813, %v3055
    %v3073 = vmul.f32 %v2814, %v3055
    %v3074 = vmul.f32 %v2817, %v3060
    %v3075 = vmul.f32 %v2818, %v3060
    %v3076 = vmul.f32 %v2821, %v3065
    %v3077 = vmul.f32 %v2822, %v3065
    %v3078 = vmul.f32 %v2825, %v3070
    %v3079 = vmul.f32 %v2826, %v3070
    %v3080 = vld [vmem:[%s0 + $0x80] sm:$0xff]
    %v3081 = vld [vmem:[%s0 + $0x88] sm:$0xff]
    %v3082 = vld [vmem:[%s0 + $0xa0] sm:$0xff]
    %v3083 = vld [vmem:[%s0 + $0xa8] sm:$0xff]
    %v3084 = vld [vmem:[%s0 + $0xc0] sm:$0xff]
    %v3085 = vld [vmem:[%s0 + $0xc8] sm:$0xff]
    %v3086 = vld [vmem:[%s0 + $0xe0] sm:$0xff]
    %v3087 = vld [vmem:[%s0 + $0xe8] sm:$0xff]
    %v3088 = vadd.f32 %v3072, %v3080
    %v3089 = vadd.f32 %v3073, %v3081
    %v3090 = vadd.f32 %v3074, %v3082
    %v3091 = vadd.f32 %v3075, %v3083
    %v3092 = vadd.f32 %v3076, %v3084
    %v3093 = vadd.f32 %v3077, %v3085
    %v3094 = vadd.f32 %v3078, %v3086
    %v3095 = vadd.f32 %v3079, %v3087
    %3096 = vst [vmem:[%s9 + $0x80] sm:$0xff] %v3088
    %3097 = vst [vmem:[%s9 + $0x88] sm:$0xff] %v3089
    %3098 = vst [vmem:[%s9 + $0xa0] sm:$0xff] %v3090
    %3099 = vst [vmem:[%s9 + $0xa8] sm:$0xff] %v3091
    %3100 = vst [vmem:[%s9 + $0xc0] sm:$0xff] %v3092
    %3101 = vst [vmem:[%s9 + $0xc8] sm:$0xff] %v3093
    %3102 = vst [vmem:[%s9 + $0xe0] sm:$0xff] %v3094
    %3103 = vst [vmem:[%s9 + $0xe8] sm:$0xff] %v3095
    %v3104 = vmax.f32 %v2767, %v2768
    %3105 = vmax.xlane.f32.xlu0 %v3104
    %v3106 = vpop.xlane.xlu0 %3105
    %v3107 = vmax.f32 %v2771, %v2772
    %3108 = vmax.xlane.f32.xlu0 %v3107
    %v3109 = vpop.xlane.xlu0 %3108
    %v3110 = vmax.f32 %v2775, %v2776
    %3111 = vmax.xlane.f32.xlu0 %v3110
    %v3112 = vpop.xlane.xlu0 %3111
    %v3113 = vmax.f32 %v2779, %v2780
    %3114 = vmax.xlane.f32.xlu0 %v3113
    %v3115 = vpop.xlane.xlu0 %3114
    %v3116 = vmax.f32 %v2815, %v2816
    %3117 = vmax.xlane.f32.xlu0 %v3116
    %v3118 = vpop.xlane.xlu0 %3117
    %v3119 = vmax.f32 %v2819, %v2820
    %3120 = vmax.xlane.f32.xlu0 %v3119
    %v3121 = vpop.xlane.xlu0 %3120
    %v3122 = vmax.f32 %v2823, %v2824
    %3123 = vmax.xlane.f32.xlu0 %v3122
    %v3124 = vpop.xlane.xlu0 %3123
    %v3125 = vmax.f32 %v2827, %v2828
    %3126 = vmax.xlane.f32.xlu0 %v3125
    %v3127 = vpop.xlane.xlu0 %3126
    %v3128 = vmul.f32 %v2829, %v3106
    %v3129 = vmul.f32 %v2830, %v3109
    %v3130 = vmul.f32 %v2831, %v3112
    %v3131 = vmul.f32 %v2832, %v3115
    %v3132 = vsel %vm2874, %v3128, 0.0
    %v3133 = vsel %vm2874, %v3129, 0.0
    %v3134 = vadd.f32 %v3132, %v3133
    %v3135 = vsel %vm2874, %v3130, 0.0
    %v3136 = vadd.f32 %v3134, %v3135
    %v3137 = vsel %vm2874, %v3131, 0.0
    %v3138 = vadd.f32 %v3136, %v3137
    %v3139 = vrot.slane %v3138, 4
    %v3140 = vadd.f32 %v3138, %v3139
    %v3141 = vrot.slane %v3140, 2
    %v3142 = vadd.f32 %v3140, %v3141
    %v3143 = vrot.slane %v3142, 1
    %v3144 = vadd.f32 %v3142, %v3143
    %v3145 = vmul.f32 %v2833, %v3118
    %v3146 = vmul.f32 %v2834, %v3121
    %v3147 = vmul.f32 %v2835, %v3124
    %v3148 = vmul.f32 %v2836, %v3127
    %v3149 = vsel %vm2874, %v3145, 0.0
    %v3150 = vsel %vm2874, %v3146, 0.0
    %v3151 = vadd.f32 %v3149, %v3150
    %v3152 = vsel %vm2874, %v3147, 0.0
    %v3153 = vadd.f32 %v3151, %v3152
    %v3154 = vsel %vm2874, %v3148, 0.0
    %v3155 = vadd.f32 %v3153, %v3154
    %v3156 = vrot.slane %v3155, 4
    %v3157 = vadd.f32 %v3155, %v3156
    %v3158 = vrot.slane %v3157, 2
    %v3159 = vadd.f32 %v3157, %v3158
    %v3160 = vrot.slane %v3159, 1
    %v3161 = vadd.f32 %v3159, %v3160
    %v3162 = vadd.f32 %v3144, %v3161
    %v3163 = vadd.f32 %v3162, %v2837
    %v3164 = vmax.f32 %v3163, 0.0
    %v3165 = vlaneseq
    %v3166 = vshrl.u32 %v3165, 7
    %v3167 = vsub.s32 0, %v3166
    %v3168 = vrot.slane %v3164, %v3167
    %v3169 = vmul.f32 %v2838, %v3168
    %v3170 = vmul.f32 %v2839, %v3168
    %v3171 = vmul.f32 %v2840, %v3168
    %v3172 = vmul.f32 %v2841, %v3168
    %v3173 = vmul.f32 %v2842, %v3168
    %v3174 = vmul.f32 %v2843, %v3168
    %v3175 = vmul.f32 %v2844, %v3168
    %v3176 = vmul.f32 %v2845, %v3168
    %v3177 = vsel %vm2874, %v3169, 0.0
    %3178 = vadd.xlane.f32.xlu0 %v3177
    %v3179 = vpop.xlane.xlu0 %3178
    %v3180 = vsel %vm2874, %v3170, 0.0
    %3181 = vadd.xlane.f32.xlu0 %v3180
    %v3182 = vpop.xlane.xlu0 %3181
    %v3183 = vsel %vm2874, %v3171, 0.0
    %3184 = vadd.xlane.f32.xlu0 %v3183
    %v3185 = vpop.xlane.xlu0 %3184
    %v3186 = vsel %vm2874, %v3172, 0.0
    %3187 = vadd.xlane.f32.xlu0 %v3186
    %v3188 = vpop.xlane.xlu0 %3187
    %v3189 = vsel %vm2874, %v3173, 0.0
    %3190 = vadd.xlane.f32.xlu0 %v3189
    %v3191 = vpop.xlane.xlu0 %3190
    %v3192 = vsel %vm2874, %v3174, 0.0
    %3193 = vadd.xlane.f32.xlu0 %v3192
    %v3194 = vpop.xlane.xlu0 %3193
    %v3195 = vsel %vm2874, %v3175, 0.0
    %3196 = vadd.xlane.f32.xlu0 %v3195
    %v3197 = vpop.xlane.xlu0 %3196
    %v3198 = vsel %vm2874, %v3176, 0.0
    %3199 = vadd.xlane.f32.xlu0 %v3198
    %v3200 = vpop.xlane.xlu0 %3199
    %v3201 = vadd.f32 %v3179, %v47
    %v3202 = vadd.f32 %v3182, %v48
    %v3203 = vadd.f32 %v3185, %v49
    %v3204 = vadd.f32 %v3188, %v50
    %v3205 = vadd.f32 %v3191, %v51
    %v3206 = vadd.f32 %v3194, %v52
    %v3207 = vadd.f32 %v3197, %v53
    %v3208 = vadd.f32 %v3200, %v54
    %v3209 = vxor.u32 %v3201, 2147483648
    %v3210 = vxor.u32 %v3202, 2147483648
    %v3211 = vxor.u32 %v3203, 2147483648
    %v3212 = vxor.u32 %v3204, 2147483648
    %v3213 = vxor.u32 %v3205, 2147483648
    %v3214 = vxor.u32 %v3206, 2147483648
    %v3215 = vxor.u32 %v3207, 2147483648
    %v3216 = vxor.u32 %v3208, 2147483648
    %v3217 = vmul.f32 %v3209, 1.442695
    %v3218 = vpow.pop %v3217
    %v3219 = vmul.f32 %v3210, 1.442695
    %v3220 = vpow.pop %v3219
    %v3221 = vmul.f32 %v3211, 1.442695
    %v3222 = vpow.pop %v3221
    %v3223 = vmul.f32 %v3212, 1.442695
    %v3224 = vpow.pop %v3223
    %v3225 = vmul.f32 %v3213, 1.442695
    %v3226 = vpow.pop %v3225
    %v3227 = vmul.f32 %v3214, 1.442695
    %v3228 = vpow.pop %v3227
    %v3229 = vmul.f32 %v3215, 1.442695
    %v3230 = vpow.pop %v3229
    %v3231 = vmul.f32 %v3216, 1.442695
    %v3232 = vpow.pop %v3231
    %v3233 = vadd.f32 %v3218, 1.0
    %v3234 = vadd.f32 %v3220, 1.0
    %v3235 = vadd.f32 %v3222, 1.0
    %v3236 = vadd.f32 %v3224, 1.0
    %v3237 = vadd.f32 %v3226, 1.0
    %v3238 = vadd.f32 %v3228, 1.0
    %v3239 = vadd.f32 %v3230, 1.0
    %v3240 = vadd.f32 %v3232, 1.0
    %v3241 = vrcp.pop %v3233
    %v3242 = vmul.f32 1.0, %v3241
    %v3243 = vrcp.pop %v3234
    %v3244 = vmul.f32 1.0, %v3243
    %v3245 = vrcp.pop %v3235
    %v3246 = vmul.f32 1.0, %v3245
    %v3247 = vrcp.pop %v3236
    %v3248 = vmul.f32 1.0, %v3247
    %v3249 = vrcp.pop %v3237
    %v3250 = vmul.f32 1.0, %v3249
    %v3251 = vrcp.pop %v3238
    %v3252 = vmul.f32 1.0, %v3251
    %v3253 = vrcp.pop %v3239
    %v3254 = vmul.f32 1.0, %v3253
    %v3255 = vrcp.pop %v3240
    %v3256 = vmul.f32 1.0, %v3255
    %3258 = vset.pattern.permute.xlu0 2
    %3259 = vperm.xlu0 %3258, %v3242
    %v3260 = vpop.permute.xlu0 %3259
    %3263 = vset.pattern.permute.xlu0 2
    %3264 = vperm.xlu0 %3263, %v3244
    %v3265 = vpop.permute.xlu0 %3264
    %3268 = vset.pattern.permute.xlu0 2
    %3269 = vperm.xlu0 %3268, %v3246
    %v3270 = vpop.permute.xlu0 %3269
    %3273 = vset.pattern.permute.xlu0 2
    %3274 = vperm.xlu0 %3273, %v3248
    %v3275 = vpop.permute.xlu0 %3274
    %v3277 = vmul.f32 %v2767, %v3260
    %v3278 = vmul.f32 %v2768, %v3260
    %v3279 = vmul.f32 %v2771, %v3265
    %v3280 = vmul.f32 %v2772, %v3265
    %v3281 = vmul.f32 %v2775, %v3270
    %v3282 = vmul.f32 %v2776, %v3270
    %v3283 = vmul.f32 %v2779, %v3275
    %v3284 = vmul.f32 %v2780, %v3275
    %v3285 = vld [vmem:[%s0 + $0x10] sm:$0xff]
    %v3286 = vld [vmem:[%s0 + $0x18] sm:$0xff]
    %v3287 = vld [vmem:[%s0 + $0x30] sm:$0xff]
    %v3288 = vld [vmem:[%s0 + $0x38] sm:$0xff]
    %v3289 = vld [vmem:[%s0 + $0x50] sm:$0xff]
    %v3290 = vld [vmem:[%s0 + $0x58] sm:$0xff]
    %v3291 = vld [vmem:[%s0 + $0x70] sm:$0xff]
    %v3292 = vld [vmem:[%s0 + $0x78] sm:$0xff]
    %v3293 = vadd.f32 %v3277, %v3285
    %v3294 = vadd.f32 %v3278, %v3286
    %v3295 = vadd.f32 %v3279, %v3287
    %v3296 = vadd.f32 %v3280, %v3288
    %v3297 = vadd.f32 %v3281, %v3289
    %v3298 = vadd.f32 %v3282, %v3290
    %v3299 = vadd.f32 %v3283, %v3291
    %v3300 = vadd.f32 %v3284, %v3292
    %3301 = vst [vmem:[%s9 + $0x10] sm:$0xff] %v3293
    %3302 = vst [vmem:[%s9 + $0x18] sm:$0xff] %v3294
    %3303 = vst [vmem:[%s9 + $0x30] sm:$0xff] %v3295
    %3304 = vst [vmem:[%s9 + $0x38] sm:$0xff] %v3296
    %3305 = vst [vmem:[%s9 + $0x50] sm:$0xff] %v3297
    %3306 = vst [vmem:[%s9 + $0x58] sm:$0xff] %v3298
    %3307 = vst [vmem:[%s9 + $0x70] sm:$0xff] %v3299
    %3308 = vst [vmem:[%s9 + $0x78] sm:$0xff] %v3300
    %3310 = vset.pattern.permute.xlu0 2
    %3311 = vperm.xlu0 %3310, %v3250
    %v3312 = vpop.permute.xlu0 %3311
    %3315 = vset.pattern.permute.xlu0 2
    %3316 = vperm.xlu0 %3315, %v3252
    %v3317 = vpop.permute.xlu0 %3316
    %3320 = vset.pattern.permute.xlu0 2
    %3321 = vperm.xlu0 %3320, %v3254
    %v3322 = vpop.permute.xlu0 %3321
    %3325 = vset.pattern.permute.xlu0 2
    %3326 = vperm.xlu0 %3325, %v3256
    %v3327 = vpop.permute.xlu0 %3326
    %v3329 = vmul.f32 %v2815, %v3312
    %v3330 = vmul.f32 %v2816, %v3312
    %v3331 = vmul.f32 %v2819, %v3317
    %v3332 = vmul.f32 %v2820, %v3317
    %v3333 = vmul.f32 %v2823, %v3322
    %v3334 = vmul.f32 %v2824, %v3322
    %v3335 = vmul.f32 %v2827, %v3327
    %v3336 = vmul.f32 %v2828, %v3327
    %v3337 = vld [vmem:[%s0 + $0x90] sm:$0xff]
    %v3338 = vld [vmem:[%s0 + $0x98] sm:$0xff]
    %v3339 = vld [vmem:[%s0 + $0xb0] sm:$0xff]
    %v3340 = vld [vmem:[%s0 + $0xb8] sm:$0xff]
    %v3341 = vld [vmem:[%s0 + $0xd0] sm:$0xff]
    %v3342 = vld [vmem:[%s0 + $0xd8] sm:$0xff]
    %v3343 = vld [vmem:[%s0 + $0xf0] sm:$0xff]
    %v3344 = vld [vmem:[%s0 + $0xf8] sm:$0xff]
    %v3345 = vadd.f32 %v3329, %v3337
    %v3346 = vadd.f32 %v3330, %v3338
    %v3347 = vadd.f32 %v3331, %v3339
    %v3348 = vadd.f32 %v3332, %v3340
    %v3349 = vadd.f32 %v3333, %v3341
    %v3350 = vadd.f32 %v3334, %v3342
    %v3351 = vadd.f32 %v3335, %v3343
    %v3352 = vadd.f32 %v3336, %v3344
    %3353 = vst [vmem:[%s9 + $0x90] sm:$0xff] %v3345
    %3354 = vst [vmem:[%s9 + $0x98] sm:$0xff] %v3346
    %3355 = vst [vmem:[%s9 + $0xb0] sm:$0xff] %v3347
    %3356 = vst [vmem:[%s9 + $0xb8] sm:$0xff] %v3348
    %3357 = vst [vmem:[%s9 + $0xd0] sm:$0xff] %v3349
    %3358 = vst [vmem:[%s9 + $0xd8] sm:$0xff] %v3350
    %3359 = vst [vmem:[%s9 + $0xf0] sm:$0xff] %v3351
    %3360 = vst [vmem:[%s9 + $0xf8] sm:$0xff] %v3352
    // Predicated region
    $region42: #{cgblock_forward.1} parent=1 // pred_check
      _
    $region43: #{cgblock_forward.1} parent=1 // pred_check_branch
      %3362 = sbr.rel (0) target = $region45
    $region44: #{cgblock_forward.1} parent=1 // pred_region
      _
    $region45: #{cgblock_forward.1} parent=1 // pred_fallthru
      _
    // Predicated region
    $region46: #{cgblock_forward.1} parent=1 // pred_check
      _
    $region47: #{cgblock_forward.1} parent=1 // pred_check_branch
      %3364 = sbr.rel (0) target = $region49
    $region48: #{cgblock_forward.1} parent=1 // pred_region
      _
    $region49: #{cgblock_forward.1} parent=1 // pred_fallthru
      _
    %3365 = vsyncpa [#allocation3], 1

</llo_original>
